<compile_context>
chip_gen: v7x
topology: tpu7x:2x2x1
jax: 0.10.0
libtpu: 0.0.40
codegen_flags: <defaults>
</compile_context>

<pallas_src>
import jax
import jax.numpy as jnp
from jax.experimental import pallas as pl
from jax.experimental.pallas import tpu as pltpu


# --------------------------------------------------------------------------- #
# Kernel                                                                      #
# --------------------------------------------------------------------------- #
def da_kernel(x_ref, pool_ref, eh_ref, ew_ref,
              w_ica1_ref, w_ica2_ref,
              w1_ref, b1_ref,
              wh_ref, bh_ref, ww_ref, bw_ref,
              o_ref):
    B, C, HW = x_ref.shape
    H = eh_ref.shape[0]
    W = ew_ref.shape[0]
    L = H + W
    f32 = jnp.float32
    mm_dtype = eh_ref.dtype            # bf16 when the I/O is bf16, else f32

    def stem_and_ica(pools_b, max_b):
        """Per-image coordinate stem + ICA MLP on pooled vectors (tiny matmuls)."""
        # ICA: conv2 is linear, so batch {avg, max} through conv1+SiLU (width-2
        # RHS) and sum the columns before a single width-1 conv2 matmul.
        v = jnp.concatenate([pools_b[:, L:L + 1], max_b], axis=1)           # (C, 2)
        h1 = jnp.dot(w_ica1_ref[...], v, preferred_element_type=f32)        # (2C, 2)
        h1 = h1 * jax.nn.sigmoid(h1)                                        # SiLU
        u = jnp.dot(w_ica2_ref[...], h1[:, 0:1] + h1[:, 1:2],
                    preferred_element_type=f32)                             # (C, 1)
        ica = jax.nn.sigmoid(u)

        # conv1 (BN folded) + SiLU on the (H+W)-wide pooled tensor.
        z = jnp.dot(w1_ref[...], pools_b[:, :L],
                    preferred_element_type=f32) + b1_ref[...]               # (mip, L)
        z = z * jax.nn.sigmoid(z)
        # NOTE: the :H / H: lane splits are off 128-alignment; negligible at
        # stem sizes (mip x (H+W)).
        a_h = jax.nn.sigmoid(jnp.dot(wh_ref[...], z[:, :H],
                                     preferred_element_type=f32) + bh_ref[...])  # (C, H)
        a_w = jax.nn.sigmoid(jnp.dot(ww_ref[...], z[:, H:],
                                     preferred_element_type=f32) + bw_ref[...])  # (C, W)
        return a_h, a_w, ica

    def apply_slab(x2d):
        """Hot path on a lane-dense (rows, HW) slab (rows = C or B*C)."""
        rows = x2d.shape[0]
        nimg = rows // C
        # Row / col / global-average pooling as a single MXU matmul; the last
        # pool_mat column is 1/(H*W) so the ICA avg vector is free.
        pools = jnp.dot(x2d.astype(mm_dtype), pool_ref[...],
                        preferred_element_type=f32)                         # (rows, L+1)
        max_c = jnp.max(x2d, axis=1, keepdims=True).astype(f32)             # (rows, 1)

        a_h_l, a_w_l, ica_l = [], [], []
        for i in range(nimg):                                               # static unroll
            a_h_i, a_w_i, ica_i = stem_and_ica(pools[i * C:(i + 1) * C],
                                               max_c[i * C:(i + 1) * C])
            a_h_l.append(a_h_i)
            a_w_l.append(a_w_i)
            ica_l.append(ica_i)
        a_h = jnp.concatenate(a_h_l, axis=0)                                # (rows, H)
        a_w = jnp.concatenate(a_w_l, axis=0)                                # (rows, W)
        ica = jnp.concatenate(ica_l, axis=0)                                # (rows, 1)

        # Expand a_h / a_w to the flat lane-dense layout via MXU (0/1 matrices,
        # bf16 when I/O is bf16).
        a_h_flat = jnp.dot(a_h.astype(mm_dtype), eh_ref[...],
                           preferred_element_type=f32)                      # (rows, HW)
        a_w_flat = jnp.dot(a_w.astype(mm_dtype), ew_ref[...],
                           preferred_element_type=f32)                      # (rows, HW)

        # out = x * (a_h (x) a_w + ica)   (factorized; no x1 temporary)
        return (x2d.astype(f32) * (a_h_flat * a_w_flat + ica)).astype(o_ref.dtype)

    if B == 1 or C % 8 == 0:
        # Merge (B, C) -> B*C rows: fills sublanes and runs one pooling /
        # expansion / apply pass over the whole block (free reinterpretation
        # because C is sublane-aligned or B == 1).
        out = apply_slab(x_ref[...].reshape(B * C, HW))
        o_ref[...] = out.reshape(B, C, HW)
    else:
        # C not a multiple of 8: merging would need a cross-tile relayout, so
        # process the images of the block one at a time (the batched block
        # still amortizes grid-step overhead and DMA size).
        for b in range(B):
            o_ref[b] = apply_slab(x_ref[b])


# --------------------------------------------------------------------------- #
# Host-side sizing helpers                                                    #
# --------------------------------------------------------------------------- #
def _round_up(v, m):
    return (v + m - 1) // m * m


def _padded_tile_bytes(rows, cols, itemsize):
    # VMEM allocations pad the last two dims to (8, 128) tiles.
    return _round_up(max(rows, 1), 8) * _round_up(max(cols, 1), 128) * itemsize


def _vmem_limit_bytes():
    """Generation-aware scoped-VMEM budget (well below physical on v7x)."""
    cap = 128 << 20
    try:
        cap = int(getattr(pltpu.get_tpu_info(), "vmem_capacity_bytes", cap)) or cap
    except Exception:
        pass
    if cap <= (64 << 20):                           # v7x-class: 64 MiB per TensorCore
        return int(min(cap * 3 // 4, 48 << 20))
    return int(min(cap - (28 << 20), 100 << 20))    # v5e / v6e: 128 MiB physical


def _pick_batch_block(N, C, H, W, mip, x_itemsize, mm_itemsize, vmem_limit):
    """Largest divisor of N (capped) whose per-step working set fits the budget."""
    HW = H * W
    L = H + W
    # Per image: x block + out block (double-buffered, I/O dtype) plus ~3
    # full-width f32 temporaries (a_h_flat, a_w_flat, apply value).
    per_image = _padded_tile_bytes(C, HW, 1) * (4 * x_itemsize + 3 * 4)
    # Constants are single-buffered (pl.Buffered(1)).
    const_bytes = (_padded_tile_bytes(HW, L + 1, mm_itemsize)
                   + _padded_tile_bytes(H, HW, mm_itemsize)
                   + _padded_tile_bytes(W, HW, mm_itemsize)
                   + _padded_tile_bytes(2 * C, C, 4)
                   + _padded_tile_bytes(C, 2 * C, 4)
                   + _padded_tile_bytes(mip, C, 4)
                   + 2 * _padded_tile_bytes(C, mip, 4)
                   + _padded_tile_bytes(mip, 1, 4)
                   + 2 * _padded_tile_bytes(C, 1, 4))
    budget = vmem_limit - const_bytes - (2 << 20)     # headroom for stem temporaries
    b = int(max(1, min(N, budget // per_image)))
    b = min(b, 16)                                    # keep the unrolled stem modest
    while N % b:
        b -= 1
    return b


# --------------------------------------------------------------------------- #
# Forward wrapper                                                             #
# --------------------------------------------------------------------------- #
def da_forward(x, params):
    """DA.forward (eval-mode BN) on TPU via Pallas."""
    N, C, H, W = x.shape
    HW = H * W
    L = H + W
    mip = params["w1"].shape[0]
    f32 = jnp.float32
    # bf16 I/O => run the wide pooling / expansion matmuls with bf16 operands
    # (f32 accumulation); the stem / ICA matmuls always run in f32.
    mm_dtype = jnp.bfloat16 if x.dtype == jnp.bfloat16 else f32

    # Fold eval-mode BatchNorm into conv1 (host side).
    w1f = (params["bn_scale"] * params["w1"]).astype(f32)                        # (mip, C)
    b1f = (params["bn_scale"] * params["b1"] + params["bn_shift"]).astype(f32)   # (mip, 1)

    # Constant pooling / expansion matrices, shared across the batch.
    eye_h = jnp.eye(H, dtype=f32)
    eye_w = jnp.eye(W, dtype=f32)
    pool_mat = jnp.concatenate(
        [jnp.kron(eye_h, jnp.ones((W, 1), f32)) / W,   # (HW, H): mean over W
         jnp.tile(eye_w, (H, 1)) / H,                  # (HW, W): mean over H
         jnp.full((HW, 1), 1.0 / HW, f32)],            # (HW, 1): global mean (ICA avg)
        axis=1).astype(mm_dtype)                       # (HW, H+W+1)
    expand_h = jnp.kron(eye_h, jnp.ones((1, W), f32)).astype(mm_dtype)   # (H, HW)
    expand_w = jnp.tile(eye_w, (1, H)).astype(mm_dtype)                  # (W, HW)

    vmem_limit = _vmem_limit_bytes()
    b_blk = _pick_batch_block(N, C, H, W, mip,
                              x_itemsize=x.dtype.itemsize,
                              mm_itemsize=jnp.dtype(mm_dtype).itemsize,
                              vmem_limit=vmem_limit)

    x_flat = x.reshape(N, C, HW)     # lane-dense presentation: last dim = H*W

    def build_and_run(single_buffer_consts):
        def const_spec(shape):
            idx = lambda n, _nd=len(shape): (0,) * _nd
            if single_buffer_consts:
                # Constant block index never changes across the grid -> single
                # buffer (halves the constants' VMEM footprint).
                return pl.BlockSpec(shape, idx, pipeline_mode=pl.Buffered(1))
            return pl.BlockSpec(shape, idx)

        in_specs = [
            pl.BlockSpec((b_blk, C, HW), lambda n: (n, 0, 0)),   # x
            const_spec((HW, L + 1)),                             # pool_mat
            const_spec((H, HW)),                                 # expand_h
            const_spec((W, HW)),                                 # expand_w
            const_spec((2 * C, C)),                              # w_ica1
            const_spec((C, 2 * C)),                              # w_ica2
            const_spec((mip, C)),                                # w1 (BN folded)
            const_spec((mip, 1)),                                # b1 (BN folded)
            const_spec((C, mip)),                                # wh
            const_spec((C, 1)),                                  # bh
            const_spec((C, mip)),                                # ww
            const_spec((C, 1)),                                  # bw
        ]
        out_spec = pl.BlockSpec((b_blk, C, HW), lambda n: (n, 0, 0))

        return pl.pallas_call(
            da_kernel,
            out_shape=jax.ShapeDtypeStruct((N, C, HW), x.dtype),
            grid=(N // b_blk,),
            in_specs=in_specs,
            out_specs=out_spec,
            compiler_params=pltpu.CompilerParams(
                dimension_semantics=("parallel",),
                vmem_limit_bytes=int(vmem_limit),
            ),
        )(x_flat, pool_mat, expand_h, expand_w,
          params["w_ica1"], params["w_ica2"], w1f, b1f,
          params["wh"], params["bh"], params["ww"], params["bw"])

    try:
        out_flat = build_and_run(single_buffer_consts=True)
    except Exception:
        # pipeline_mode=pl.Buffered(1) unavailable on this jax version: fall
        # back to default double-buffered constants (correctness unchanged).
        out_flat = build_and_run(single_buffer_consts=False)

    return out_flat.reshape(N, C, H, W)


# --------------------------------------------------------------------------- #
# Pure-JAX reference + parameter construction                                 #
# --------------------------------------------------------------------------- #
def da_reference(x, p):
    """Pure-JAX mirror of the PyTorch DA.forward (eval-mode BN, unfolded)."""
    n, c, h, w = x.shape

    def ica_mlp(v):                                  # v: (n, c)
        h1 = v @ p["w_ica1"].T
        h1 = h1 * jax.nn.sigmoid(h1)
        return h1 @ p["w_ica2"].T

    avg = jnp.mean(x, axis=(2, 3))
    mx = jnp.max(x, axis=(2, 3))
    ica = jax.nn.sigmoid(ica_mlp(avg) + ica_mlp(mx))[:, :, None, None]
    x1 = ica * x

    pool_h = jnp.mean(x, axis=3)                     # (n, c, h)
    pool_w = jnp.mean(x, axis=2)                     # (n, c, w)
    y = jnp.concatenate([pool_h, pool_w], axis=2)    # (n, c, h+w)
    z = jnp.einsum("mc,ncl->nml", p["w1"], y) + p["b1"][None]
    z = z * p["bn_scale"][None] + p["bn_shift"][None]
    z = z * jax.nn.sigmoid(z)
    z_h, z_w = z[:, :, :h], z[:, :, h:]
    a_h = jax.nn.sigmoid(jnp.einsum("cm,nml->ncl", p["wh"], z_h) + p["bh"][None])
    a_w = jax.nn.sigmoid(jnp.einsum("cm,nml->ncl", p["ww"], z_w) + p["bw"][None])
    return x * a_w[:, :, None, :] * a_h[:, :, :, None] + x1


def make_params(key, inp, reduction=32, ratio=2):
    mip = max(8, inp // reduction)
    ks = jax.random.split(key, 12)
    f32 = jnp.float32

    gamma = 1.0 + 0.1 * jax.random.normal(ks[8], (mip, 1), f32)
    beta = 0.1 * jax.random.normal(ks[9], (mip, 1), f32)
    run_mean = 0.1 * jax.random.normal(ks[10], (mip, 1), f32)
    run_var = 1.0 + 0.1 * jnp.abs(jax.random.normal(ks[11], (mip, 1), f32))
    eps = 1e-5
    bn_scale = gamma / jnp.sqrt(run_var + eps)
    bn_shift = beta - run_mean * bn_scale

    return {
        # ICA shared MLP (1x1 convs, no bias)
        "w_ica1": 0.5 * jax.random.normal(ks[0], (ratio * inp, inp), f32),
        "w_ica2": 0.5 * jax.random.normal(ks[1], (inp, ratio * inp), f32),
        # conv1 + BN (eval)
        "w1": 0.5 * jax.random.normal(ks[2], (mip, inp), f32),
        "b1": 0.1 * jax.random.normal(ks[3], (mip, 1), f32),
        "bn_scale": bn_scale,
        "bn_shift": bn_shift,
        # conv_h / conv_w
        "wh": 0.5 * jax.random.normal(ks[4], (inp, mip), f32),
        "bh": 0.1 * jax.random.normal(ks[5], (inp, 1), f32),
        "ww": 0.5 * jax.random.normal(ks[6], (inp, mip), f32),
        "bw": 0.1 * jax.random.normal(ks[7], (inp, 1), f32),
    }


def _check(x, params, ref, rtol, atol):
    out = jax.block_until_ready(da_forward(x, params))
    assert out.shape == x.shape
    out_f32 = out.astype(jnp.float32)
    err = float(jnp.max(jnp.abs(out_f32 - ref)))
    assert jnp.allclose(out_f32, ref, rtol=rtol, atol=atol), f"max abs err {err}"


if __name__ == "__main__":
    key = jax.random.PRNGKey(0)
    k1, k2, k3, k4 = jax.random.split(key, 4)

    # Case 1: C not a multiple of 8 -> per-image path inside the batched block.
    x1 = jax.random.normal(k1, (2, 4, 16, 16), jnp.float32)
    p1 = make_params(k2, 4)
    ref1 = jax.block_until_ready(da_reference(x1, p1))
    _check(x1, p1, ref1, rtol=5e-5, atol=5e-5)

    # Case 2: C % 8 == 0 -> merged (B*C, HW) sublane-filled path.
    x2 = jax.random.normal(k3, (2, 16, 16, 16), jnp.float32)
    p2 = make_params(k4, 16)
    ref2 = jax.block_until_ready(da_reference(x2, p2))
    _check(x2, p2, ref2, rtol=5e-5, atol=5e-5)

    # Case 3: bf16 I/O (halves HBM traffic; wide matmuls in bf16) -> loose tol.
    _check(x2.astype(jnp.bfloat16), p2, ref2, rtol=3e-2, atol=5e-2)

    print("KERNEL_OK")
</pallas_src>

<mosaic_0001>
module attributes {stable_mosaic.version = 11 : i64} {
  func.func @da_kernel(%arg0: i32, %arg1: memref<2x4x256xf32, #tpu.memory_space<vmem>>, %arg2: memref<256x33xf32, #tpu.memory_space<vmem>>, %arg3: memref<16x256xf32, #tpu.memory_space<vmem>>, %arg4: memref<16x256xf32, #tpu.memory_space<vmem>>, %arg5: memref<8x4xf32, #tpu.memory_space<vmem>>, %arg6: memref<4x8xf32, #tpu.memory_space<vmem>>, %arg7: memref<8x4xf32, #tpu.memory_space<vmem>>, %arg8: memref<8x1xf32, #tpu.memory_space<vmem>>, %arg9: memref<4x8xf32, #tpu.memory_space<vmem>>, %arg10: memref<4x1xf32, #tpu.memory_space<vmem>>, %arg11: memref<4x8xf32, #tpu.memory_space<vmem>>, %arg12: memref<4x1xf32, #tpu.memory_space<vmem>>, %arg13: memref<2x4x256xf32, #tpu.memory_space<vmem>>) attributes {dimension_semantics = [#tpu.dimension_semantics<parallel>], iteration_bounds = array<i64: 1>, scalar_prefetch = 0 : i64, scratch_operands = 0 : i64, tpu.core_type = #tpu.core_type<tc>, window_params = [{transform_indices = @transform_0, window_bounds = array<i64: 2, 4, 256>}, {pipeline_mode = #tpu.pipeline_mode<synchronous>, transform_indices = @transform_1, window_bounds = array<i64: 256, 33>}, {pipeline_mode = #tpu.pipeline_mode<synchronous>, transform_indices = @transform_2, window_bounds = array<i64: 16, 256>}, {pipeline_mode = #tpu.pipeline_mode<synchronous>, transform_indices = @transform_3, window_bounds = array<i64: 16, 256>}, {pipeline_mode = #tpu.pipeline_mode<synchronous>, transform_indices = @transform_4, window_bounds = array<i64: 8, 4>}, {pipeline_mode = #tpu.pipeline_mode<synchronous>, transform_indices = @transform_5, window_bounds = array<i64: 4, 8>}, {pipeline_mode = #tpu.pipeline_mode<synchronous>, transform_indices = @transform_6, window_bounds = array<i64: 8, 4>}, {pipeline_mode = #tpu.pipeline_mode<synchronous>, transform_indices = @transform_7, window_bounds = array<i64: 8, 1>}, {pipeline_mode = #tpu.pipeline_mode<synchronous>, transform_indices = @transform_8, window_bounds = array<i64: 4, 8>}, {pipeline_mode = #tpu.pipeline_mode<synchronous>, transform_indices = @transform_9, window_bounds = array<i64: 4, 1>}, {pipeline_mode = #tpu.pipeline_mode<synchronous>, transform_indices = @transform_10, window_bounds = array<i64: 4, 8>}, {pipeline_mode = #tpu.pipeline_mode<synchronous>, transform_indices = @transform_11, window_bounds = array<i64: 4, 1>}, {transform_indices = @transform_12, window_bounds = array<i64: 2, 4, 256>}]} {
    %c0 = arith.constant 0 : index
    %c0_0 = arith.constant 0 : index
    %c0_1 = arith.constant 0 : index
    %0 = vector.load %arg1[%c0, %c0_0, %c0_1] : memref<2x4x256xf32, #tpu.memory_space<vmem>>, vector<1x4x256xf32>
    %1 = vector.shape_cast %0 : vector<1x4x256xf32> to vector<4x256xf32>
    %c0_2 = arith.constant 0 : index
    %c0_3 = arith.constant 0 : index
    %2 = vector.load %arg2[%c0_2, %c0_3] : memref<256x33xf32, #tpu.memory_space<vmem>>, vector<256x33xf32>
    %cst = arith.constant dense<0.000000e+00> : vector<4x33xf32>
    %3 = tpu.matmul %1, %2, %cst {dimension_numbers = #tpu.dot_dimension_numbers<[1], [0], [0], [1], [0, 0, 1, 1], [], []>} : vector<4x256xf32>, vector<256x33xf32>, vector<4x33xf32> -> vector<4x33xf32>
    %cst_4 = arith.constant dense<0xFF800000> : vector<4xf32>
    %4 = vector.multi_reduction <maximumf>, %1, %cst_4 [1] : vector<4x256xf32> to vector<4xf32>
    %5 = vector.shape_cast %4 : vector<4xf32> to vector<4x1xf32>
    %6 = vector.extract_strided_slice %3 {offsets = [0, 32], sizes = [4, 1], strides = [1, 1]} : vector<4x33xf32> to vector<4x1xf32>
    %7 = tpu.concatenate %6, %5 in 1 : vector<4x1xf32>, vector<4x1xf32> -> vector<4x2xf32>
    %c0_5 = arith.constant 0 : index
    %c0_6 = arith.constant 0 : index
    %8 = vector.load %arg5[%c0_5, %c0_6] : memref<8x4xf32, #tpu.memory_space<vmem>>, vector<8x4xf32>
    %cst_7 = arith.constant dense<0.000000e+00> : vector<8x2xf32>
    %9 = tpu.matmul %8, %7, %cst_7 {dimension_numbers = #tpu.dot_dimension_numbers<[1], [0], [0], [1], [0, 0, 1, 1], [], []>} : vector<8x4xf32>, vector<4x2xf32>, vector<8x2xf32> -> vector<8x2xf32>
    %10 = arith.negf %9 : vector<8x2xf32>
    %11 = math.exp %10 : vector<8x2xf32>
    %cst_8 = arith.constant 1.000000e+00 : f32
    %12 = vector.broadcast %cst_8 : f32 to vector<8x2xf32>
    %13 = arith.addf %12, %11 : vector<8x2xf32>
    %14 = arith.divf %12, %13 : vector<8x2xf32>
    %15 = arith.mulf %9, %14 : vector<8x2xf32>
    %c0_9 = arith.constant 0 : index
    %c0_10 = arith.constant 0 : index
    %16 = vector.load %arg6[%c0_9, %c0_10] : memref<4x8xf32, #tpu.memory_space<vmem>>, vector<4x8xf32>
    %17 = vector.extract_strided_slice %15 {offsets = [0, 0], sizes = [8, 1], strides = [1, 1]} : vector<8x2xf32> to vector<8x1xf32>
    %18 = vector.extract_strided_slice %15 {offsets = [0, 1], sizes = [8, 1], strides = [1, 1]} : vector<8x2xf32> to vector<8x1xf32>
    %19 = arith.addf %17, %18 : vector<8x1xf32>
    %cst_11 = arith.constant dense<0.000000e+00> : vector<4x1xf32>
    %20 = tpu.matmul %16, %19, %cst_11 {dimension_numbers = #tpu.dot_dimension_numbers<[1], [0], [0], [1], [0, 0, 1, 1], [], []>} : vector<4x8xf32>, vector<8x1xf32>, vector<4x1xf32> -> vector<4x1xf32>
    %21 = arith.negf %20 : vector<4x1xf32>
    %22 = math.exp %21 : vector<4x1xf32>
    %cst_12 = arith.constant 1.000000e+00 : f32
    %23 = vector.broadcast %cst_12 : f32 to vector<4x1xf32>
    %24 = arith.addf %23, %22 : vector<4x1xf32>
    %25 = arith.divf %23, %24 : vector<4x1xf32>
    %c0_13 = arith.constant 0 : index
    %c0_14 = arith.constant 0 : index
    %26 = vector.load %arg7[%c0_13, %c0_14] : memref<8x4xf32, #tpu.memory_space<vmem>>, vector<8x4xf32>
    %27 = vector.extract_strided_slice %3 {offsets = [0, 0], sizes = [4, 32], strides = [1, 1]} : vector<4x33xf32> to vector<4x32xf32>
    %cst_15 = arith.constant dense<0.000000e+00> : vector<8x32xf32>
    %28 = tpu.matmul %26, %27, %cst_15 {dimension_numbers = #tpu.dot_dimension_numbers<[1], [0], [0], [1], [0, 0, 1, 1], [], []>} : vector<8x4xf32>, vector<4x32xf32>, vector<8x32xf32> -> vector<8x32xf32>
    %c0_16 = arith.constant 0 : index
    %c0_17 = arith.constant 0 : index
    %29 = vector.load %arg8[%c0_16, %c0_17] : memref<8x1xf32, #tpu.memory_space<vmem>>, vector<8x1xf32>
    %30 = vector.broadcast %29 : vector<8x1xf32> to vector<8x32xf32>
    %31 = arith.addf %28, %30 : vector<8x32xf32>
    %32 = arith.negf %31 : vector<8x32xf32>
    %33 = math.exp %32 : vector<8x32xf32>
    %cst_18 = arith.constant 1.000000e+00 : f32
    %34 = vector.broadcast %cst_18 : f32 to vector<8x32xf32>
    %35 = arith.addf %34, %33 : vector<8x32xf32>
    %36 = arith.divf %34, %35 : vector<8x32xf32>
    %37 = arith.mulf %31, %36 : vector<8x32xf32>
    %c0_19 = arith.constant 0 : index
    %c0_20 = arith.constant 0 : index
    %38 = vector.load %arg9[%c0_19, %c0_20] : memref<4x8xf32, #tpu.memory_space<vmem>>, vector<4x8xf32>
    %39 = vector.extract_strided_slice %37 {offsets = [0, 0], sizes = [8, 16], strides = [1, 1]} : vector<8x32xf32> to vector<8x16xf32>
    %cst_21 = arith.constant dense<0.000000e+00> : vector<4x16xf32>
    %40 = tpu.matmul %38, %39, %cst_21 {dimension_numbers = #tpu.dot_dimension_numbers<[1], [0], [0], [1], [0, 0, 1, 1], [], []>} : vector<4x8xf32>, vector<8x16xf32>, vector<4x16xf32> -> vector<4x16xf32>
    %c0_22 = arith.constant 0 : index
    %c0_23 = arith.constant 0 : index
    %41 = vector.load %arg10[%c0_22, %c0_23] : memref<4x1xf32, #tpu.memory_space<vmem>>, vector<4x1xf32>
    %42 = vector.broadcast %41 : vector<4x1xf32> to vector<4x16xf32>
    %43 = arith.addf %40, %42 : vector<4x16xf32>
    %44 = arith.negf %43 : vector<4x16xf32>
    %45 = math.exp %44 : vector<4x16xf32>
    %cst_24 = arith.constant 1.000000e+00 : f32
    %46 = vector.broadcast %cst_24 : f32 to vector<4x16xf32>
    %47 = arith.addf %46, %45 : vector<4x16xf32>
    %48 = arith.divf %46, %47 : vector<4x16xf32>
    %c0_25 = arith.constant 0 : index
    %c0_26 = arith.constant 0 : index
    %49 = vector.load %arg11[%c0_25, %c0_26] : memref<4x8xf32, #tpu.memory_space<vmem>>, vector<4x8xf32>
    %50 = vector.extract_strided_slice %37 {offsets = [0, 16], sizes = [8, 16], strides = [1, 1]} : vector<8x32xf32> to vector<8x16xf32>
    %cst_27 = arith.constant dense<0.000000e+00> : vector<4x16xf32>
    %51 = tpu.matmul %49, %50, %cst_27 {dimension_numbers = #tpu.dot_dimension_numbers<[1], [0], [0], [1], [0, 0, 1, 1], [], []>} : vector<4x8xf32>, vector<8x16xf32>, vector<4x16xf32> -> vector<4x16xf32>
    %c0_28 = arith.constant 0 : index
    %c0_29 = arith.constant 0 : index
    %52 = vector.load %arg12[%c0_28, %c0_29] : memref<4x1xf32, #tpu.memory_space<vmem>>, vector<4x1xf32>
    %53 = vector.broadcast %52 : vector<4x1xf32> to vector<4x16xf32>
    %54 = arith.addf %51, %53 : vector<4x16xf32>
    %55 = arith.negf %54 : vector<4x16xf32>
    %56 = math.exp %55 : vector<4x16xf32>
    %cst_30 = arith.constant 1.000000e+00 : f32
    %57 = vector.broadcast %cst_30 : f32 to vector<4x16xf32>
    %58 = arith.addf %57, %56 : vector<4x16xf32>
    %59 = arith.divf %57, %58 : vector<4x16xf32>
    %c0_31 = arith.constant 0 : index
    %c0_32 = arith.constant 0 : index
    %60 = vector.load %arg3[%c0_31, %c0_32] : memref<16x256xf32, #tpu.memory_space<vmem>>, vector<16x256xf32>
    %cst_33 = arith.constant dense<0.000000e+00> : vector<4x256xf32>
    %61 = tpu.matmul %48, %60, %cst_33 {dimension_numbers = #tpu.dot_dimension_numbers<[1], [0], [0], [1], [0, 0, 1, 1], [], []>} : vector<4x16xf32>, vector<16x256xf32>, vector<4x256xf32> -> vector<4x256xf32>
    %c0_34 = arith.constant 0 : index
    %c0_35 = arith.constant 0 : index
    %62 = vector.load %arg4[%c0_34, %c0_35] : memref<16x256xf32, #tpu.memory_space<vmem>>, vector<16x256xf32>
    %cst_36 = arith.constant dense<0.000000e+00> : vector<4x256xf32>
    %63 = tpu.matmul %59, %62, %cst_36 {dimension_numbers = #tpu.dot_dimension_numbers<[1], [0], [0], [1], [0, 0, 1, 1], [], []>} : vector<4x16xf32>, vector<16x256xf32>, vector<4x256xf32> -> vector<4x256xf32>
    %64 = arith.mulf %61, %63 : vector<4x256xf32>
    %65 = vector.broadcast %25 : vector<4x1xf32> to vector<4x256xf32>
    %66 = arith.addf %64, %65 : vector<4x256xf32>
    %67 = arith.mulf %1, %66 : vector<4x256xf32>
    %c0_37 = arith.constant 0 : index
    %c0_38 = arith.constant 0 : index
    %c0_39 = arith.constant 0 : index
    %68 = vector.load %arg13[%c0_37, %c0_38, %c0_39] : memref<2x4x256xf32, #tpu.memory_space<vmem>>, vector<1x4x256xf32>
    %69 = vector.shape_cast %68 : vector<1x4x256xf32> to vector<4x256xf32>
    %70 = vector.shape_cast %67 : vector<4x256xf32> to vector<1x4x256xf32>
    tpu.vector_store %arg13[%c0_37, %c0_38, %c0_39], %70 {strides = array<i32>} : memref<2x4x256xf32, #tpu.memory_space<vmem>>, vector<1x4x256xf32>,
    %c1 = arith.constant 1 : index
    %c0_40 = arith.constant 0 : index
    %c0_41 = arith.constant 0 : index
    %71 = vector.load %arg1[%c1, %c0_40, %c0_41] : memref<2x4x256xf32, #tpu.memory_space<vmem>>, vector<1x4x256xf32>
    %72 = vector.shape_cast %71 : vector<1x4x256xf32> to vector<4x256xf32>
    %c0_42 = arith.constant 0 : index
    %c0_43 = arith.constant 0 : index
    %73 = vector.load %arg2[%c0_42, %c0_43] : memref<256x33xf32, #tpu.memory_space<vmem>>, vector<256x33xf32>
    %cst_44 = arith.constant dense<0.000000e+00> : vector<4x33xf32>
    %74 = tpu.matmul %72, %73, %cst_44 {dimension_numbers = #tpu.dot_dimension_numbers<[1], [0], [0], [1], [0, 0, 1, 1], [], []>} : vector<4x256xf32>, vector<256x33xf32>, vector<4x33xf32> -> vector<4x33xf32>
    %cst_45 = arith.constant dense<0xFF800000> : vector<4xf32>
    %75 = vector.multi_reduction <maximumf>, %72, %cst_45 [1] : vector<4x256xf32> to vector<4xf32>
    %76 = vector.shape_cast %75 : vector<4xf32> to vector<4x1xf32>
    %77 = vector.extract_strided_slice %74 {offsets = [0, 32], sizes = [4, 1], strides = [1, 1]} : vector<4x33xf32> to vector<4x1xf32>
    %78 = tpu.concatenate %77, %76 in 1 : vector<4x1xf32>, vector<4x1xf32> -> vector<4x2xf32>
    %c0_46 = arith.constant 0 : index
    %c0_47 = arith.constant 0 : index
    %79 = vector.load %arg5[%c0_46, %c0_47] : memref<8x4xf32, #tpu.memory_space<vmem>>, vector<8x4xf32>
    %cst_48 = arith.constant dense<0.000000e+00> : vector<8x2xf32>
    %80 = tpu.matmul %79, %78, %cst_48 {dimension_numbers = #tpu.dot_dimension_numbers<[1], [0], [0], [1], [0, 0, 1, 1], [], []>} : vector<8x4xf32>, vector<4x2xf32>, vector<8x2xf32> -> vector<8x2xf32>
    %81 = arith.negf %80 : vector<8x2xf32>
    %82 = math.exp %81 : vector<8x2xf32>
    %cst_49 = arith.constant 1.000000e+00 : f32
    %83 = vector.broadcast %cst_49 : f32 to vector<8x2xf32>
    %84 = arith.addf %83, %82 : vector<8x2xf32>
    %85 = arith.divf %83, %84 : vector<8x2xf32>
    %86 = arith.mulf %80, %85 : vector<8x2xf32>
    %c0_50 = arith.constant 0 : index
    %c0_51 = arith.constant 0 : index
    %87 = vector.load %arg6[%c0_50, %c0_51] : memref<4x8xf32, #tpu.memory_space<vmem>>, vector<4x8xf32>
    %88 = vector.extract_strided_slice %86 {offsets = [0, 0], sizes = [8, 1], strides = [1, 1]} : vector<8x2xf32> to vector<8x1xf32>
    %89 = vector.extract_strided_slice %86 {offsets = [0, 1], sizes = [8, 1], strides = [1, 1]} : vector<8x2xf32> to vector<8x1xf32>
    %90 = arith.addf %88, %89 : vector<8x1xf32>
    %cst_52 = arith.constant dense<0.000000e+00> : vector<4x1xf32>
    %91 = tpu.matmul %87, %90, %cst_52 {dimension_numbers = #tpu.dot_dimension_numbers<[1], [0], [0], [1], [0, 0, 1, 1], [], []>} : vector<4x8xf32>, vector<8x1xf32>, vector<4x1xf32> -> vector<4x1xf32>
    %92 = arith.negf %91 : vector<4x1xf32>
    %93 = math.exp %92 : vector<4x1xf32>
    %cst_53 = arith.constant 1.000000e+00 : f32
    %94 = vector.broadcast %cst_53 : f32 to vector<4x1xf32>
    %95 = arith.addf %94, %93 : vector<4x1xf32>
    %96 = arith.divf %94, %95 : vector<4x1xf32>
    %c0_54 = arith.constant 0 : index
    %c0_55 = arith.constant 0 : index
    %97 = vector.load %arg7[%c0_54, %c0_55] : memref<8x4xf32, #tpu.memory_space<vmem>>, vector<8x4xf32>
    %98 = vector.extract_strided_slice %74 {offsets = [0, 0], sizes = [4, 32], strides = [1, 1]} : vector<4x33xf32> to vector<4x32xf32>
    %cst_56 = arith.constant dense<0.000000e+00> : vector<8x32xf32>
    %99 = tpu.matmul %97, %98, %cst_56 {dimension_numbers = #tpu.dot_dimension_numbers<[1], [0], [0], [1], [0, 0, 1, 1], [], []>} : vector<8x4xf32>, vector<4x32xf32>, vector<8x32xf32> -> vector<8x32xf32>
    %c0_57 = arith.constant 0 : index
    %c0_58 = arith.constant 0 : index
    %100 = vector.load %arg8[%c0_57, %c0_58] : memref<8x1xf32, #tpu.memory_space<vmem>>, vector<8x1xf32>
    %101 = vector.broadcast %100 : vector<8x1xf32> to vector<8x32xf32>
    %102 = arith.addf %99, %101 : vector<8x32xf32>
    %103 = arith.negf %102 : vector<8x32xf32>
    %104 = math.exp %103 : vector<8x32xf32>
    %cst_59 = arith.constant 1.000000e+00 : f32
    %105 = vector.broadcast %cst_59 : f32 to vector<8x32xf32>
    %106 = arith.addf %105, %104 : vector<8x32xf32>
    %107 = arith.divf %105, %106 : vector<8x32xf32>
    %108 = arith.mulf %102, %107 : vector<8x32xf32>
    %c0_60 = arith.constant 0 : index
    %c0_61 = arith.constant 0 : index
    %109 = vector.load %arg9[%c0_60, %c0_61] : memref<4x8xf32, #tpu.memory_space<vmem>>, vector<4x8xf32>
    %110 = vector.extract_strided_slice %108 {offsets = [0, 0], sizes = [8, 16], strides = [1, 1]} : vector<8x32xf32> to vector<8x16xf32>
    %cst_62 = arith.constant dense<0.000000e+00> : vector<4x16xf32>
    %111 = tpu.matmul %109, %110, %cst_62 {dimension_numbers = #tpu.dot_dimension_numbers<[1], [0], [0], [1], [0, 0, 1, 1], [], []>} : vector<4x8xf32>, vector<8x16xf32>, vector<4x16xf32> -> vector<4x16xf32>
    %c0_63 = arith.constant 0 : index
    %c0_64 = arith.constant 0 : index
    %112 = vector.load %arg10[%c0_63, %c0_64] : memref<4x1xf32, #tpu.memory_space<vmem>>, vector<4x1xf32>
    %113 = vector.broadcast %112 : vector<4x1xf32> to vector<4x16xf32>
    %114 = arith.addf %111, %113 : vector<4x16xf32>
    %115 = arith.negf %114 : vector<4x16xf32>
    %116 = math.exp %115 : vector<4x16xf32>
    %cst_65 = arith.constant 1.000000e+00 : f32
    %117 = vector.broadcast %cst_65 : f32 to vector<4x16xf32>
    %118 = arith.addf %117, %116 : vector<4x16xf32>
    %119 = arith.divf %117, %118 : vector<4x16xf32>
    %c0_66 = arith.constant 0 : index
    %c0_67 = arith.constant 0 : index
    %120 = vector.load %arg11[%c0_66, %c0_67] : memref<4x8xf32, #tpu.memory_space<vmem>>, vector<4x8xf32>
    %121 = vector.extract_strided_slice %108 {offsets = [0, 16], sizes = [8, 16], strides = [1, 1]} : vector<8x32xf32> to vector<8x16xf32>
    %cst_68 = arith.constant dense<0.000000e+00> : vector<4x16xf32>
    %122 = tpu.matmul %120, %121, %cst_68 {dimension_numbers = #tpu.dot_dimension_numbers<[1], [0], [0], [1], [0, 0, 1, 1], [], []>} : vector<4x8xf32>, vector<8x16xf32>, vector<4x16xf32> -> vector<4x16xf32>
    %c0_69 = arith.constant 0 : index
    %c0_70 = arith.constant 0 : index
    %123 = vector.load %arg12[%c0_69, %c0_70] : memref<4x1xf32, #tpu.memory_space<vmem>>, vector<4x1xf32>
    %124 = vector.broadcast %123 : vector<4x1xf32> to vector<4x16xf32>
    %125 = arith.addf %122, %124 : vector<4x16xf32>
    %126 = arith.negf %125 : vector<4x16xf32>
    %127 = math.exp %126 : vector<4x16xf32>
    %cst_71 = arith.constant 1.000000e+00 : f32
    %128 = vector.broadcast %cst_71 : f32 to vector<4x16xf32>
    %129 = arith.addf %128, %127 : vector<4x16xf32>
    %130 = arith.divf %128, %129 : vector<4x16xf32>
    %c0_72 = arith.constant 0 : index
    %c0_73 = arith.constant 0 : index
    %131 = vector.load %arg3[%c0_72, %c0_73] : memref<16x256xf32, #tpu.memory_space<vmem>>, vector<16x256xf32>
    %cst_74 = arith.constant dense<0.000000e+00> : vector<4x256xf32>
    %132 = tpu.matmul %119, %131, %cst_74 {dimension_numbers = #tpu.dot_dimension_numbers<[1], [0], [0], [1], [0, 0, 1, 1], [], []>} : vector<4x16xf32>, vector<16x256xf32>, vector<4x256xf32> -> vector<4x256xf32>
    %c0_75 = arith.constant 0 : index
    %c0_76 = arith.constant 0 : index
    %133 = vector.load %arg4[%c0_75, %c0_76] : memref<16x256xf32, #tpu.memory_space<vmem>>, vector<16x256xf32>
    %cst_77 = arith.constant dense<0.000000e+00> : vector<4x256xf32>
    %134 = tpu.matmul %130, %133, %cst_77 {dimension_numbers = #tpu.dot_dimension_numbers<[1], [0], [0], [1], [0, 0, 1, 1], [], []>} : vector<4x16xf32>, vector<16x256xf32>, vector<4x256xf32> -> vector<4x256xf32>
    %135 = arith.mulf %132, %134 : vector<4x256xf32>
    %136 = vector.broadcast %96 : vector<4x1xf32> to vector<4x256xf32>
    %137 = arith.addf %135, %136 : vector<4x256xf32>
    %138 = arith.mulf %72, %137 : vector<4x256xf32>
    %c1_78 = arith.constant 1 : index
    %c0_79 = arith.constant 0 : index
    %c0_80 = arith.constant 0 : index
    %139 = vector.load %arg13[%c1_78, %c0_79, %c0_80] : memref<2x4x256xf32, #tpu.memory_space<vmem>>, vector<1x4x256xf32>
    %140 = vector.shape_cast %139 : vector<1x4x256xf32> to vector<4x256xf32>
    %141 = vector.shape_cast %138 : vector<4x256xf32> to vector<1x4x256xf32>
    tpu.vector_store %arg13[%c1_78, %c0_79, %c0_80], %141 {strides = array<i32>} : memref<2x4x256xf32, #tpu.memory_space<vmem>>, vector<1x4x256xf32>,
    return
  }
  func.func @transform_0(%arg0: i32) -> (i32, i32, i32) {
    %c0_i32 = arith.constant 0 : i32
    %c0_i32_0 = arith.constant 0 : i32
    %c0_i32_1 = arith.constant 0 : i32
    return %arg0, %c0_i32, %c0_i32_0 : i32, i32, i32
  }
  func.func @transform_1(%arg0: i32) -> (i32, i32) {
    %c0_i32 = arith.constant 0 : i32
    %c0_i32_0 = arith.constant 0 : i32
    %c0_i32_1 = arith.constant 0 : i32
    return %c0_i32, %c0_i32_0 : i32, i32
  }
  func.func @transform_2(%arg0: i32) -> (i32, i32) {
    %c0_i32 = arith.constant 0 : i32
    %c0_i32_0 = arith.constant 0 : i32
    %c0_i32_1 = arith.constant 0 : i32
    return %c0_i32, %c0_i32_0 : i32, i32
  }
  func.func @transform_3(%arg0: i32) -> (i32, i32) {
    %c0_i32 = arith.constant 0 : i32
    %c0_i32_0 = arith.constant 0 : i32
    %c0_i32_1 = arith.constant 0 : i32
    return %c0_i32, %c0_i32_0 : i32, i32
  }
  func.func @transform_4(%arg0: i32) -> (i32, i32) {
    %c0_i32 = arith.constant 0 : i32
    %c0_i32_0 = arith.constant 0 : i32
    %c0_i32_1 = arith.constant 0 : i32
    return %c0_i32, %c0_i32_0 : i32, i32
  }
  func.func @transform_5(%arg0: i32) -> (i32, i32) {
    %c0_i32 = arith.constant 0 : i32
    %c0_i32_0 = arith.constant 0 : i32
    %c0_i32_1 = arith.constant 0 : i32
    return %c0_i32, %c0_i32_0 : i32, i32
  }
  func.func @transform_6(%arg0: i32) -> (i32, i32) {
    %c0_i32 = arith.constant 0 : i32
    %c0_i32_0 = arith.constant 0 : i32
    %c0_i32_1 = arith.constant 0 : i32
    return %c0_i32, %c0_i32_0 : i32, i32
  }
  func.func @transform_7(%arg0: i32) -> (i32, i32) {
    %c0_i32 = arith.constant 0 : i32
    %c0_i32_0 = arith.constant 0 : i32
    %c0_i32_1 = arith.constant 0 : i32
    return %c0_i32, %c0_i32_0 : i32, i32
  }
  func.func @transform_8(%arg0: i32) -> (i32, i32) {
    %c0_i32 = arith.constant 0 : i32
    %c0_i32_0 = arith.constant 0 : i32
    %c0_i32_1 = arith.constant 0 : i32
    return %c0_i32, %c0_i32_0 : i32, i32
  }
  func.func @transform_9(%arg0: i32) -> (i32, i32) {
    %c0_i32 = arith.constant 0 : i32
    %c0_i32_0 = arith.constant 0 : i32
    %c0_i32_1 = arith.constant 0 : i32
    return %c0_i32, %c0_i32_0 : i32, i32
  }
  func.func @transform_10(%arg0: i32) -> (i32, i32) {
    %c0_i32 = arith.constant 0 : i32
    %c0_i32_0 = arith.constant 0 : i32
    %c0_i32_1 = arith.constant 0 : i32
    return %c0_i32, %c0_i32_0 : i32, i32
  }
  func.func @transform_11(%arg0: i32) -> (i32, i32) {
    %c0_i32 = arith.constant 0 : i32
    %c0_i32_0 = arith.constant 0 : i32
    %c0_i32_1 = arith.constant 0 : i32
    return %c0_i32, %c0_i32_0 : i32, i32
  }
  func.func @transform_12(%arg0: i32) -> (i32, i32, i32) {
    %c0_i32 = arith.constant 0 : i32
    %c0_i32_0 = arith.constant 0 : i32
    %c0_i32_1 = arith.constant 0 : i32
    return %arg0, %c0_i32, %c0_i32_0 : i32, i32, i32
  }
}

module attributes {stable_mosaic.version = 11 : i64} {
  func.func @da_kernel(%arg0: i32, %arg1: memref<2x4x256xf32, #tpu.memory_space<vmem>>, %arg2: memref<256x33xf32, #tpu.memory_space<vmem>>, %arg3: memref<16x256xf32, #tpu.memory_space<vmem>>, %arg4: memref<16x256xf32, #tpu.memory_space<vmem>>, %arg5: memref<8x4xf32, #tpu.memory_space<vmem>>, %arg6: memref<4x8xf32, #tpu.memory_space<vmem>>, %arg7: memref<8x4xf32, #tpu.memory_space<vmem>>, %arg8: memref<8x1xf32, #tpu.memory_space<vmem>>, %arg9: memref<4x8xf32, #tpu.memory_space<vmem>>, %arg10: memref<4x1xf32, #tpu.memory_space<vmem>>, %arg11: memref<4x8xf32, #tpu.memory_space<vmem>>, %arg12: memref<4x1xf32, #tpu.memory_space<vmem>>, %arg13: memref<2x4x256xf32, #tpu.memory_space<vmem>>) attributes {dimension_semantics = [#tpu.dimension_semantics<parallel>], iteration_bounds = array<i64: 1>, scalar_prefetch = 0 : i64, scratch_operands = 0 : i64, tpu.core_type = #tpu.core_type<tc>, window_params = [{transform_indices = @transform_0, window_bounds = array<i64: 2, 4, 256>}, {pipeline_mode = #tpu.pipeline_mode<synchronous>, transform_indices = @transform_1, window_bounds = array<i64: 256, 33>}, {pipeline_mode = #tpu.pipeline_mode<synchronous>, transform_indices = @transform_2, window_bounds = array<i64: 16, 256>}, {pipeline_mode = #tpu.pipeline_mode<synchronous>, transform_indices = @transform_3, window_bounds = array<i64: 16, 256>}, {pipeline_mode = #tpu.pipeline_mode<synchronous>, transform_indices = @transform_4, window_bounds = array<i64: 8, 4>}, {pipeline_mode = #tpu.pipeline_mode<synchronous>, transform_indices = @transform_5, window_bounds = array<i64: 4, 8>}, {pipeline_mode = #tpu.pipeline_mode<synchronous>, transform_indices = @transform_6, window_bounds = array<i64: 8, 4>}, {pipeline_mode = #tpu.pipeline_mode<synchronous>, transform_indices = @transform_7, window_bounds = array<i64: 8, 1>}, {pipeline_mode = #tpu.pipeline_mode<synchronous>, transform_indices = @transform_8, window_bounds = array<i64: 4, 8>}, {pipeline_mode = #tpu.pipeline_mode<synchronous>, transform_indices = @transform_9, window_bounds = array<i64: 4, 1>}, {pipeline_mode = #tpu.pipeline_mode<synchronous>, transform_indices = @transform_10, window_bounds = array<i64: 4, 8>}, {pipeline_mode = #tpu.pipeline_mode<synchronous>, transform_indices = @transform_11, window_bounds = array<i64: 4, 1>}, {transform_indices = @transform_12, window_bounds = array<i64: 2, 4, 256>}]} {
    %c0 = arith.constant 0 : index
    %c0_0 = arith.constant 0 : index
    %c0_1 = arith.constant 0 : index
    %0 = vector.load %arg1[%c0, %c0_0, %c0_1] : memref<2x4x256xf32, #tpu.memory_space<vmem>>, vector<1x4x256xf32>
    %1 = vector.shape_cast %0 : vector<1x4x256xf32> to vector<4x256xf32>
    %c0_2 = arith.constant 0 : index
    %c0_3 = arith.constant 0 : index
    %2 = vector.load %arg2[%c0_2, %c0_3] : memref<256x33xf32, #tpu.memory_space<vmem>>, vector<256x33xf32>
    %cst = arith.constant dense<0.000000e+00> : vector<4x33xf32>
    %3 = tpu.matmul %1, %2, %cst {dimension_numbers = #tpu.dot_dimension_numbers<[1], [0], [0], [1], [0, 0, 1, 1], [], []>} : vector<4x256xf32>, vector<256x33xf32>, vector<4x33xf32> -> vector<4x33xf32>
    %cst_4 = arith.constant dense<0xFF800000> : vector<4xf32>
    %4 = vector.multi_reduction <maximumf>, %1, %cst_4 [1] : vector<4x256xf32> to vector<4xf32>
    %5 = vector.shape_cast %4 : vector<4xf32> to vector<4x1xf32>
    %6 = vector.extract_strided_slice %3 {offsets = [0, 32], sizes = [4, 1], strides = [1, 1]} : vector<4x33xf32> to vector<4x1xf32>
    %7 = tpu.concatenate %6, %5 in 1 : vector<4x1xf32>, vector<4x1xf32> -> vector<4x2xf32>
    %c0_5 = arith.constant 0 : index
    %c0_6 = arith.constant 0 : index
    %8 = vector.load %arg5[%c0_5, %c0_6] : memref<8x4xf32, #tpu.memory_space<vmem>>, vector<8x4xf32>
    %cst_7 = arith.constant dense<0.000000e+00> : vector<8x2xf32>
    %9 = tpu.matmul %8, %7, %cst_7 {dimension_numbers = #tpu.dot_dimension_numbers<[1], [0], [0], [1], [0, 0, 1, 1], [], []>} : vector<8x4xf32>, vector<4x2xf32>, vector<8x2xf32> -> vector<8x2xf32>
    %10 = arith.negf %9 : vector<8x2xf32>
    %11 = math.exp %10 : vector<8x2xf32>
    %cst_8 = arith.constant 1.000000e+00 : f32
    %12 = vector.broadcast %cst_8 : f32 to vector<8x2xf32>
    %13 = arith.addf %12, %11 : vector<8x2xf32>
    %14 = arith.divf %12, %13 : vector<8x2xf32>
    %15 = arith.mulf %9, %14 : vector<8x2xf32>
    %c0_9 = arith.constant 0 : index
    %c0_10 = arith.constant 0 : index
    %16 = vector.load %arg6[%c0_9, %c0_10] : memref<4x8xf32, #tpu.memory_space<vmem>>, vector<4x8xf32>
    %17 = vector.extract_strided_slice %15 {offsets = [0, 0], sizes = [8, 1], strides = [1, 1]} : vector<8x2xf32> to vector<8x1xf32>
    %18 = vector.extract_strided_slice %15 {offsets = [0, 1], sizes = [8, 1], strides = [1, 1]} : vector<8x2xf32> to vector<8x1xf32>
    %19 = arith.addf %17, %18 : vector<8x1xf32>
    %cst_11 = arith.constant dense<0.000000e+00> : vector<4x1xf32>
    %20 = tpu.matmul %16, %19, %cst_11 {dimension_numbers = #tpu.dot_dimension_numbers<[1], [0], [0], [1], [0, 0, 1, 1], [], []>} : vector<4x8xf32>, vector<8x1xf32>, vector<4x1xf32> -> vector<4x1xf32>
    %21 = arith.negf %20 : vector<4x1xf32>
    %22 = math.exp %21 : vector<4x1xf32>
    %cst_12 = arith.constant 1.000000e+00 : f32
    %23 = vector.broadcast %cst_12 : f32 to vector<4x1xf32>
    %24 = arith.addf %23, %22 : vector<4x1xf32>
    %25 = arith.divf %23, %24 : vector<4x1xf32>
    %c0_13 = arith.constant 0 : index
    %c0_14 = arith.constant 0 : index
    %26 = vector.load %arg7[%c0_13, %c0_14] : memref<8x4xf32, #tpu.memory_space<vmem>>, vector<8x4xf32>
    %27 = vector.extract_strided_slice %3 {offsets = [0, 0], sizes = [4, 32], strides = [1, 1]} : vector<4x33xf32> to vector<4x32xf32>
    %cst_15 = arith.constant dense<0.000000e+00> : vector<8x32xf32>
    %28 = tpu.matmul %26, %27, %cst_15 {dimension_numbers = #tpu.dot_dimension_numbers<[1], [0], [0], [1], [0, 0, 1, 1], [], []>} : vector<8x4xf32>, vector<4x32xf32>, vector<8x32xf32> -> vector<8x32xf32>
    %c0_16 = arith.constant 0 : index
    %c0_17 = arith.constant 0 : index
    %29 = vector.load %arg8[%c0_16, %c0_17] : memref<8x1xf32, #tpu.memory_space<vmem>>, vector<8x1xf32>
    %30 = vector.broadcast %29 : vector<8x1xf32> to vector<8x32xf32>
    %31 = arith.addf %28, %30 : vector<8x32xf32>
    %32 = arith.negf %31 : vector<8x32xf32>
    %33 = math.exp %32 : vector<8x32xf32>
    %cst_18 = arith.constant 1.000000e+00 : f32
    %34 = vector.broadcast %cst_18 : f32 to vector<8x32xf32>
    %35 = arith.addf %34, %33 : vector<8x32xf32>
    %36 = arith.divf %34, %35 : vector<8x32xf32>
    %37 = arith.mulf %31, %36 : vector<8x32xf32>
    %c0_19 = arith.constant 0 : index
    %c0_20 = arith.constant 0 : index
    %38 = vector.load %arg9[%c0_19, %c0_20] : memref<4x8xf32, #tpu.memory_space<vmem>>, vector<4x8xf32>
    %39 = vector.extract_strided_slice %37 {offsets = [0, 0], sizes = [8, 16], strides = [1, 1]} : vector<8x32xf32> to vector<8x16xf32>
    %cst_21 = arith.constant dense<0.000000e+00> : vector<4x16xf32>
    %40 = tpu.matmul %38, %39, %cst_21 {dimension_numbers = #tpu.dot_dimension_numbers<[1], [0], [0], [1], [0, 0, 1, 1], [], []>} : vector<4x8xf32>, vector<8x16xf32>, vector<4x16xf32> -> vector<4x16xf32>
    %c0_22 = arith.constant 0 : index
    %c0_23 = arith.constant 0 : index
    %41 = vector.load %arg10[%c0_22, %c0_23] : memref<4x1xf32, #tpu.memory_space<vmem>>, vector<4x1xf32>
    %42 = vector.broadcast %41 : vector<4x1xf32> to vector<4x16xf32>
    %43 = arith.addf %40, %42 : vector<4x16xf32>
    %44 = arith.negf %43 : vector<4x16xf32>
    %45 = math.exp %44 : vector<4x16xf32>
    %cst_24 = arith.constant 1.000000e+00 : f32
    %46 = vector.broadcast %cst_24 : f32 to vector<4x16xf32>
    %47 = arith.addf %46, %45 : vector<4x16xf32>
    %48 = arith.divf %46, %47 : vector<4x16xf32>
    %c0_25 = arith.constant 0 : index
    %c0_26 = arith.constant 0 : index
    %49 = vector.load %arg11[%c0_25, %c0_26] : memref<4x8xf32, #tpu.memory_space<vmem>>, vector<4x8xf32>
    %50 = vector.extract_strided_slice %37 {offsets = [0, 16], sizes = [8, 16], strides = [1, 1]} : vector<8x32xf32> to vector<8x16xf32>
    %cst_27 = arith.constant dense<0.000000e+00> : vector<4x16xf32>
    %51 = tpu.matmul %49, %50, %cst_27 {dimension_numbers = #tpu.dot_dimension_numbers<[1], [0], [0], [1], [0, 0, 1, 1], [], []>} : vector<4x8xf32>, vector<8x16xf32>, vector<4x16xf32> -> vector<4x16xf32>
    %c0_28 = arith.constant 0 : index
    %c0_29 = arith.constant 0 : index
    %52 = vector.load %arg12[%c0_28, %c0_29] : memref<4x1xf32, #tpu.memory_space<vmem>>, vector<4x1xf32>
    %53 = vector.broadcast %52 : vector<4x1xf32> to vector<4x16xf32>
    %54 = arith.addf %51, %53 : vector<4x16xf32>
    %55 = arith.negf %54 : vector<4x16xf32>
    %56 = math.exp %55 : vector<4x16xf32>
    %cst_30 = arith.constant 1.000000e+00 : f32
    %57 = vector.broadcast %cst_30 : f32 to vector<4x16xf32>
    %58 = arith.addf %57, %56 : vector<4x16xf32>
    %59 = arith.divf %57, %58 : vector<4x16xf32>
    %c0_31 = arith.constant 0 : index
    %c0_32 = arith.constant 0 : index
    %60 = vector.load %arg3[%c0_31, %c0_32] : memref<16x256xf32, #tpu.memory_space<vmem>>, vector<16x256xf32>
    %cst_33 = arith.constant dense<0.000000e+00> : vector<4x256xf32>
    %61 = tpu.matmul %48, %60, %cst_33 {dimension_numbers = #tpu.dot_dimension_numbers<[1], [0], [0], [1], [0, 0, 1, 1], [], []>} : vector<4x16xf32>, vector<16x256xf32>, vector<4x256xf32> -> vector<4x256xf32>
    %c0_34 = arith.constant 0 : index
    %c0_35 = arith.constant 0 : index
    %62 = vector.load %arg4[%c0_34, %c0_35] : memref<16x256xf32, #tpu.memory_space<vmem>>, vector<16x256xf32>
    %cst_36 = arith.constant dense<0.000000e+00> : vector<4x256xf32>
    %63 = tpu.matmul %59, %62, %cst_36 {dimension_numbers = #tpu.dot_dimension_numbers<[1], [0], [0], [1], [0, 0, 1, 1], [], []>} : vector<4x16xf32>, vector<16x256xf32>, vector<4x256xf32> -> vector<4x256xf32>
    %64 = arith.mulf %61, %63 : vector<4x256xf32>
    %65 = vector.broadcast %25 : vector<4x1xf32> to vector<4x256xf32>
    %66 = arith.addf %64, %65 : vector<4x256xf32>
    %67 = arith.mulf %1, %66 : vector<4x256xf32>
    %c0_37 = arith.constant 0 : index
    %c0_38 = arith.constant 0 : index
    %c0_39 = arith.constant 0 : index
    %68 = vector.load %arg13[%c0_37, %c0_38, %c0_39] : memref<2x4x256xf32, #tpu.memory_space<vmem>>, vector<1x4x256xf32>
    %69 = vector.shape_cast %68 : vector<1x4x256xf32> to vector<4x256xf32>
    %70 = vector.shape_cast %67 : vector<4x256xf32> to vector<1x4x256xf32>
    tpu.vector_store %arg13[%c0_37, %c0_38, %c0_39], %70 {strides = array<i32>} : memref<2x4x256xf32, #tpu.memory_space<vmem>>, vector<1x4x256xf32>,
    %c1 = arith.constant 1 : index
    %c0_40 = arith.constant 0 : index
    %c0_41 = arith.constant 0 : index
    %71 = vector.load %arg1[%c1, %c0_40, %c0_41] : memref<2x4x256xf32, #tpu.memory_space<vmem>>, vector<1x4x256xf32>
    %72 = vector.shape_cast %71 : vector<1x4x256xf32> to vector<4x256xf32>
    %c0_42 = arith.constant 0 : index
    %c0_43 = arith.constant 0 : index
    %73 = vector.load %arg2[%c0_42, %c0_43] : memref<256x33xf32, #tpu.memory_space<vmem>>, vector<256x33xf32>
    %cst_44 = arith.constant dense<0.000000e+00> : vector<4x33xf32>
    %74 = tpu.matmul %72, %73, %cst_44 {dimension_numbers = #tpu.dot_dimension_numbers<[1], [0], [0], [1], [0, 0, 1, 1], [], []>} : vector<4x256xf32>, vector<256x33xf32>, vector<4x33xf32> -> vector<4x33xf32>
    %cst_45 = arith.constant dense<0xFF800000> : vector<4xf32>
    %75 = vector.multi_reduction <maximumf>, %72, %cst_45 [1] : vector<4x256xf32> to vector<4xf32>
    %76 = vector.shape_cast %75 : vector<4xf32> to vector<4x1xf32>
    %77 = vector.extract_strided_slice %74 {offsets = [0, 32], sizes = [4, 1], strides = [1, 1]} : vector<4x33xf32> to vector<4x1xf32>
    %78 = tpu.concatenate %77, %76 in 1 : vector<4x1xf32>, vector<4x1xf32> -> vector<4x2xf32>
    %c0_46 = arith.constant 0 : index
    %c0_47 = arith.constant 0 : index
    %79 = vector.load %arg5[%c0_46, %c0_47] : memref<8x4xf32, #tpu.memory_space<vmem>>, vector<8x4xf32>
    %cst_48 = arith.constant dense<0.000000e+00> : vector<8x2xf32>
    %80 = tpu.matmul %79, %78, %cst_48 {dimension_numbers = #tpu.dot_dimension_numbers<[1], [0], [0], [1], [0, 0, 1, 1], [], []>} : vector<8x4xf32>, vector<4x2xf32>, vector<8x2xf32> -> vector<8x2xf32>
    %81 = arith.negf %80 : vector<8x2xf32>
    %82 = math.exp %81 : vector<8x2xf32>
    %cst_49 = arith.constant 1.000000e+00 : f32
    %83 = vector.broadcast %cst_49 : f32 to vector<8x2xf32>
    %84 = arith.addf %83, %82 : vector<8x2xf32>
    %85 = arith.divf %83, %84 : vector<8x2xf32>
    %86 = arith.mulf %80, %85 : vector<8x2xf32>
    %c0_50 = arith.constant 0 : index
    %c0_51 = arith.constant 0 : index
    %87 = vector.load %arg6[%c0_50, %c0_51] : memref<4x8xf32, #tpu.memory_space<vmem>>, vector<4x8xf32>
    %88 = vector.extract_strided_slice %86 {offsets = [0, 0], sizes = [8, 1], strides = [1, 1]} : vector<8x2xf32> to vector<8x1xf32>
    %89 = vector.extract_strided_slice %86 {offsets = [0, 1], sizes = [8, 1], strides = [1, 1]} : vector<8x2xf32> to vector<8x1xf32>
    %90 = arith.addf %88, %89 : vector<8x1xf32>
    %cst_52 = arith.constant dense<0.000000e+00> : vector<4x1xf32>
    %91 = tpu.matmul %87, %90, %cst_52 {dimension_numbers = #tpu.dot_dimension_numbers<[1], [0], [0], [1], [0, 0, 1, 1], [], []>} : vector<4x8xf32>, vector<8x1xf32>, vector<4x1xf32> -> vector<4x1xf32>
    %92 = arith.negf %91 : vector<4x1xf32>
    %93 = math.exp %92 : vector<4x1xf32>
    %cst_53 = arith.constant 1.000000e+00 : f32
    %94 = vector.broadcast %cst_53 : f32 to vector<4x1xf32>
    %95 = arith.addf %94, %93 : vector<4x1xf32>
    %96 = arith.divf %94, %95 : vector<4x1xf32>
    %c0_54 = arith.constant 0 : index
    %c0_55 = arith.constant 0 : index
    %97 = vector.load %arg7[%c0_54, %c0_55] : memref<8x4xf32, #tpu.memory_space<vmem>>, vector<8x4xf32>
    %98 = vector.extract_strided_slice %74 {offsets = [0, 0], sizes = [4, 32], strides = [1, 1]} : vector<4x33xf32> to vector<4x32xf32>
    %cst_56 = arith.constant dense<0.000000e+00> : vector<8x32xf32>
    %99 = tpu.matmul %97, %98, %cst_56 {dimension_numbers = #tpu.dot_dimension_numbers<[1], [0], [0], [1], [0, 0, 1, 1], [], []>} : vector<8x4xf32>, vector<4x32xf32>, vector<8x32xf32> -> vector<8x32xf32>
    %c0_57 = arith.constant 0 : index
    %c0_58 = arith.constant 0 : index
    %100 = vector.load %arg8[%c0_57, %c0_58] : memref<8x1xf32, #tpu.memory_space<vmem>>, vector<8x1xf32>
    %101 = vector.broadcast %100 : vector<8x1xf32> to vector<8x32xf32>
    %102 = arith.addf %99, %101 : vector<8x32xf32>
    %103 = arith.negf %102 : vector<8x32xf32>
    %104 = math.exp %103 : vector<8x32xf32>
    %cst_59 = arith.constant 1.000000e+00 : f32
    %105 = vector.broadcast %cst_59 : f32 to vector<8x32xf32>
    %106 = arith.addf %105, %104 : vector<8x32xf32>
    %107 = arith.divf %105, %106 : vector<8x32xf32>
    %108 = arith.mulf %102, %107 : vector<8x32xf32>
    %c0_60 = arith.constant 0 : index
    %c0_61 = arith.constant 0 : index
    %109 = vector.load %arg9[%c0_60, %c0_61] : memref<4x8xf32, #tpu.memory_space<vmem>>, vector<4x8xf32>
    %110 = vector.extract_strided_slice %108 {offsets = [0, 0], sizes = [8, 16], strides = [1, 1]} : vector<8x32xf32> to vector<8x16xf32>
    %cst_62 = arith.constant dense<0.000000e+00> : vector<4x16xf32>
    %111 = tpu.matmul %109, %110, %cst_62 {dimension_numbers = #tpu.dot_dimension_numbers<[1], [0], [0], [1], [0, 0, 1, 1], [], []>} : vector<4x8xf32>, vector<8x16xf32>, vector<4x16xf32> -> vector<4x16xf32>
    %c0_63 = arith.constant 0 : index
    %c0_64 = arith.constant 0 : index
    %112 = vector.load %arg10[%c0_63, %c0_64] : memref<4x1xf32, #tpu.memory_space<vmem>>, vector<4x1xf32>
    %113 = vector.broadcast %112 : vector<4x1xf32> to vector<4x16xf32>
    %114 = arith.addf %111, %113 : vector<4x16xf32>
    %115 = arith.negf %114 : vector<4x16xf32>
    %116 = math.exp %115 : vector<4x16xf32>
    %cst_65 = arith.constant 1.000000e+00 : f32
    %117 = vector.broadcast %cst_65 : f32 to vector<4x16xf32>
    %118 = arith.addf %117, %116 : vector<4x16xf32>
    %119 = arith.divf %117, %118 : vector<4x16xf32>
    %c0_66 = arith.constant 0 : index
    %c0_67 = arith.constant 0 : index
    %120 = vector.load %arg11[%c0_66, %c0_67] : memref<4x8xf32, #tpu.memory_space<vmem>>, vector<4x8xf32>
    %121 = vector.extract_strided_slice %108 {offsets = [0, 16], sizes = [8, 16], strides = [1, 1]} : vector<8x32xf32> to vector<8x16xf32>
    %cst_68 = arith.constant dense<0.000000e+00> : vector<4x16xf32>
    %122 = tpu.matmul %120, %121, %cst_68 {dimension_numbers = #tpu.dot_dimension_numbers<[1], [0], [0], [1], [0, 0, 1, 1], [], []>} : vector<4x8xf32>, vector<8x16xf32>, vector<4x16xf32> -> vector<4x16xf32>
    %c0_69 = arith.constant 0 : index
    %c0_70 = arith.constant 0 : index
    %123 = vector.load %arg12[%c0_69, %c0_70] : memref<4x1xf32, #tpu.memory_space<vmem>>, vector<4x1xf32>
    %124 = vector.broadcast %123 : vector<4x1xf32> to vector<4x16xf32>
    %125 = arith.addf %122, %124 : vector<4x16xf32>
    %126 = arith.negf %125 : vector<4x16xf32>
    %127 = math.exp %126 : vector<4x16xf32>
    %cst_71 = arith.constant 1.000000e+00 : f32
    %128 = vector.broadcast %cst_71 : f32 to vector<4x16xf32>
    %129 = arith.addf %128, %127 : vector<4x16xf32>
    %130 = arith.divf %128, %129 : vector<4x16xf32>
    %c0_72 = arith.constant 0 : index
    %c0_73 = arith.constant 0 : index
    %131 = vector.load %arg3[%c0_72, %c0_73] : memref<16x256xf32, #tpu.memory_space<vmem>>, vector<16x256xf32>
    %cst_74 = arith.constant dense<0.000000e+00> : vector<4x256xf32>
    %132 = tpu.matmul %119, %131, %cst_74 {dimension_numbers = #tpu.dot_dimension_numbers<[1], [0], [0], [1], [0, 0, 1, 1], [], []>} : vector<4x16xf32>, vector<16x256xf32>, vector<4x256xf32> -> vector<4x256xf32>
    %c0_75 = arith.constant 0 : index
    %c0_76 = arith.constant 0 : index
    %133 = vector.load %arg4[%c0_75, %c0_76] : memref<16x256xf32, #tpu.memory_space<vmem>>, vector<16x256xf32>
    %cst_77 = arith.constant dense<0.000000e+00> : vector<4x256xf32>
    %134 = tpu.matmul %130, %133, %cst_77 {dimension_numbers = #tpu.dot_dimension_numbers<[1], [0], [0], [1], [0, 0, 1, 1], [], []>} : vector<4x16xf32>, vector<16x256xf32>, vector<4x256xf32> -> vector<4x256xf32>
    %135 = arith.mulf %132, %134 : vector<4x256xf32>
    %136 = vector.broadcast %96 : vector<4x1xf32> to vector<4x256xf32>
    %137 = arith.addf %135, %136 : vector<4x256xf32>
    %138 = arith.mulf %72, %137 : vector<4x256xf32>
    %c1_78 = arith.constant 1 : index
    %c0_79 = arith.constant 0 : index
    %c0_80 = arith.constant 0 : index
    %139 = vector.load %arg13[%c1_78, %c0_79, %c0_80] : memref<2x4x256xf32, #tpu.memory_space<vmem>>, vector<1x4x256xf32>
    %140 = vector.shape_cast %139 : vector<1x4x256xf32> to vector<4x256xf32>
    %141 = vector.shape_cast %138 : vector<4x256xf32> to vector<1x4x256xf32>
    tpu.vector_store %arg13[%c1_78, %c0_79, %c0_80], %141 {strides = array<i32>} : memref<2x4x256xf32, #tpu.memory_space<vmem>>, vector<1x4x256xf32>,
    return
  }
  func.func @transform_0(%arg0: i32) -> (i32, i32, i32) {
    %c0_i32 = arith.constant 0 : i32
    %c0_i32_0 = arith.constant 0 : i32
    %c0_i32_1 = arith.constant 0 : i32
    return %arg0, %c0_i32, %c0_i32_0 : i32, i32, i32
  }
  func.func @transform_1(%arg0: i32) -> (i32, i32) {
    %c0_i32 = arith.constant 0 : i32
    %c0_i32_0 = arith.constant 0 : i32
    %c0_i32_1 = arith.constant 0 : i32
    return %c0_i32, %c0_i32_0 : i32, i32
  }
  func.func @transform_2(%arg0: i32) -> (i32, i32) {
    %c0_i32 = arith.constant 0 : i32
    %c0_i32_0 = arith.constant 0 : i32
    %c0_i32_1 = arith.constant 0 : i32
    return %c0_i32, %c0_i32_0 : i32, i32
  }
  func.func @transform_3(%arg0: i32) -> (i32, i32) {
    %c0_i32 = arith.constant 0 : i32
    %c0_i32_0 = arith.constant 0 : i32
    %c0_i32_1 = arith.constant 0 : i32
    return %c0_i32, %c0_i32_0 : i32, i32
  }
  func.func @transform_4(%arg0: i32) -> (i32, i32) {
    %c0_i32 = arith.constant 0 : i32
    %c0_i32_0 = arith.constant 0 : i32
    %c0_i32_1 = arith.constant 0 : i32
    return %c0_i32, %c0_i32_0 : i32, i32
  }
  func.func @transform_5(%arg0: i32) -> (i32, i32) {
    %c0_i32 = arith.constant 0 : i32
    %c0_i32_0 = arith.constant 0 : i32
    %c0_i32_1 = arith.constant 0 : i32
    return %c0_i32, %c0_i32_0 : i32, i32
  }
  func.func @transform_6(%arg0: i32) -> (i32, i32) {
    %c0_i32 = arith.constant 0 : i32
    %c0_i32_0 = arith.constant 0 : i32
    %c0_i32_1 = arith.constant 0 : i32
    return %c0_i32, %c0_i32_0 : i32, i32
  }
  func.func @transform_7(%arg0: i32) -> (i32, i32) {
    %c0_i32 = arith.constant 0 : i32
    %c0_i32_0 = arith.constant 0 : i32
    %c0_i32_1 = arith.constant 0 : i32
    return %c0_i32, %c0_i32_0 : i32, i32
  }
  func.func @transform_8(%arg0: i32) -> (i32, i32) {
    %c0_i32 = arith.constant 0 : i32
    %c0_i32_0 = arith.constant 0 : i32
    %c0_i32_1 = arith.constant 0 : i32
    return %c0_i32, %c0_i32_0 : i32, i32
  }
  func.func @transform_9(%arg0: i32) -> (i32, i32) {
    %c0_i32 = arith.constant 0 : i32
    %c0_i32_0 = arith.constant 0 : i32
    %c0_i32_1 = arith.constant 0 : i32
    return %c0_i32, %c0_i32_0 : i32, i32
  }
  func.func @transform_10(%arg0: i32) -> (i32, i32) {
    %c0_i32 = arith.constant 0 : i32
    %c0_i32_0 = arith.constant 0 : i32
    %c0_i32_1 = arith.constant 0 : i32
    return %c0_i32, %c0_i32_0 : i32, i32
  }
  func.func @transform_11(%arg0: i32) -> (i32, i32) {
    %c0_i32 = arith.constant 0 : i32
    %c0_i32_0 = arith.constant 0 : i32
    %c0_i32_1 = arith.constant 0 : i32
    return %c0_i32, %c0_i32_0 : i32, i32
  }
  func.func @transform_12(%arg0: i32) -> (i32, i32, i32) {
    %c0_i32 = arith.constant 0 : i32
    %c0_i32_0 = arith.constant 0 : i32
    %c0_i32_1 = arith.constant 0 : i32
    return %arg0, %c0_i32, %c0_i32_0 : i32, i32, i32
  }
}

</mosaic_0001>

<llo_original>
// kernel: tpu_custom_call.1
$region0: #{tpu_custom_call.1}
  #allocation0 [shape = 'u32[]', space=smem, size = 0x4, offset = 0x4, fixed_abs, tag = 'smem constant byte address 0x4 - core index']
  #allocation1 [shape = 'u32[144,128]{1,0:T(1,128)}', space=vmem, size = 0x12000, scoped, tag = 'internal scratch']
  %s0 = inlined_call_operand.hbm [shape: f32[2,4,256], index: 0, kind: input, shape index: {}]
  %s1 = inlined_call_operand.hbm [shape: f32[256,33], index: 1, kind: input, shape index: {}]
  %s2 = inlined_call_operand.hbm [shape: f32[16,256], index: 2, kind: input, shape index: {}]
  %s3 = inlined_call_operand.hbm [shape: f32[16,256], index: 3, kind: input, shape index: {}]
  %s4 = inlined_call_operand.hbm [shape: f32[8,4], index: 4, kind: input, shape index: {}]
  %s5 = inlined_call_operand.hbm [shape: f32[4,8], index: 5, kind: input, shape index: {}]
  %s6 = inlined_call_operand.hbm [shape: f32[8,4], index: 6, kind: input, shape index: {}]
  %s7 = inlined_call_operand.hbm [shape: f32[8,1], index: 7, kind: input, shape index: {}]
  %s8 = inlined_call_operand.hbm [shape: f32[4,8], index: 8, kind: input, shape index: {}]
  %s9 = inlined_call_operand.hbm [shape: f32[4,1], index: 9, kind: input, shape index: {}]
  %s10 = inlined_call_operand.hbm [shape: f32[4,8], index: 10, kind: input, shape index: {}]
  %s11 = inlined_call_operand.hbm [shape: f32[4,1], index: 11, kind: input, shape index: {}]
  %s12 = inlined_call_operand.hbm [shape: f32[2,4,256], index: 12, kind: output, shape index: {}]
  %s13 = sld [smem:[#allocation0]]
  $region106: #{tpu_custom_call.1} parent=0
    _
  %s15 = ssub.s32 1, %s13
  %s16 = scalar_select 0, %s15, %s13
  $region1: #{tpu_custom_call.1} parent=0
    #allocation2 [shape = 'u8[8192]{0}', space=vmem, size = 0x2000, scoped, tag = 'input window, operand 0, single buffered']
    #allocation3 [shape = 's32[1]{0}', space=sflag, size = 0x4, scoped, tag = 'scoped memory for tpu_custom_call.1']
    #allocation4 [shape = 's32[1]{0}', space=sflag, size = 0x4, scoped, tag = 'scoped memory for tpu_custom_call.1']
    #allocation5 [shape = 'u8[131072]{0}', space=vmem, size = 0x20000, scoped, tag = 'input window, operand 1, single buffered']
    #allocation6 [shape = 's32[1]{0}', space=sflag, size = 0x4, scoped, tag = 'scoped memory for tpu_custom_call.1']
    #allocation7 [shape = 'u8[16384]{0}', space=vmem, size = 0x4000, scoped, tag = 'input window, operand 2, single buffered']
    #allocation8 [shape = 'u8[16384]{0}', space=vmem, size = 0x4000, scoped, tag = 'input window, operand 3, single buffered']
    #allocation9 [shape = 's32[1]{0}', space=sflag, size = 0x4, scoped, tag = 'scoped memory for tpu_custom_call.1']
    #allocation10 [shape = 'u8[4096]{0}', space=vmem, size = 0x1000, scoped, tag = 'input window, operand 4, single buffered']
    #allocation11 [shape = 'u8[2048]{0}', space=vmem, size = 0x800, scoped, tag = 'input window, operand 5, single buffered']
    #allocation12 [shape = 's32[1]{0}', space=sflag, size = 0x4, scoped, tag = 'scoped memory for tpu_custom_call.1']
    #allocation13 [shape = 'u8[4096]{0}', space=vmem, size = 0x1000, scoped, tag = 'input window, operand 6, single buffered']
    #allocation14 [shape = 'u8[4096]{0}', space=vmem, size = 0x1000, scoped, tag = 'input window, operand 7, single buffered']
    #allocation15 [shape = 's32[1]{0}', space=sflag, size = 0x4, scoped, tag = 'scoped memory for tpu_custom_call.1']
    #allocation16 [shape = 'u8[2048]{0}', space=vmem, size = 0x800, scoped, tag = 'input window, operand 8, single buffered']
    #allocation17 [shape = 'u8[2048]{0}', space=vmem, size = 0x800, scoped, tag = 'input window, operand 9, single buffered']
    #allocation18 [shape = 's32[1]{0}', space=sflag, size = 0x4, scoped, tag = 'scoped memory for tpu_custom_call.1']
    #allocation19 [shape = 'u8[2048]{0}', space=vmem, size = 0x800, scoped, tag = 'input window, operand 10, single buffered']
    #allocation20 [shape = 'u8[2048]{0}', space=vmem, size = 0x800, scoped, tag = 'input window, operand 11, single buffered']
    #allocation21 [shape = 's32[1]{0}', space=sflag, size = 0x4, scoped, tag = 'scoped memory for tpu_custom_call.1']
    #allocation22 [shape = 'u8[8192]{0}', space=vmem, size = 0x2000, scoped, tag = 'output window, operand 0, single buffered']
    %17 = vsyncpa [#allocation3], 0
    %18 = vsyncpa [#allocation6], 0
    %19 = vsyncpa [#allocation9], 0
    %20 = vsyncpa [#allocation12], 0
    %21 = vsyncpa [#allocation15], 0
    %22 = vsyncpa [#allocation18], 0
    %23 = vsyncpa [#allocation21], 0
    %24 = vsyncpa [#allocation4], 0
    // Predicated region
    $region2: #{tpu_custom_call.1} parent=1 // pred_check
      _
    $region3: #{tpu_custom_call.1} parent=1 // pred_check_branch
      %26 = sbr.rel (0) target = $region5
    $region4: #{tpu_custom_call.1} parent=1 // pred_region
      %s28 = ssub.s32 256, 256
      %29 = vsyncadd [#allocation3], %s28
      %s30 = sshll.u32 [#allocation2], 4
      %s31 = int_to_ptr.vmem [resolvable:$true] %s30
      %36 = dma.hbm_to_vmem [thread:$0]  %s0, 256, %s31, [#allocation3], 128, 128, 8
    $region5: #{tpu_custom_call.1} parent=1 // pred_fallthru
      _
    // Predicated region
    $region6: #{tpu_custom_call.1} parent=1 // pred_check
      _
    $region7: #{tpu_custom_call.1} parent=1 // pred_check_branch
      %38 = sbr.rel (0) target = $region9
    $region8: #{tpu_custom_call.1} parent=1 // pred_region
      %s40 = ssub.s32 4096, 4096
      %41 = vsyncadd [#allocation6], %s40
      %s42 = sshll.u32 [#allocation5], 4
      %s43 = int_to_ptr.vmem [resolvable:$true] %s42
      %48 = dma.hbm_to_vmem [thread:$0]  %s1, 4096, %s43, [#allocation6], 128, 128, 8
    $region9: #{tpu_custom_call.1} parent=1 // pred_fallthru
      _
    // Predicated region
    $region10: #{tpu_custom_call.1} parent=1 // pred_check
      _
    $region11: #{tpu_custom_call.1} parent=1 // pred_check_branch
      %50 = sbr.rel (0) target = $region13
    $region12: #{tpu_custom_call.1} parent=1 // pred_region
      %s52 = ssub.s32 512, 512
      %53 = vsyncadd [#allocation6], %s52
      %s54 = sshll.u32 [#allocation7], 4
      %s55 = int_to_ptr.vmem [resolvable:$true] %s54
      %60 = dma.hbm_to_vmem [thread:$0]  %s2, 512, %s55, [#allocation6], 256, 256, 16
    $region13: #{tpu_custom_call.1} parent=1 // pred_fallthru
      _
    // Predicated region
    $region14: #{tpu_custom_call.1} parent=1 // pred_check
      _
    $region15: #{tpu_custom_call.1} parent=1 // pred_check_branch
      %62 = sbr.rel (0) target = $region17
    $region16: #{tpu_custom_call.1} parent=1 // pred_region
      %s64 = ssub.s32 512, 512
      %65 = vsyncadd [#allocation9], %s64
      %s66 = sshll.u32 [#allocation8], 4
      %s67 = int_to_ptr.vmem [resolvable:$true] %s66
      %72 = dma.hbm_to_vmem [thread:$0]  %s3, 512, %s67, [#allocation9], 256, 256, 16
    $region17: #{tpu_custom_call.1} parent=1 // pred_fallthru
      _
    // Predicated region
    $region18: #{tpu_custom_call.1} parent=1 // pred_check
      _
    $region19: #{tpu_custom_call.1} parent=1 // pred_check_branch
      %74 = sbr.rel (0) target = $region21
    $region20: #{tpu_custom_call.1} parent=1 // pred_region
      %s76 = ssub.s32 128, 128
      %77 = vsyncadd [#allocation9], %s76
      %s79 = sshll.u32 [#allocation10], 4
      %s80 = int_to_ptr.vmem [resolvable:$true] %s79
      %82 = dma.hbm_to_vmem [thread:$0]  %s4, 128, %s80, [#allocation9]
    $region21: #{tpu_custom_call.1} parent=1 // pred_fallthru
      _
    // Predicated region
    $region22: #{tpu_custom_call.1} parent=1 // pred_check
      _
    $region23: #{tpu_custom_call.1} parent=1 // pred_check_branch
      %84 = sbr.rel (0) target = $region25
    $region24: #{tpu_custom_call.1} parent=1 // pred_region
      %s86 = ssub.s32 64, 64
      %87 = vsyncadd [#allocation12], %s86
      %s89 = sshll.u32 [#allocation11], 4
      %s90 = int_to_ptr.vmem [resolvable:$true] %s89
      %92 = dma.hbm_to_vmem [thread:$0]  %s5, 64, %s90, [#allocation12]
    $region25: #{tpu_custom_call.1} parent=1 // pred_fallthru
      _
    // Predicated region
    $region26: #{tpu_custom_call.1} parent=1 // pred_check
      _
    $region27: #{tpu_custom_call.1} parent=1 // pred_check_branch
      %94 = sbr.rel (0) target = $region29
    $region28: #{tpu_custom_call.1} parent=1 // pred_region
      %s96 = ssub.s32 128, 128
      %97 = vsyncadd [#allocation12], %s96
      %s99 = sshll.u32 [#allocation13], 4
      %s100 = int_to_ptr.vmem [resolvable:$true] %s99
      %102 = dma.hbm_to_vmem [thread:$0]  %s6, 128, %s100, [#allocation12]
    $region29: #{tpu_custom_call.1} parent=1 // pred_fallthru
      _
    // Predicated region
    $region30: #{tpu_custom_call.1} parent=1 // pred_check
      _
    $region31: #{tpu_custom_call.1} parent=1 // pred_check_branch
      %104 = sbr.rel (0) target = $region33
    $region32: #{tpu_custom_call.1} parent=1 // pred_region
      %s106 = ssub.s32 128, 128
      %107 = vsyncadd [#allocation15], %s106
      %s109 = sshll.u32 [#allocation14], 4
      %s110 = int_to_ptr.vmem [resolvable:$true] %s109
      %112 = dma.hbm_to_vmem [thread:$0]  %s7, 128, %s110, [#allocation15]
    $region33: #{tpu_custom_call.1} parent=1 // pred_fallthru
      _
    // Predicated region
    $region34: #{tpu_custom_call.1} parent=1 // pred_check
      _
    $region35: #{tpu_custom_call.1} parent=1 // pred_check_branch
      %114 = sbr.rel (0) target = $region37
    $region36: #{tpu_custom_call.1} parent=1 // pred_region
      %s116 = ssub.s32 64, 64
      %117 = vsyncadd [#allocation15], %s116
      %s119 = sshll.u32 [#allocation16], 4
      %s120 = int_to_ptr.vmem [resolvable:$true] %s119
      %122 = dma.hbm_to_vmem [thread:$0]  %s8, 64, %s120, [#allocation15]
    $region37: #{tpu_custom_call.1} parent=1 // pred_fallthru
      _
    // Predicated region
    $region38: #{tpu_custom_call.1} parent=1 // pred_check
      _
    $region39: #{tpu_custom_call.1} parent=1 // pred_check_branch
      %124 = sbr.rel (0) target = $region41
    $region40: #{tpu_custom_call.1} parent=1 // pred_region
      %s126 = ssub.s32 64, 64
      %127 = vsyncadd [#allocation18], %s126
      %s129 = sshll.u32 [#allocation17], 4
      %s130 = int_to_ptr.vmem [resolvable:$true] %s129
      %132 = dma.hbm_to_vmem [thread:$0]  %s9, 64, %s130, [#allocation18]
    $region41: #{tpu_custom_call.1} parent=1 // pred_fallthru
      _
    // Predicated region
    $region42: #{tpu_custom_call.1} parent=1 // pred_check
      _
    $region43: #{tpu_custom_call.1} parent=1 // pred_check_branch
      %134 = sbr.rel (0) target = $region45
    $region44: #{tpu_custom_call.1} parent=1 // pred_region
      %s136 = ssub.s32 64, 64
      %137 = vsyncadd [#allocation18], %s136
      %s139 = sshll.u32 [#allocation19], 4
      %s140 = int_to_ptr.vmem [resolvable:$true] %s139
      %142 = dma.hbm_to_vmem [thread:$0]  %s10, 64, %s140, [#allocation18]
    $region45: #{tpu_custom_call.1} parent=1 // pred_fallthru
      _
    // Predicated region
    $region46: #{tpu_custom_call.1} parent=1 // pred_check
      _
    $region47: #{tpu_custom_call.1} parent=1 // pred_check_branch
      %144 = sbr.rel (0) target = $region49
    $region48: #{tpu_custom_call.1} parent=1 // pred_region
      %s146 = ssub.s32 64, 64
      %147 = vsyncadd [#allocation21], %s146
      %s149 = sshll.u32 [#allocation20], 4
      %s150 = int_to_ptr.vmem [resolvable:$true] %s149
      %152 = dma.hbm_to_vmem [thread:$0]  %s11, 64, %s150, [#allocation21]
    $region49: #{tpu_custom_call.1} parent=1 // pred_fallthru
      _
    // Predicated region
    $region50: #{tpu_custom_call.1} parent=1 // pred_check
      _
    $region51: #{tpu_custom_call.1} parent=1 // pred_check_branch
      %154 = sbr.rel (0) target = $region53
    $region52: #{tpu_custom_call.1} parent=1 // pred_region
      %155 = dma.done [#allocation3], 256
    $region53: #{tpu_custom_call.1} parent=1 // pred_fallthru
      _
    // Predicated region
    $region54: #{tpu_custom_call.1} parent=1 // pred_check
      _
    $region55: #{tpu_custom_call.1} parent=1 // pred_check_branch
      %157 = sbr.rel (0) target = $region57
    $region56: #{tpu_custom_call.1} parent=1 // pred_region
      %158 = dma.done [#allocation6], 4096
    $region57: #{tpu_custom_call.1} parent=1 // pred_fallthru
      _
    // Predicated region
    $region58: #{tpu_custom_call.1} parent=1 // pred_check
      _
    $region59: #{tpu_custom_call.1} parent=1 // pred_check_branch
      %160 = sbr.rel (0) target = $region61
    $region60: #{tpu_custom_call.1} parent=1 // pred_region
      %161 = dma.done [#allocation6], 512
    $region61: #{tpu_custom_call.1} parent=1 // pred_fallthru
      _
    // Predicated region
    $region62: #{tpu_custom_call.1} parent=1 // pred_check
      _
    $region63: #{tpu_custom_call.1} parent=1 // pred_check_branch
      %163 = sbr.rel (0) target = $region65
    $region64: #{tpu_custom_call.1} parent=1 // pred_region
      %164 = dma.done [#allocation9], 512
    $region65: #{tpu_custom_call.1} parent=1 // pred_fallthru
      _
    // Predicated region
    $region66: #{tpu_custom_call.1} parent=1 // pred_check
      _
    $region67: #{tpu_custom_call.1} parent=1 // pred_check_branch
      %166 = sbr.rel (0) target = $region69
    $region68: #{tpu_custom_call.1} parent=1 // pred_region
      %167 = dma.done [#allocation9], 128
    $region69: #{tpu_custom_call.1} parent=1 // pred_fallthru
      _
    // Predicated region
    $region70: #{tpu_custom_call.1} parent=1 // pred_check
      _
    $region71: #{tpu_custom_call.1} parent=1 // pred_check_branch
      %169 = sbr.rel (0) target = $region73
    $region72: #{tpu_custom_call.1} parent=1 // pred_region
      %170 = dma.done [#allocation12], 64
    $region73: #{tpu_custom_call.1} parent=1 // pred_fallthru
      _
    // Predicated region
    $region74: #{tpu_custom_call.1} parent=1 // pred_check
      _
    $region75: #{tpu_custom_call.1} parent=1 // pred_check_branch
      %172 = sbr.rel (0) target = $region77
    $region76: #{tpu_custom_call.1} parent=1 // pred_region
      %173 = dma.done [#allocation12], 128
    $region77: #{tpu_custom_call.1} parent=1 // pred_fallthru
      _
    // Predicated region
    $region78: #{tpu_custom_call.1} parent=1 // pred_check
      _
    $region79: #{tpu_custom_call.1} parent=1 // pred_check_branch
      %175 = sbr.rel (0) target = $region81
    $region80: #{tpu_custom_call.1} parent=1 // pred_region
      %176 = dma.done [#allocation15], 128
    $region81: #{tpu_custom_call.1} parent=1 // pred_fallthru
      _
    // Predicated region
    $region82: #{tpu_custom_call.1} parent=1 // pred_check
      _
    $region83: #{tpu_custom_call.1} parent=1 // pred_check_branch
      %178 = sbr.rel (0) target = $region85
    $region84: #{tpu_custom_call.1} parent=1 // pred_region
      %179 = dma.done [#allocation15], 64
    $region85: #{tpu_custom_call.1} parent=1 // pred_fallthru
      _
    // Predicated region
    $region86: #{tpu_custom_call.1} parent=1 // pred_check
      _
    $region87: #{tpu_custom_call.1} parent=1 // pred_check_branch
      %181 = sbr.rel (0) target = $region89
    $region88: #{tpu_custom_call.1} parent=1 // pred_region
      %182 = dma.done [#allocation18], 64
    $region89: #{tpu_custom_call.1} parent=1 // pred_fallthru
      _
    // Predicated region
    $region90: #{tpu_custom_call.1} parent=1 // pred_check
      _
    $region91: #{tpu_custom_call.1} parent=1 // pred_check_branch
      %184 = sbr.rel (0) target = $region93
    $region92: #{tpu_custom_call.1} parent=1 // pred_region
      %185 = dma.done [#allocation18], 64
    $region93: #{tpu_custom_call.1} parent=1 // pred_fallthru
      _
    // Predicated region
    $region94: #{tpu_custom_call.1} parent=1 // pred_check
      _
    $region95: #{tpu_custom_call.1} parent=1 // pred_check_branch
      %187 = sbr.rel (0) target = $region97
    $region96: #{tpu_custom_call.1} parent=1 // pred_region
      %188 = dma.done [#allocation21], 64
    $region97: #{tpu_custom_call.1} parent=1 // pred_fallthru
      _
    %v189 = vld [vmem:[#allocation2] sm:$0xff]
    %v190 = vld [vmem:[#allocation5] sm:$0xff]
    %v191 = vld [vmem:[#allocation5 + $0x8] sm:$0xff]
    %v192 = vld [vmem:[#allocation5 + $0x10] sm:$0xff]
    %v193 = vld [vmem:[#allocation5 + $0x18] sm:$0xff]
    %v194 = vld [vmem:[#allocation5 + $0x20] sm:$0xff]
    %v195 = vld [vmem:[#allocation5 + $0x28] sm:$0xff]
    %v196 = vld [vmem:[#allocation5 + $0x30] sm:$0xff]
    %v197 = vld [vmem:[#allocation5 + $0x38] sm:$0xff]
    %v198 = vld [vmem:[#allocation5 + $0x40] sm:$0xff]
    %v199 = vld [vmem:[#allocation5 + $0x48] sm:$0xff]
    %v200 = vld [vmem:[#allocation5 + $0x50] sm:$0xff]
    %v201 = vld [vmem:[#allocation5 + $0x58] sm:$0xff]
    %v202 = vld [vmem:[#allocation5 + $0x60] sm:$0xff]
    %v203 = vld [vmem:[#allocation5 + $0x68] sm:$0xff]
    %v204 = vld [vmem:[#allocation5 + $0x70] sm:$0xff]
    %v205 = vld [vmem:[#allocation5 + $0x78] sm:$0xff]
    %v206 = vld [vmem:[#allocation5 + $0x80] sm:$0xff]
    %v207 = vld [vmem:[#allocation5 + $0x88] sm:$0xff]
    %v208 = vld [vmem:[#allocation5 + $0x90] sm:$0xff]
    %v209 = vld [vmem:[#allocation5 + $0x98] sm:$0xff]
    %v210 = vld [vmem:[#allocation5 + $0xa0] sm:$0xff]
    %v211 = vld [vmem:[#allocation5 + $0xa8] sm:$0xff]
    %v212 = vld [vmem:[#allocation5 + $0xb0] sm:$0xff]
    %v213 = vld [vmem:[#allocation5 + $0xb8] sm:$0xff]
    %v214 = vld [vmem:[#allocation5 + $0xc0] sm:$0xff]
    %v215 = vld [vmem:[#allocation5 + $0xc8] sm:$0xff]
    %v216 = vld [vmem:[#allocation5 + $0xd0] sm:$0xff]
    %v217 = vld [vmem:[#allocation5 + $0xd8] sm:$0xff]
    %v218 = vld [vmem:[#allocation5 + $0xe0] sm:$0xff]
    %v219 = vld [vmem:[#allocation5 + $0xe8] sm:$0xff]
    %v220 = vld [vmem:[#allocation5 + $0xf0] sm:$0xff]
    %v221 = vld [vmem:[#allocation5 + $0xf8] sm:$0xff]
    %v223 = vcombine.high %v189, %v189
    %225 = vmatprep.subr.mxu0 0.0
    %226 = vmatpush1.msra.mxu0 %v190
    %227 = vmatprep.subr.mxu0 0.0
    %228 = vmatpush1.msra.mxu0 %v191
    %229 = vmatprep.subr.mxu0 0.0
    %230 = vmatpush1.msra.mxu0 %v192
    %231 = vmatprep.subr.mxu0 0.0
    %232 = vmatpush1.msra.mxu0 %v193
    %233 = vmatprep.subr.mxu0 0.0
    %234 = vmatpush1.msra.mxu0 %v194
    %235 = vmatprep.subr.mxu0 0.0
    %236 = vmatpush1.msra.mxu0 %v195
    %237 = vmatprep.subr.mxu0 0.0
    %238 = vmatpush1.msra.mxu0 %v196
    %239 = vmatprep.subr.mxu0 0.0
    %240 = vmatpush1.msra.mxu0 %v197
    %241 = vmatprep.subr.mxu0 0.0
    %242 = vmatpush1.msra.mxu0 %v198
    %243 = vmatprep.subr.mxu0 0.0
    %244 = vmatpush1.msra.mxu0 %v199
    %245 = vmatprep.subr.mxu0 0.0
    %246 = vmatpush1.msra.mxu0 %v200
    %247 = vmatprep.subr.mxu0 0.0
    %248 = vmatpush1.msra.mxu0 %v201
    %249 = vmatprep.subr.mxu0 0.0
    %250 = vmatpush1.msra.mxu0 %v202
    %251 = vmatprep.subr.mxu0 0.0
    %252 = vmatpush1.msra.mxu0 %v203
    %253 = vmatprep.subr.mxu0 0.0
    %254 = vmatpush1.msra.mxu0 %v204
    %255 = vmatprep.subr.mxu0 0.0
    %256 = vmatpush1.msra.mxu0 %v205
    %257 = vmatprep.subr.mxu0 0.0
    %258 = vmatpush1.msra.mxu0 %v206
    %259 = vmatprep.subr.mxu0 0.0
    %260 = vmatpush1.msra.mxu0 %v207
    %261 = vmatprep.subr.mxu0 0.0
    %262 = vmatpush1.msra.mxu0 %v208
    %263 = vmatprep.subr.mxu0 0.0
    %264 = vmatpush1.msra.mxu0 %v209
    %265 = vmatprep.subr.mxu0 0.0
    %266 = vmatpush1.msra.mxu0 %v210
    %267 = vmatprep.subr.mxu0 0.0
    %268 = vmatpush1.msra.mxu0 %v211
    %269 = vmatprep.subr.mxu0 0.0
    %270 = vmatpush1.msra.mxu0 %v212
    %271 = vmatprep.subr.mxu0 0.0
    %272 = vmatpush1.msra.mxu0 %v213
    %273 = vmatprep.subr.mxu0 0.0
    %274 = vmatpush1.msra.mxu0 %v214
    %275 = vmatprep.subr.mxu0 0.0
    %276 = vmatpush1.msra.mxu0 %v215
    %277 = vmatprep.subr.mxu0 0.0
    %278 = vmatpush1.msra.mxu0 %v216
    %279 = vmatprep.subr.mxu0 0.0
    %280 = vmatpush1.msra.mxu0 %v217
    %281 = vmatprep.subr.mxu0 0.0
    %282 = vmatpush1.msra.mxu0 %v218
    %283 = vmatprep.subr.mxu0 0.0
    %284 = vmatpush1.msra.mxu0 %v219
    %285 = vmatprep.subr.mxu0 0.0
    %286 = vmatpush1.msra.mxu0 %v220
    %287 = vmatprep.subr.mxu0 0.0
    %288 = vmatpush1.msra.mxu0 %v221
    %289 = vmatprep.mubr.f32.mxu0 %v223
    %290 = vmatmul.mubr.f32.gmra.mrb[0].mxu0 %v189
    %v291 = vpop.f32.mrb[0].mxu0
    %v292 = vadd.f32 0.0, %v291
    %v293 = vpop.f32.mrb[0].mxu0
    %294 = vdwg.mxu0
    %vm295 = vcmask 1043456
    %v296 = vsel %vm295, %v189, -inf
    %v297 = vsel %vm295, %v223, -inf
    %v298 = vmax.f32 %v296, %v297
    %299 = vmax.xlane.f32.xlu0 %v298
    %v300 = vpop.xlane.xlu0 %299
    %302 = vrot.lane.b32.xlu0 %v292, 96
    %v303 = vpop.permute.xlu0 %302
    %vm305 = vcmask 7168
    %v306 = vsel %vm305, %v303, %v300
    %v307 = vld [vmem:[#allocation10] sm:$0xff]
    %vm308 = vcmask 31744
    %v310 = vsel %vm308, %v307, 0
    %v313 = vsel %vm295, %v306, 0
    %315 = vmatprep.subr.mxu0 0.0
    %316 = vmatpush1.msra.mxu0 %v313
    %317 = vmatprep.subr.mxu0 0.0
    %318 = vmatpush1.msra.mxu0 0.0
    %319 = vmatprep.subr.mxu0 0.0
    %320 = vmatpush1.msra.mxu0 0.0
    %321 = vmatprep.subr.mxu0 0.0
    %322 = vmatpush1.msra.mxu0 0.0
    %323 = vmatprep.subr.mxu0 0.0
    %324 = vmatpush1.msra.mxu0 0.0
    %325 = vmatprep.subr.mxu0 0.0
    %326 = vmatpush1.msra.mxu0 0.0
    %327 = vmatprep.subr.mxu0 0.0
    %328 = vmatpush1.msra.mxu0 0.0
    %329 = vmatprep.subr.mxu0 0.0
    %330 = vmatpush1.msra.mxu0 0.0
    %331 = vmatprep.subr.mxu0 0.0
    %332 = vmatpush1.msra.mxu0 0.0
    %333 = vmatprep.subr.mxu0 0.0
    %334 = vmatpush1.msra.mxu0 0.0
    %335 = vmatprep.subr.mxu0 0.0
    %336 = vmatpush1.msra.mxu0 0.0
    %337 = vmatprep.subr.mxu0 0.0
    %338 = vmatpush1.msra.mxu0 0.0
    %339 = vmatprep.subr.mxu0 0.0
    %340 = vmatpush1.msra.mxu0 0.0
    %341 = vmatprep.subr.mxu0 0.0
    %342 = vmatpush1.msra.mxu0 0.0
    %343 = vmatprep.subr.mxu0 0.0
    %344 = vmatpush1.msra.mxu0 0.0
    %345 = vmatprep.subr.mxu0 0.0
    %346 = vmatpush1.msra.mxu0 0.0
    %347 = vmatprep.subr.mxu0 0.0
    %348 = vmatpush1.msra.mxu0 0.0
    %349 = vmatprep.subr.mxu0 0.0
    %350 = vmatpush1.msra.mxu0 0.0
    %351 = vmatprep.subr.mxu0 0.0
    %352 = vmatpush1.msra.mxu0 0.0
    %353 = vmatprep.subr.mxu0 0.0
    %354 = vmatpush1.msra.mxu0 0.0
    %355 = vmatprep.subr.mxu0 0.0
    %356 = vmatpush1.msra.mxu0 0.0
    %357 = vmatprep.subr.mxu0 0.0
    %358 = vmatpush1.msra.mxu0 0.0
    %359 = vmatprep.subr.mxu0 0.0
    %360 = vmatpush1.msra.mxu0 0.0
    %361 = vmatprep.subr.mxu0 0.0
    %362 = vmatpush1.msra.mxu0 0.0
    %363 = vmatprep.subr.mxu0 0.0
    %364 = vmatpush1.msra.mxu0 0.0
    %365 = vmatprep.subr.mxu0 0.0
    %366 = vmatpush1.msra.mxu0 0.0
    %367 = vmatprep.subr.mxu0 0.0
    %368 = vmatpush1.msra.mxu0 0.0
    %369 = vmatprep.subr.mxu0 0.0
    %370 = vmatpush1.msra.mxu0 0.0
    %371 = vmatprep.subr.mxu0 0.0
    %372 = vmatpush1.msra.mxu0 0.0
    %373 = vmatprep.subr.mxu0 0.0
    %374 = vmatpush1.msra.mxu0 0.0
    %375 = vmatprep.subr.mxu0 0.0
    %376 = vmatpush1.msra.mxu0 0.0
    %377 = vmatprep.subr.mxu0 0.0
    %378 = vmatpush1.msra.mxu0 0.0
    %379 = vmatprep.mubr.f32.mxu0 0.0
    %380 = vmatmul.mubr.f32.gmra.mrb[0].mxu0 %v310
    %v381 = vpop.f32.mrb[0].mxu0
    %v382 = vadd.f32 0.0, %v381
    %v383 = vpop.f32.mrb[0].mxu0
    %384 = vdwg.mxu0
    %v385 = vxor.u32 %v382, 2147483648
    %v386 = vmul.f32 %v385, 1.442695
    %v387 = vpow.pop %v386
    %v388 = vadd.f32 %v387, 1.0
    %v389 = vrcp.pop %v388
    %v390 = vmul.f32 1.0, %v389
    %v391 = vmul.f32 %v382, %v390
    %v392 = vld [vmem:[#allocation11] sm:$0xf]
    %394 = vrot.lane.b32.xlu0 %v391, 127
    %v395 = vpop.permute.xlu0 %394
    %v397 = vadd.f32 %v391, %v395
    %vm398 = vcmask 64512
    %v400 = vsel %vm398, %v392, 0
    %402 = vmatprep.subr.mxu0 0.0
    %403 = vmatpush1.msra.mxu0 %v397
    %404 = vmatprep.subr.mxu0 0.0
    %405 = vmatpush1.msra.mxu0 0.0
    %406 = vmatprep.subr.mxu0 0.0
    %407 = vmatpush1.msra.mxu0 0.0
    %408 = vmatprep.subr.mxu0 0.0
    %409 = vmatpush1.msra.mxu0 0.0
    %410 = vmatprep.subr.mxu0 0.0
    %411 = vmatpush1.msra.mxu0 0.0
    %412 = vmatprep.subr.mxu0 0.0
    %413 = vmatpush1.msra.mxu0 0.0
    %414 = vmatprep.subr.mxu0 0.0
    %415 = vmatpush1.msra.mxu0 0.0
    %416 = vmatprep.subr.mxu0 0.0
    %417 = vmatpush1.msra.mxu0 0.0
    %418 = vmatprep.subr.mxu0 0.0
    %419 = vmatpush1.msra.mxu0 0.0
    %420 = vmatprep.subr.mxu0 0.0
    %421 = vmatpush1.msra.mxu0 0.0
    %422 = vmatprep.subr.mxu0 0.0
    %423 = vmatpush1.msra.mxu0 0.0
    %424 = vmatprep.subr.mxu0 0.0
    %425 = vmatpush1.msra.mxu0 0.0
    %426 = vmatprep.subr.mxu0 0.0
    %427 = vmatpush1.msra.mxu0 0.0
    %428 = vmatprep.subr.mxu0 0.0
    %429 = vmatpush1.msra.mxu0 0.0
    %430 = vmatprep.subr.mxu0 0.0
    %431 = vmatpush1.msra.mxu0 0.0
    %432 = vmatprep.subr.mxu0 0.0
    %433 = vmatpush1.msra.mxu0 0.0
    %434 = vmatprep.subr.mxu0 0.0
    %435 = vmatpush1.msra.mxu0 0.0
    %436 = vmatprep.subr.mxu0 0.0
    %437 = vmatpush1.msra.mxu0 0.0
    %438 = vmatprep.subr.mxu0 0.0
    %439 = vmatpush1.msra.mxu0 0.0
    %440 = vmatprep.subr.mxu0 0.0
    %441 = vmatpush1.msra.mxu0 0.0
    %442 = vmatprep.subr.mxu0 0.0
    %443 = vmatpush1.msra.mxu0 0.0
    %444 = vmatprep.subr.mxu0 0.0
    %445 = vmatpush1.msra.mxu0 0.0
    %446 = vmatprep.subr.mxu0 0.0
    %447 = vmatpush1.msra.mxu0 0.0
    %448 = vmatprep.subr.mxu0 0.0
    %449 = vmatpush1.msra.mxu0 0.0
    %450 = vmatprep.subr.mxu0 0.0
    %451 = vmatpush1.msra.mxu0 0.0
    %452 = vmatprep.subr.mxu0 0.0
    %453 = vmatpush1.msra.mxu0 0.0
    %454 = vmatprep.subr.mxu0 0.0
    %455 = vmatpush1.msra.mxu0 0.0
    %456 = vmatprep.subr.mxu0 0.0
    %457 = vmatpush1.msra.mxu0 0.0
    %458 = vmatprep.subr.mxu0 0.0
    %459 = vmatpush1.msra.mxu0 0.0
    %460 = vmatprep.subr.mxu0 0.0
    %461 = vmatpush1.msra.mxu0 0.0
    %462 = vmatprep.subr.mxu0 0.0
    %463 = vmatpush1.msra.mxu0 0.0
    %464 = vmatprep.subr.mxu0 0.0
    %465 = vmatpush1.msra.mxu0 0.0
    %466 = vmatprep.mubr.f32.mxu0 0.0
    %467 = vmatmul.mubr.f32.gmra.mrb[0].mxu0 %v400
    %v468 = vpop.f32.mrb[0].mxu0
    %v469 = vadd.f32 0.0, %v468
    %v470 = vpop.f32.mrb[0].mxu0
    %471 = vdwg.mxu0
    %v472 = vxor.u32 %v469, 2147483648
    %v473 = vmul.f32 %v472, 1.442695
    %v474 = vpow.pop %v473
    %v475 = vadd.f32 %v474, 1.0
    %v476 = vrcp.pop %v475
    %v477 = vmul.f32 1.0, %v476
    %v478 = vld [vmem:[#allocation13] sm:$0xff]
    %v479 = vld [vmem:[#allocation14] sm:$0xff]
    %481 = vset.pattern.permute.xlu0 0
    %482 = vperm.xlu0 %481, %v479
    %v483 = vpop.permute.xlu0 %482
    %v486 = vsel %vm308, %v478, 0
    %v488 = vsel %vm295, %v292, 0
    %490 = vmatprep.subr.mxu0 0.0
    %491 = vmatpush1.msra.mxu0 %v488
    %492 = vmatprep.subr.mxu0 0.0
    %493 = vmatpush1.msra.mxu0 0.0
    %494 = vmatprep.subr.mxu0 0.0
    %495 = vmatpush1.msra.mxu0 0.0
    %496 = vmatprep.subr.mxu0 0.0
    %497 = vmatpush1.msra.mxu0 0.0
    %498 = vmatprep.subr.mxu0 0.0
    %499 = vmatpush1.msra.mxu0 0.0
    %500 = vmatprep.subr.mxu0 0.0
    %501 = vmatpush1.msra.mxu0 0.0
    %502 = vmatprep.subr.mxu0 0.0
    %503 = vmatpush1.msra.mxu0 0.0
    %504 = vmatprep.subr.mxu0 0.0
    %505 = vmatpush1.msra.mxu0 0.0
    %506 = vmatprep.subr.mxu0 0.0
    %507 = vmatpush1.msra.mxu0 0.0
    %508 = vmatprep.subr.mxu0 0.0
    %509 = vmatpush1.msra.mxu0 0.0
    %510 = vmatprep.subr.mxu0 0.0
    %511 = vmatpush1.msra.mxu0 0.0
    %512 = vmatprep.subr.mxu0 0.0
    %513 = vmatpush1.msra.mxu0 0.0
    %514 = vmatprep.subr.mxu0 0.0
    %515 = vmatpush1.msra.mxu0 0.0
    %516 = vmatprep.subr.mxu0 0.0
    %517 = vmatpush1.msra.mxu0 0.0
    %518 = vmatprep.subr.mxu0 0.0
    %519 = vmatpush1.msra.mxu0 0.0
    %520 = vmatprep.subr.mxu0 0.0
    %521 = vmatpush1.msra.mxu0 0.0
    %522 = vmatprep.subr.mxu0 0.0
    %523 = vmatpush1.msra.mxu0 0.0
    %524 = vmatprep.subr.mxu0 0.0
    %525 = vmatpush1.msra.mxu0 0.0
    %526 = vmatprep.subr.mxu0 0.0
    %527 = vmatpush1.msra.mxu0 0.0
    %528 = vmatprep.subr.mxu0 0.0
    %529 = vmatpush1.msra.mxu0 0.0
    %530 = vmatprep.subr.mxu0 0.0
    %531 = vmatpush1.msra.mxu0 0.0
    %532 = vmatprep.subr.mxu0 0.0
    %533 = vmatpush1.msra.mxu0 0.0
    %534 = vmatprep.subr.mxu0 0.0
    %535 = vmatpush1.msra.mxu0 0.0
    %536 = vmatprep.subr.mxu0 0.0
    %537 = vmatpush1.msra.mxu0 0.0
    %538 = vmatprep.subr.mxu0 0.0
    %539 = vmatpush1.msra.mxu0 0.0
    %540 = vmatprep.subr.mxu0 0.0
    %541 = vmatpush1.msra.mxu0 0.0
    %542 = vmatprep.subr.mxu0 0.0
    %543 = vmatpush1.msra.mxu0 0.0
    %544 = vmatprep.subr.mxu0 0.0
    %545 = vmatpush1.msra.mxu0 0.0
    %546 = vmatprep.subr.mxu0 0.0
    %547 = vmatpush1.msra.mxu0 0.0
    %548 = vmatprep.subr.mxu0 0.0
    %549 = vmatpush1.msra.mxu0 0.0
    %550 = vmatprep.subr.mxu0 0.0
    %551 = vmatpush1.msra.mxu0 0.0
    %552 = vmatprep.subr.mxu0 0.0
    %553 = vmatpush1.msra.mxu0 0.0
    %554 = vmatprep.mubr.f32.mxu0 0.0
    %555 = vmatmul.mubr.f32.gmra.mrb[0].mxu0 %v486
    %v556 = vpop.f32.mrb[0].mxu0
    %v557 = vadd.f32 %v483, %v556
    %v558 = vpop.f32.mrb[0].mxu0
    %559 = vdwg.mxu0
    %v560 = vxor.u32 %v557, 2147483648
    %v561 = vmul.f32 %v560, 1.442695
    %v562 = vpow.pop %v561
    %v563 = vadd.f32 %v562, 1.0
    %v564 = vrcp.pop %v563
    %v565 = vmul.f32 1.0, %v564
    %v566 = vmul.f32 %v557, %v565
    %v567 = vld [vmem:[#allocation16] sm:$0xf]
    %v568 = vld [vmem:[#allocation17] sm:$0xf]
    %570 = vset.pattern.permute.xlu0 0
    %571 = vperm.xlu0 %570, %v568
    %v572 = vpop.permute.xlu0 %571
    %v575 = vsel %vm398, %v567, 0
    %577 = vmatprep.subr.mxu0 0.0
    %578 = vmatpush1.msra.mxu0 %v566
    %579 = vmatprep.subr.mxu0 0.0
    %580 = vmatpush1.msra.mxu0 0.0
    %581 = vmatprep.subr.mxu0 0.0
    %582 = vmatpush1.msra.mxu0 0.0
    %583 = vmatprep.subr.mxu0 0.0
    %584 = vmatpush1.msra.mxu0 0.0
    %585 = vmatprep.subr.mxu0 0.0
    %586 = vmatpush1.msra.mxu0 0.0
    %587 = vmatprep.subr.mxu0 0.0
    %588 = vmatpush1.msra.mxu0 0.0
    %589 = vmatprep.subr.mxu0 0.0
    %590 = vmatpush1.msra.mxu0 0.0
    %591 = vmatprep.subr.mxu0 0.0
    %592 = vmatpush1.msra.mxu0 0.0
    %593 = vmatprep.subr.mxu0 0.0
    %594 = vmatpush1.msra.mxu0 0.0
    %595 = vmatprep.subr.mxu0 0.0
    %596 = vmatpush1.msra.mxu0 0.0
    %597 = vmatprep.subr.mxu0 0.0
    %598 = vmatpush1.msra.mxu0 0.0
    %599 = vmatprep.subr.mxu0 0.0
    %600 = vmatpush1.msra.mxu0 0.0
    %601 = vmatprep.subr.mxu0 0.0
    %602 = vmatpush1.msra.mxu0 0.0
    %603 = vmatprep.subr.mxu0 0.0
    %604 = vmatpush1.msra.mxu0 0.0
    %605 = vmatprep.subr.mxu0 0.0
    %606 = vmatpush1.msra.mxu0 0.0
    %607 = vmatprep.subr.mxu0 0.0
    %608 = vmatpush1.msra.mxu0 0.0
    %609 = vmatprep.subr.mxu0 0.0
    %610 = vmatpush1.msra.mxu0 0.0
    %611 = vmatprep.subr.mxu0 0.0
    %612 = vmatpush1.msra.mxu0 0.0
    %613 = vmatprep.subr.mxu0 0.0
    %614 = vmatpush1.msra.mxu0 0.0
    %615 = vmatprep.subr.mxu0 0.0
    %616 = vmatpush1.msra.mxu0 0.0
    %617 = vmatprep.subr.mxu0 0.0
    %618 = vmatpush1.msra.mxu0 0.0
    %619 = vmatprep.subr.mxu0 0.0
    %620 = vmatpush1.msra.mxu0 0.0
    %621 = vmatprep.subr.mxu0 0.0
    %622 = vmatpush1.msra.mxu0 0.0
    %623 = vmatprep.subr.mxu0 0.0
    %624 = vmatpush1.msra.mxu0 0.0
    %625 = vmatprep.subr.mxu0 0.0
    %626 = vmatpush1.msra.mxu0 0.0
    %627 = vmatprep.subr.mxu0 0.0
    %628 = vmatpush1.msra.mxu0 0.0
    %629 = vmatprep.subr.mxu0 0.0
    %630 = vmatpush1.msra.mxu0 0.0
    %631 = vmatprep.subr.mxu0 0.0
    %632 = vmatpush1.msra.mxu0 0.0
    %633 = vmatprep.subr.mxu0 0.0
    %634 = vmatpush1.msra.mxu0 0.0
    %635 = vmatprep.subr.mxu0 0.0
    %636 = vmatpush1.msra.mxu0 0.0
    %637 = vmatprep.subr.mxu0 0.0
    %638 = vmatpush1.msra.mxu0 0.0
    %639 = vmatprep.subr.mxu0 0.0
    %640 = vmatpush1.msra.mxu0 0.0
    %641 = vmatprep.mubr.f32.mxu0 0.0
    %642 = vmatmul.mubr.f32.gmra.mrb[0].mxu0 %v575
    %v643 = vpop.f32.mrb[0].mxu0
    %v644 = vadd.f32 %v572, %v643
    %v645 = vpop.f32.mrb[0].mxu0
    %646 = vdwg.mxu0
    %v647 = vxor.u32 %v644, 2147483648
    %v648 = vmul.f32 %v647, 1.442695
    %v649 = vpow.pop %v648
    %v650 = vadd.f32 %v649, 1.0
    %v651 = vrcp.pop %v650
    %v652 = vmul.f32 1.0, %v651
    %v653 = vld [vmem:[#allocation19] sm:$0xf]
    %v654 = vld [vmem:[#allocation20] sm:$0xf]
    %656 = vset.pattern.permute.xlu0 0
    %657 = vperm.xlu0 %656, %v654
    %v658 = vpop.permute.xlu0 %657
    %661 = vrot.lane.b32.xlu0 %v566, 112
    %v662 = vpop.permute.xlu0 %661
    %v665 = vsel %vm398, %v653, 0
    %667 = vmatprep.subr.mxu0 0.0
    %668 = vmatpush1.msra.mxu0 %v662
    %669 = vmatprep.subr.mxu0 0.0
    %670 = vmatpush1.msra.mxu0 0.0
    %671 = vmatprep.subr.mxu0 0.0
    %672 = vmatpush1.msra.mxu0 0.0
    %673 = vmatprep.subr.mxu0 0.0
    %674 = vmatpush1.msra.mxu0 0.0
    %675 = vmatprep.subr.mxu0 0.0
    %676 = vmatpush1.msra.mxu0 0.0
    %677 = vmatprep.subr.mxu0 0.0
    %678 = vmatpush1.msra.mxu0 0.0
    %679 = vmatprep.subr.mxu0 0.0
    %680 = vmatpush1.msra.mxu0 0.0
    %681 = vmatprep.subr.mxu0 0.0
    %682 = vmatpush1.msra.mxu0 0.0
    %683 = vmatprep.subr.mxu0 0.0
    %684 = vmatpush1.msra.mxu0 0.0
    %685 = vmatprep.subr.mxu0 0.0
    %686 = vmatpush1.msra.mxu0 0.0
    %687 = vmatprep.subr.mxu0 0.0
    %688 = vmatpush1.msra.mxu0 0.0
    %689 = vmatprep.subr.mxu0 0.0
    %690 = vmatpush1.msra.mxu0 0.0
    %691 = vmatprep.subr.mxu0 0.0
    %692 = vmatpush1.msra.mxu0 0.0
    %693 = vmatprep.subr.mxu0 0.0
    %694 = vmatpush1.msra.mxu0 0.0
    %695 = vmatprep.subr.mxu0 0.0
    %696 = vmatpush1.msra.mxu0 0.0
    %697 = vmatprep.subr.mxu0 0.0
    %698 = vmatpush1.msra.mxu0 0.0
    %699 = vmatprep.subr.mxu0 0.0
    %700 = vmatpush1.msra.mxu0 0.0
    %701 = vmatprep.subr.mxu0 0.0
    %702 = vmatpush1.msra.mxu0 0.0
    %703 = vmatprep.subr.mxu0 0.0
    %704 = vmatpush1.msra.mxu0 0.0
    %705 = vmatprep.subr.mxu0 0.0
    %706 = vmatpush1.msra.mxu0 0.0
    %707 = vmatprep.subr.mxu0 0.0
    %708 = vmatpush1.msra.mxu0 0.0
    %709 = vmatprep.subr.mxu0 0.0
    %710 = vmatpush1.msra.mxu0 0.0
    %711 = vmatprep.subr.mxu0 0.0
    %712 = vmatpush1.msra.mxu0 0.0
    %713 = vmatprep.subr.mxu0 0.0
    %714 = vmatpush1.msra.mxu0 0.0
    %715 = vmatprep.subr.mxu0 0.0
    %716 = vmatpush1.msra.mxu0 0.0
    %717 = vmatprep.subr.mxu0 0.0
    %718 = vmatpush1.msra.mxu0 0.0
    %719 = vmatprep.subr.mxu0 0.0
    %720 = vmatpush1.msra.mxu0 0.0
    %721 = vmatprep.subr.mxu0 0.0
    %722 = vmatpush1.msra.mxu0 0.0
    %723 = vmatprep.subr.mxu0 0.0
    %724 = vmatpush1.msra.mxu0 0.0
    %725 = vmatprep.subr.mxu0 0.0
    %726 = vmatpush1.msra.mxu0 0.0
    %727 = vmatprep.subr.mxu0 0.0
    %728 = vmatpush1.msra.mxu0 0.0
    %729 = vmatprep.subr.mxu0 0.0
    %730 = vmatpush1.msra.mxu0 0.0
    %731 = vmatprep.mubr.f32.mxu0 0.0
    %732 = vmatmul.mubr.f32.gmra.mrb[0].mxu0 %v665
    %v733 = vpop.f32.mrb[0].mxu0
    %v734 = vadd.f32 %v658, %v733
    %v735 = vpop.f32.mrb[0].mxu0
    %736 = vdwg.mxu0
    %v737 = vxor.u32 %v734, 2147483648
    %v738 = vmul.f32 %v737, 1.442695
    %v739 = vpow.pop %v738
    %v740 = vadd.f32 %v739, 1.0
    %v741 = vrcp.pop %v740
    %v742 = vmul.f32 1.0, %v741
    %v743 = vld [vmem:[#allocation7] sm:$0xff]
    %v744 = vld [vmem:[#allocation7 + $0x8] sm:$0xff]
    %v745 = vld [vmem:[#allocation7 + $0x10] sm:$0xff]
    %v746 = vld [vmem:[#allocation7 + $0x18] sm:$0xff]
    %vm747 = vcmask 130048
    %v749 = vsel %vm747, %v652, 0
    %751 = vmatprep.subr.mxu0 %v744
    %752 = vmatpush1.msra.mxu0 %v743
    %753 = vmatprep.subr.mxu0 %v746
    %754 = vmatpush1.msra.mxu0 %v745
    %755 = vmatprep.subr.mxu0 0.0
    %756 = vmatpush1.msra.mxu0 0.0
    %757 = vmatprep.subr.mxu0 0.0
    %758 = vmatpush1.msra.mxu0 0.0
    %759 = vmatprep.subr.mxu0 0.0
    %760 = vmatpush1.msra.mxu0 0.0
    %761 = vmatprep.subr.mxu0 0.0
    %762 = vmatpush1.msra.mxu0 0.0
    %763 = vmatprep.subr.mxu0 0.0
    %764 = vmatpush1.msra.mxu0 0.0
    %765 = vmatprep.subr.mxu0 0.0
    %766 = vmatpush1.msra.mxu0 0.0
    %767 = vmatprep.subr.mxu0 0.0
    %768 = vmatpush1.msra.mxu0 0.0
    %769 = vmatprep.subr.mxu0 0.0
    %770 = vmatpush1.msra.mxu0 0.0
    %771 = vmatprep.subr.mxu0 0.0
    %772 = vmatpush1.msra.mxu0 0.0
    %773 = vmatprep.subr.mxu0 0.0
    %774 = vmatpush1.msra.mxu0 0.0
    %775 = vmatprep.subr.mxu0 0.0
    %776 = vmatpush1.msra.mxu0 0.0
    %777 = vmatprep.subr.mxu0 0.0
    %778 = vmatpush1.msra.mxu0 0.0
    %779 = vmatprep.subr.mxu0 0.0
    %780 = vmatpush1.msra.mxu0 0.0
    %781 = vmatprep.subr.mxu0 0.0
    %782 = vmatpush1.msra.mxu0 0.0
    %783 = vmatprep.subr.mxu0 0.0
    %784 = vmatpush1.msra.mxu0 0.0
    %785 = vmatprep.subr.mxu0 0.0
    %786 = vmatpush1.msra.mxu0 0.0
    %787 = vmatprep.subr.mxu0 0.0
    %788 = vmatpush1.msra.mxu0 0.0
    %789 = vmatprep.subr.mxu0 0.0
    %790 = vmatpush1.msra.mxu0 0.0
    %791 = vmatprep.subr.mxu0 0.0
    %792 = vmatpush1.msra.mxu0 0.0
    %793 = vmatprep.subr.mxu0 0.0
    %794 = vmatpush1.msra.mxu0 0.0
    %795 = vmatprep.subr.mxu0 0.0
    %796 = vmatpush1.msra.mxu0 0.0
    %797 = vmatprep.subr.mxu0 0.0
    %798 = vmatpush1.msra.mxu0 0.0
    %799 = vmatprep.subr.mxu0 0.0
    %800 = vmatpush1.msra.mxu0 0.0
    %801 = vmatprep.subr.mxu0 0.0
    %802 = vmatpush1.msra.mxu0 0.0
    %803 = vmatprep.subr.mxu0 0.0
    %804 = vmatpush1.msra.mxu0 0.0
    %805 = vmatprep.subr.mxu0 0.0
    %806 = vmatpush1.msra.mxu0 0.0
    %807 = vmatprep.subr.mxu0 0.0
    %808 = vmatpush1.msra.mxu0 0.0
    %809 = vmatprep.subr.mxu0 0.0
    %810 = vmatpush1.msra.mxu0 0.0
    %811 = vmatprep.subr.mxu0 0.0
    %812 = vmatpush1.msra.mxu0 0.0
    %813 = vmatprep.subr.mxu0 0.0
    %814 = vmatpush1.msra.mxu0 0.0
    %815 = vmatprep.mubr.f32.mxu0 0.0
    %816 = vmatmul.mubr.f32.gmra.mrb[0].mxu0 %v749
    %v817 = vpop.f32.mrb[0].mxu0
    %v818 = vadd.f32 0.0, %v817
    %v819 = vpop.f32.mrb[0].mxu0
    %v820 = vadd.f32 0.0, %v819
    %821 = vdwg.mxu0
    %v822 = vld [vmem:[#allocation8] sm:$0xff]
    %v823 = vld [vmem:[#allocation8 + $0x8] sm:$0xff]
    %v824 = vld [vmem:[#allocation8 + $0x10] sm:$0xff]
    %v825 = vld [vmem:[#allocation8 + $0x18] sm:$0xff]
    %v827 = vsel %vm747, %v742, 0
    %829 = vmatprep.subr.mxu0 %v823
    %830 = vmatpush1.msra.mxu0 %v822
    %831 = vmatprep.subr.mxu0 %v825
    %832 = vmatpush1.msra.mxu0 %v824
    %833 = vmatprep.subr.mxu0 0.0
    %834 = vmatpush1.msra.mxu0 0.0
    %835 = vmatprep.subr.mxu0 0.0
    %836 = vmatpush1.msra.mxu0 0.0
    %837 = vmatprep.subr.mxu0 0.0
    %838 = vmatpush1.msra.mxu0 0.0
    %839 = vmatprep.subr.mxu0 0.0
    %840 = vmatpush1.msra.mxu0 0.0
    %841 = vmatprep.subr.mxu0 0.0
    %842 = vmatpush1.msra.mxu0 0.0
    %843 = vmatprep.subr.mxu0 0.0
    %844 = vmatpush1.msra.mxu0 0.0
    %845 = vmatprep.subr.mxu0 0.0
    %846 = vmatpush1.msra.mxu0 0.0
    %847 = vmatprep.subr.mxu0 0.0
    %848 = vmatpush1.msra.mxu0 0.0
    %849 = vmatprep.subr.mxu0 0.0
    %850 = vmatpush1.msra.mxu0 0.0
    %851 = vmatprep.subr.mxu0 0.0
    %852 = vmatpush1.msra.mxu0 0.0
    %853 = vmatprep.subr.mxu0 0.0
    %854 = vmatpush1.msra.mxu0 0.0
    %855 = vmatprep.subr.mxu0 0.0
    %856 = vmatpush1.msra.mxu0 0.0
    %857 = vmatprep.subr.mxu0 0.0
    %858 = vmatpush1.msra.mxu0 0.0
    %859 = vmatprep.subr.mxu0 0.0
    %860 = vmatpush1.msra.mxu0 0.0
    %861 = vmatprep.subr.mxu0 0.0
    %862 = vmatpush1.msra.mxu0 0.0
    %863 = vmatprep.subr.mxu0 0.0
    %864 = vmatpush1.msra.mxu0 0.0
    %865 = vmatprep.subr.mxu0 0.0
    %866 = vmatpush1.msra.mxu0 0.0
    %867 = vmatprep.subr.mxu0 0.0
    %868 = vmatpush1.msra.mxu0 0.0
    %869 = vmatprep.subr.mxu0 0.0
    %870 = vmatpush1.msra.mxu0 0.0
    %871 = vmatprep.subr.mxu0 0.0
    %872 = vmatpush1.msra.mxu0 0.0
    %873 = vmatprep.subr.mxu0 0.0
    %874 = vmatpush1.msra.mxu0 0.0
    %875 = vmatprep.subr.mxu0 0.0
    %876 = vmatpush1.msra.mxu0 0.0
    %877 = vmatprep.subr.mxu0 0.0
    %878 = vmatpush1.msra.mxu0 0.0
    %879 = vmatprep.subr.mxu0 0.0
    %880 = vmatpush1.msra.mxu0 0.0
    %881 = vmatprep.subr.mxu0 0.0
    %882 = vmatpush1.msra.mxu0 0.0
    %883 = vmatprep.subr.mxu0 0.0
    %884 = vmatpush1.msra.mxu0 0.0
    %885 = vmatprep.subr.mxu0 0.0
    %886 = vmatpush1.msra.mxu0 0.0
    %887 = vmatprep.subr.mxu0 0.0
    %888 = vmatpush1.msra.mxu0 0.0
    %889 = vmatprep.subr.mxu0 0.0
    %890 = vmatpush1.msra.mxu0 0.0
    %891 = vmatprep.subr.mxu0 0.0
    %892 = vmatpush1.msra.mxu0 0.0
    %893 = vmatprep.mubr.f32.mxu0 0.0
    %894 = vmatmul.mubr.f32.gmra.mrb[0].mxu0 %v827
    %v895 = vpop.f32.mrb[0].mxu0
    %v896 = vadd.f32 0.0, %v895
    %v897 = vpop.f32.mrb[0].mxu0
    %v898 = vadd.f32 0.0, %v897
    %899 = vdwg.mxu0
    %v900 = vmul.f32 %v818, %v896
    %v901 = vmul.f32 %v820, %v898
    %903 = vset.pattern.permute.xlu0 0
    %904 = vperm.xlu0 %903, %v477
    %v905 = vpop.permute.xlu0 %904
    %v907 = vadd.f32 %v900, %v905
    %v908 = vadd.f32 %v901, %v905
    %v911 = vcombine.low %v907, %v908
    %v913 = vmul.f32 %v189, %v911
    %914 = vst [vmem:[#allocation22] sm:$0xff] %v913
    %s915 = scalar_lea.vmem [#allocation2], 8
    %v916 = vld [vmem:[%s915] sm:$0xff]
    %v917 = vld [vmem:[#allocation5] sm:$0xff]
    %v918 = vld [vmem:[#allocation5 + $0x8] sm:$0xff]
    %v919 = vld [vmem:[#allocation5 + $0x10] sm:$0xff]
    %v920 = vld [vmem:[#allocation5 + $0x18] sm:$0xff]
    %v921 = vld [vmem:[#allocation5 + $0x20] sm:$0xff]
    %v922 = vld [vmem:[#allocation5 + $0x28] sm:$0xff]
    %v923 = vld [vmem:[#allocation5 + $0x30] sm:$0xff]
    %v924 = vld [vmem:[#allocation5 + $0x38] sm:$0xff]
    %v925 = vld [vmem:[#allocation5 + $0x40] sm:$0xff]
    %v926 = vld [vmem:[#allocation5 + $0x48] sm:$0xff]
    %v927 = vld [vmem:[#allocation5 + $0x50] sm:$0xff]
    %v928 = vld [vmem:[#allocation5 + $0x58] sm:$0xff]
    %v929 = vld [vmem:[#allocation5 + $0x60] sm:$0xff]
    %v930 = vld [vmem:[#allocation5 + $0x68] sm:$0xff]
    %v931 = vld [vmem:[#allocation5 + $0x70] sm:$0xff]
    %v932 = vld [vmem:[#allocation5 + $0x78] sm:$0xff]
    %v933 = vld [vmem:[#allocation5 + $0x80] sm:$0xff]
    %v934 = vld [vmem:[#allocation5 + $0x88] sm:$0xff]
    %v935 = vld [vmem:[#allocation5 + $0x90] sm:$0xff]
    %v936 = vld [vmem:[#allocation5 + $0x98] sm:$0xff]
    %v937 = vld [vmem:[#allocation5 + $0xa0] sm:$0xff]
    %v938 = vld [vmem:[#allocation5 + $0xa8] sm:$0xff]
    %v939 = vld [vmem:[#allocation5 + $0xb0] sm:$0xff]
    %v940 = vld [vmem:[#allocation5 + $0xb8] sm:$0xff]
    %v941 = vld [vmem:[#allocation5 + $0xc0] sm:$0xff]
    %v942 = vld [vmem:[#allocation5 + $0xc8] sm:$0xff]
    %v943 = vld [vmem:[#allocation5 + $0xd0] sm:$0xff]
    %v944 = vld [vmem:[#allocation5 + $0xd8] sm:$0xff]
    %v945 = vld [vmem:[#allocation5 + $0xe0] sm:$0xff]
    %v946 = vld [vmem:[#allocation5 + $0xe8] sm:$0xff]
    %v947 = vld [vmem:[#allocation5 + $0xf0] sm:$0xff]
    %v948 = vld [vmem:[#allocation5 + $0xf8] sm:$0xff]
    %v950 = vcombine.high %v916, %v916
    %952 = vmatprep.subr.mxu0 0.0
    %953 = vmatpush1.msra.mxu0 %v917
    %954 = vmatprep.subr.mxu0 0.0
    %955 = vmatpush1.msra.mxu0 %v918
    %956 = vmatprep.subr.mxu0 0.0
    %957 = vmatpush1.msra.mxu0 %v919
    %958 = vmatprep.subr.mxu0 0.0
    %959 = vmatpush1.msra.mxu0 %v920
    %960 = vmatprep.subr.mxu0 0.0
    %961 = vmatpush1.msra.mxu0 %v921
    %962 = vmatprep.subr.mxu0 0.0
    %963 = vmatpush1.msra.mxu0 %v922
    %964 = vmatprep.subr.mxu0 0.0
    %965 = vmatpush1.msra.mxu0 %v923
    %966 = vmatprep.subr.mxu0 0.0
    %967 = vmatpush1.msra.mxu0 %v924
    %968 = vmatprep.subr.mxu0 0.0
    %969 = vmatpush1.msra.mxu0 %v925
    %970 = vmatprep.subr.mxu0 0.0
    %971 = vmatpush1.msra.mxu0 %v926
    %972 = vmatprep.subr.mxu0 0.0
    %973 = vmatpush1.msra.mxu0 %v927
    %974 = vmatprep.subr.mxu0 0.0
    %975 = vmatpush1.msra.mxu0 %v928
    %976 = vmatprep.subr.mxu0 0.0
    %977 = vmatpush1.msra.mxu0 %v929
    %978 = vmatprep.subr.mxu0 0.0
    %979 = vmatpush1.msra.mxu0 %v930
    %980 = vmatprep.subr.mxu0 0.0
    %981 = vmatpush1.msra.mxu0 %v931
    %982 = vmatprep.subr.mxu0 0.0
    %983 = vmatpush1.msra.mxu0 %v932
    %984 = vmatprep.subr.mxu0 0.0
    %985 = vmatpush1.msra.mxu0 %v933
    %986 = vmatprep.subr.mxu0 0.0
    %987 = vmatpush1.msra.mxu0 %v934
    %988 = vmatprep.subr.mxu0 0.0
    %989 = vmatpush1.msra.mxu0 %v935
    %990 = vmatprep.subr.mxu0 0.0
    %991 = vmatpush1.msra.mxu0 %v936
    %992 = vmatprep.subr.mxu0 0.0
    %993 = vmatpush1.msra.mxu0 %v937
    %994 = vmatprep.subr.mxu0 0.0
    %995 = vmatpush1.msra.mxu0 %v938
    %996 = vmatprep.subr.mxu0 0.0
    %997 = vmatpush1.msra.mxu0 %v939
    %998 = vmatprep.subr.mxu0 0.0
    %999 = vmatpush1.msra.mxu0 %v940
    %1000 = vmatprep.subr.mxu0 0.0
    %1001 = vmatpush1.msra.mxu0 %v941
    %1002 = vmatprep.subr.mxu0 0.0
    %1003 = vmatpush1.msra.mxu0 %v942
    %1004 = vmatprep.subr.mxu0 0.0
    %1005 = vmatpush1.msra.mxu0 %v943
    %1006 = vmatprep.subr.mxu0 0.0
    %1007 = vmatpush1.msra.mxu0 %v944
    %1008 = vmatprep.subr.mxu0 0.0
    %1009 = vmatpush1.msra.mxu0 %v945
    %1010 = vmatprep.subr.mxu0 0.0
    %1011 = vmatpush1.msra.mxu0 %v946
    %1012 = vmatprep.subr.mxu0 0.0
    %1013 = vmatpush1.msra.mxu0 %v947
    %1014 = vmatprep.subr.mxu0 0.0
    %1015 = vmatpush1.msra.mxu0 %v948
    %1016 = vmatprep.mubr.f32.mxu0 %v950
    %1017 = vmatmul.mubr.f32.gmra.mrb[0].mxu0 %v916
    %v1018 = vpop.f32.mrb[0].mxu0
    %v1019 = vadd.f32 0.0, %v1018
    %v1020 = vpop.f32.mrb[0].mxu0
    %1021 = vdwg.mxu0
    %v1022 = vsel %vm295, %v916, -inf
    %v1023 = vsel %vm295, %v950, -inf
    %v1024 = vmax.f32 %v1022, %v1023
    %1025 = vmax.xlane.f32.xlu0 %v1024
    %v1026 = vpop.xlane.xlu0 %1025
    %1028 = vrot.lane.b32.xlu0 %v1019, 96
    %v1029 = vpop.permute.xlu0 %1028
    %v1031 = vsel %vm305, %v1029, %v1026
    %v1032 = vld [vmem:[#allocation10] sm:$0xff]
    %v1034 = vsel %vm308, %v1032, 0
    %v1037 = vsel %vm295, %v1031, 0
    %1039 = vmatprep.subr.mxu0 0.0
    %1040 = vmatpush1.msra.mxu0 %v1037
    %1041 = vmatprep.subr.mxu0 0.0
    %1042 = vmatpush1.msra.mxu0 0.0
    %1043 = vmatprep.subr.mxu0 0.0
    %1044 = vmatpush1.msra.mxu0 0.0
    %1045 = vmatprep.subr.mxu0 0.0
    %1046 = vmatpush1.msra.mxu0 0.0
    %1047 = vmatprep.subr.mxu0 0.0
    %1048 = vmatpush1.msra.mxu0 0.0
    %1049 = vmatprep.subr.mxu0 0.0
    %1050 = vmatpush1.msra.mxu0 0.0
    %1051 = vmatprep.subr.mxu0 0.0
    %1052 = vmatpush1.msra.mxu0 0.0
    %1053 = vmatprep.subr.mxu0 0.0
    %1054 = vmatpush1.msra.mxu0 0.0
    %1055 = vmatprep.subr.mxu0 0.0
    %1056 = vmatpush1.msra.mxu0 0.0
    %1057 = vmatprep.subr.mxu0 0.0
    %1058 = vmatpush1.msra.mxu0 0.0
    %1059 = vmatprep.subr.mxu0 0.0
    %1060 = vmatpush1.msra.mxu0 0.0
    %1061 = vmatprep.subr.mxu0 0.0
    %1062 = vmatpush1.msra.mxu0 0.0
    %1063 = vmatprep.subr.mxu0 0.0
    %1064 = vmatpush1.msra.mxu0 0.0
    %1065 = vmatprep.subr.mxu0 0.0
    %1066 = vmatpush1.msra.mxu0 0.0
    %1067 = vmatprep.subr.mxu0 0.0
    %1068 = vmatpush1.msra.mxu0 0.0
    %1069 = vmatprep.subr.mxu0 0.0
    %1070 = vmatpush1.msra.mxu0 0.0
    %1071 = vmatprep.subr.mxu0 0.0
    %1072 = vmatpush1.msra.mxu0 0.0
    %1073 = vmatprep.subr.mxu0 0.0
    %1074 = vmatpush1.msra.mxu0 0.0
    %1075 = vmatprep.subr.mxu0 0.0
    %1076 = vmatpush1.msra.mxu0 0.0
    %1077 = vmatprep.subr.mxu0 0.0
    %1078 = vmatpush1.msra.mxu0 0.0
    %1079 = vmatprep.subr.mxu0 0.0
    %1080 = vmatpush1.msra.mxu0 0.0
    %1081 = vmatprep.subr.mxu0 0.0
    %1082 = vmatpush1.msra.mxu0 0.0
    %1083 = vmatprep.subr.mxu0 0.0
    %1084 = vmatpush1.msra.mxu0 0.0
    %1085 = vmatprep.subr.mxu0 0.0
    %1086 = vmatpush1.msra.mxu0 0.0
    %1087 = vmatprep.subr.mxu0 0.0
    %1088 = vmatpush1.msra.mxu0 0.0
    %1089 = vmatprep.subr.mxu0 0.0
    %1090 = vmatpush1.msra.mxu0 0.0
    %1091 = vmatprep.subr.mxu0 0.0
    %1092 = vmatpush1.msra.mxu0 0.0
    %1093 = vmatprep.subr.mxu0 0.0
    %1094 = vmatpush1.msra.mxu0 0.0
    %1095 = vmatprep.subr.mxu0 0.0
    %1096 = vmatpush1.msra.mxu0 0.0
    %1097 = vmatprep.subr.mxu0 0.0
    %1098 = vmatpush1.msra.mxu0 0.0
    %1099 = vmatprep.subr.mxu0 0.0
    %1100 = vmatpush1.msra.mxu0 0.0
    %1101 = vmatprep.subr.mxu0 0.0
    %1102 = vmatpush1.msra.mxu0 0.0
    %1103 = vmatprep.mubr.f32.mxu0 0.0
    %1104 = vmatmul.mubr.f32.gmra.mrb[0].mxu0 %v1034
    %v1105 = vpop.f32.mrb[0].mxu0
    %v1106 = vadd.f32 0.0, %v1105
    %v1107 = vpop.f32.mrb[0].mxu0
    %1108 = vdwg.mxu0
    %v1109 = vxor.u32 %v1106, 2147483648
    %v1110 = vmul.f32 %v1109, 1.442695
    %v1111 = vpow.pop %v1110
    %v1112 = vadd.f32 %v1111, 1.0
    %v1113 = vrcp.pop %v1112
    %v1114 = vmul.f32 1.0, %v1113
    %v1115 = vmul.f32 %v1106, %v1114
    %v1116 = vld [vmem:[#allocation11] sm:$0xf]
    %1118 = vrot.lane.b32.xlu0 %v1115, 127
    %v1119 = vpop.permute.xlu0 %1118
    %v1121 = vadd.f32 %v1115, %v1119
    %v1123 = vsel %vm398, %v1116, 0
    %1125 = vmatprep.subr.mxu0 0.0
    %1126 = vmatpush1.msra.mxu0 %v1121
    %1127 = vmatprep.subr.mxu0 0.0
    %1128 = vmatpush1.msra.mxu0 0.0
    %1129 = vmatprep.subr.mxu0 0.0
    %1130 = vmatpush1.msra.mxu0 0.0
    %1131 = vmatprep.subr.mxu0 0.0
    %1132 = vmatpush1.msra.mxu0 0.0
    %1133 = vmatprep.subr.mxu0 0.0
    %1134 = vmatpush1.msra.mxu0 0.0
    %1135 = vmatprep.subr.mxu0 0.0
    %1136 = vmatpush1.msra.mxu0 0.0
    %1137 = vmatprep.subr.mxu0 0.0
    %1138 = vmatpush1.msra.mxu0 0.0
    %1139 = vmatprep.subr.mxu0 0.0
    %1140 = vmatpush1.msra.mxu0 0.0
    %1141 = vmatprep.subr.mxu0 0.0
    %1142 = vmatpush1.msra.mxu0 0.0
    %1143 = vmatprep.subr.mxu0 0.0
    %1144 = vmatpush1.msra.mxu0 0.0
    %1145 = vmatprep.subr.mxu0 0.0
    %1146 = vmatpush1.msra.mxu0 0.0
    %1147 = vmatprep.subr.mxu0 0.0
    %1148 = vmatpush1.msra.mxu0 0.0
    %1149 = vmatprep.subr.mxu0 0.0
    %1150 = vmatpush1.msra.mxu0 0.0
    %1151 = vmatprep.subr.mxu0 0.0
    %1152 = vmatpush1.msra.mxu0 0.0
    %1153 = vmatprep.subr.mxu0 0.0
    %1154 = vmatpush1.msra.mxu0 0.0
    %1155 = vmatprep.subr.mxu0 0.0
    %1156 = vmatpush1.msra.mxu0 0.0
    %1157 = vmatprep.subr.mxu0 0.0
    %1158 = vmatpush1.msra.mxu0 0.0
    %1159 = vmatprep.subr.mxu0 0.0
    %1160 = vmatpush1.msra.mxu0 0.0
    %1161 = vmatprep.subr.mxu0 0.0
    %1162 = vmatpush1.msra.mxu0 0.0
    %1163 = vmatprep.subr.mxu0 0.0
    %1164 = vmatpush1.msra.mxu0 0.0
    %1165 = vmatprep.subr.mxu0 0.0
    %1166 = vmatpush1.msra.mxu0 0.0
    %1167 = vmatprep.subr.mxu0 0.0
    %1168 = vmatpush1.msra.mxu0 0.0
    %1169 = vmatprep.subr.mxu0 0.0
    %1170 = vmatpush1.msra.mxu0 0.0
    %1171 = vmatprep.subr.mxu0 0.0
    %1172 = vmatpush1.msra.mxu0 0.0
    %1173 = vmatprep.subr.mxu0 0.0
    %1174 = vmatpush1.msra.mxu0 0.0
    %1175 = vmatprep.subr.mxu0 0.0
    %1176 = vmatpush1.msra.mxu0 0.0
    %1177 = vmatprep.subr.mxu0 0.0
    %1178 = vmatpush1.msra.mxu0 0.0
    %1179 = vmatprep.subr.mxu0 0.0
    %1180 = vmatpush1.msra.mxu0 0.0
    %1181 = vmatprep.subr.mxu0 0.0
    %1182 = vmatpush1.msra.mxu0 0.0
    %1183 = vmatprep.subr.mxu0 0.0
    %1184 = vmatpush1.msra.mxu0 0.0
    %1185 = vmatprep.subr.mxu0 0.0
    %1186 = vmatpush1.msra.mxu0 0.0
    %1187 = vmatprep.subr.mxu0 0.0
    %1188 = vmatpush1.msra.mxu0 0.0
    %1189 = vmatprep.mubr.f32.mxu0 0.0
    %1190 = vmatmul.mubr.f32.gmra.mrb[0].mxu0 %v1123
    %v1191 = vpop.f32.mrb[0].mxu0
    %v1192 = vadd.f32 0.0, %v1191
    %v1193 = vpop.f32.mrb[0].mxu0
    %1194 = vdwg.mxu0
    %v1195 = vxor.u32 %v1192, 2147483648
    %v1196 = vmul.f32 %v1195, 1.442695
    %v1197 = vpow.pop %v1196
    %v1198 = vadd.f32 %v1197, 1.0
    %v1199 = vrcp.pop %v1198
    %v1200 = vmul.f32 1.0, %v1199
    %v1201 = vld [vmem:[#allocation13] sm:$0xff]
    %v1202 = vld [vmem:[#allocation14] sm:$0xff]
    %1204 = vset.pattern.permute.xlu0 0
    %1205 = vperm.xlu0 %1204, %v1202
    %v1206 = vpop.permute.xlu0 %1205
    %v1209 = vsel %vm308, %v1201, 0
    %v1211 = vsel %vm295, %v1019, 0
    %1213 = vmatprep.subr.mxu0 0.0
    %1214 = vmatpush1.msra.mxu0 %v1211
    %1215 = vmatprep.subr.mxu0 0.0
    %1216 = vmatpush1.msra.mxu0 0.0
    %1217 = vmatprep.subr.mxu0 0.0
    %1218 = vmatpush1.msra.mxu0 0.0
    %1219 = vmatprep.subr.mxu0 0.0
    %1220 = vmatpush1.msra.mxu0 0.0
    %1221 = vmatprep.subr.mxu0 0.0
    %1222 = vmatpush1.msra.mxu0 0.0
    %1223 = vmatprep.subr.mxu0 0.0
    %1224 = vmatpush1.msra.mxu0 0.0
    %1225 = vmatprep.subr.mxu0 0.0
    %1226 = vmatpush1.msra.mxu0 0.0
    %1227 = vmatprep.subr.mxu0 0.0
    %1228 = vmatpush1.msra.mxu0 0.0
    %1229 = vmatprep.subr.mxu0 0.0
    %1230 = vmatpush1.msra.mxu0 0.0
    %1231 = vmatprep.subr.mxu0 0.0
    %1232 = vmatpush1.msra.mxu0 0.0
    %1233 = vmatprep.subr.mxu0 0.0
    %1234 = vmatpush1.msra.mxu0 0.0
    %1235 = vmatprep.subr.mxu0 0.0
    %1236 = vmatpush1.msra.mxu0 0.0
    %1237 = vmatprep.subr.mxu0 0.0
    %1238 = vmatpush1.msra.mxu0 0.0
    %1239 = vmatprep.subr.mxu0 0.0
    %1240 = vmatpush1.msra.mxu0 0.0
    %1241 = vmatprep.subr.mxu0 0.0
    %1242 = vmatpush1.msra.mxu0 0.0
    %1243 = vmatprep.subr.mxu0 0.0
    %1244 = vmatpush1.msra.mxu0 0.0
    %1245 = vmatprep.subr.mxu0 0.0
    %1246 = vmatpush1.msra.mxu0 0.0
    %1247 = vmatprep.subr.mxu0 0.0
    %1248 = vmatpush1.msra.mxu0 0.0
    %1249 = vmatprep.subr.mxu0 0.0
    %1250 = vmatpush1.msra.mxu0 0.0
    %1251 = vmatprep.subr.mxu0 0.0
    %1252 = vmatpush1.msra.mxu0 0.0
    %1253 = vmatprep.subr.mxu0 0.0
    %1254 = vmatpush1.msra.mxu0 0.0
    %1255 = vmatprep.subr.mxu0 0.0
    %1256 = vmatpush1.msra.mxu0 0.0
    %1257 = vmatprep.subr.mxu0 0.0
    %1258 = vmatpush1.msra.mxu0 0.0
    %1259 = vmatprep.subr.mxu0 0.0
    %1260 = vmatpush1.msra.mxu0 0.0
    %1261 = vmatprep.subr.mxu0 0.0
    %1262 = vmatpush1.msra.mxu0 0.0
    %1263 = vmatprep.subr.mxu0 0.0
    %1264 = vmatpush1.msra.mxu0 0.0
    %1265 = vmatprep.subr.mxu0 0.0
    %1266 = vmatpush1.msra.mxu0 0.0
    %1267 = vmatprep.subr.mxu0 0.0
    %1268 = vmatpush1.msra.mxu0 0.0
    %1269 = vmatprep.subr.mxu0 0.0
    %1270 = vmatpush1.msra.mxu0 0.0
    %1271 = vmatprep.subr.mxu0 0.0
    %1272 = vmatpush1.msra.mxu0 0.0
    %1273 = vmatprep.subr.mxu0 0.0
    %1274 = vmatpush1.msra.mxu0 0.0
    %1275 = vmatprep.subr.mxu0 0.0
    %1276 = vmatpush1.msra.mxu0 0.0
    %1277 = vmatprep.mubr.f32.mxu0 0.0
    %1278 = vmatmul.mubr.f32.gmra.mrb[0].mxu0 %v1209
    %v1279 = vpop.f32.mrb[0].mxu0
    %v1280 = vadd.f32 %v1206, %v1279
    %v1281 = vpop.f32.mrb[0].mxu0
    %1282 = vdwg.mxu0
    %v1283 = vxor.u32 %v1280, 2147483648
    %v1284 = vmul.f32 %v1283, 1.442695
    %v1285 = vpow.pop %v1284
    %v1286 = vadd.f32 %v1285, 1.0
    %v1287 = vrcp.pop %v1286
    %v1288 = vmul.f32 1.0, %v1287
    %v1289 = vmul.f32 %v1280, %v1288
    %v1290 = vld [vmem:[#allocation16] sm:$0xf]
    %v1291 = vld [vmem:[#allocation17] sm:$0xf]
    %1293 = vset.pattern.permute.xlu0 0
    %1294 = vperm.xlu0 %1293, %v1291
    %v1295 = vpop.permute.xlu0 %1294
    %v1298 = vsel %vm398, %v1290, 0
    %1300 = vmatprep.subr.mxu0 0.0
    %1301 = vmatpush1.msra.mxu0 %v1289
    %1302 = vmatprep.subr.mxu0 0.0
    %1303 = vmatpush1.msra.mxu0 0.0
    %1304 = vmatprep.subr.mxu0 0.0
    %1305 = vmatpush1.msra.mxu0 0.0
    %1306 = vmatprep.subr.mxu0 0.0
    %1307 = vmatpush1.msra.mxu0 0.0
    %1308 = vmatprep.subr.mxu0 0.0
    %1309 = vmatpush1.msra.mxu0 0.0
    %1310 = vmatprep.subr.mxu0 0.0
    %1311 = vmatpush1.msra.mxu0 0.0
    %1312 = vmatprep.subr.mxu0 0.0
    %1313 = vmatpush1.msra.mxu0 0.0
    %1314 = vmatprep.subr.mxu0 0.0
    %1315 = vmatpush1.msra.mxu0 0.0
    %1316 = vmatprep.subr.mxu0 0.0
    %1317 = vmatpush1.msra.mxu0 0.0
    %1318 = vmatprep.subr.mxu0 0.0
    %1319 = vmatpush1.msra.mxu0 0.0
    %1320 = vmatprep.subr.mxu0 0.0
    %1321 = vmatpush1.msra.mxu0 0.0
    %1322 = vmatprep.subr.mxu0 0.0
    %1323 = vmatpush1.msra.mxu0 0.0
    %1324 = vmatprep.subr.mxu0 0.0
    %1325 = vmatpush1.msra.mxu0 0.0
    %1326 = vmatprep.subr.mxu0 0.0
    %1327 = vmatpush1.msra.mxu0 0.0
    %1328 = vmatprep.subr.mxu0 0.0
    %1329 = vmatpush1.msra.mxu0 0.0
    %1330 = vmatprep.subr.mxu0 0.0
    %1331 = vmatpush1.msra.mxu0 0.0
    %1332 = vmatprep.subr.mxu0 0.0
    %1333 = vmatpush1.msra.mxu0 0.0
    %1334 = vmatprep.subr.mxu0 0.0
    %1335 = vmatpush1.msra.mxu0 0.0
    %1336 = vmatprep.subr.mxu0 0.0
    %1337 = vmatpush1.msra.mxu0 0.0
    %1338 = vmatprep.subr.mxu0 0.0
    %1339 = vmatpush1.msra.mxu0 0.0
    %1340 = vmatprep.subr.mxu0 0.0
    %1341 = vmatpush1.msra.mxu0 0.0
    %1342 = vmatprep.subr.mxu0 0.0
    %1343 = vmatpush1.msra.mxu0 0.0
    %1344 = vmatprep.subr.mxu0 0.0
    %1345 = vmatpush1.msra.mxu0 0.0
    %1346 = vmatprep.subr.mxu0 0.0
    %1347 = vmatpush1.msra.mxu0 0.0
    %1348 = vmatprep.subr.mxu0 0.0
    %1349 = vmatpush1.msra.mxu0 0.0
    %1350 = vmatprep.subr.mxu0 0.0
    %1351 = vmatpush1.msra.mxu0 0.0
    %1352 = vmatprep.subr.mxu0 0.0
    %1353 = vmatpush1.msra.mxu0 0.0
    %1354 = vmatprep.subr.mxu0 0.0
    %1355 = vmatpush1.msra.mxu0 0.0
    %1356 = vmatprep.subr.mxu0 0.0
    %1357 = vmatpush1.msra.mxu0 0.0
    %1358 = vmatprep.subr.mxu0 0.0
    %1359 = vmatpush1.msra.mxu0 0.0
    %1360 = vmatprep.subr.mxu0 0.0
    %1361 = vmatpush1.msra.mxu0 0.0
    %1362 = vmatprep.subr.mxu0 0.0
    %1363 = vmatpush1.msra.mxu0 0.0
    %1364 = vmatprep.mubr.f32.mxu0 0.0
    %1365 = vmatmul.mubr.f32.gmra.mrb[0].mxu0 %v1298
    %v1366 = vpop.f32.mrb[0].mxu0
    %v1367 = vadd.f32 %v1295, %v1366
    %v1368 = vpop.f32.mrb[0].mxu0
    %1369 = vdwg.mxu0
    %v1370 = vxor.u32 %v1367, 2147483648
    %v1371 = vmul.f32 %v1370, 1.442695
    %v1372 = vpow.pop %v1371
    %v1373 = vadd.f32 %v1372, 1.0
    %v1374 = vrcp.pop %v1373
    %v1375 = vmul.f32 1.0, %v1374
    %v1376 = vld [vmem:[#allocation19] sm:$0xf]
    %v1377 = vld [vmem:[#allocation20] sm:$0xf]
    %1379 = vset.pattern.permute.xlu0 0
    %1380 = vperm.xlu0 %1379, %v1377
    %v1381 = vpop.permute.xlu0 %1380
    %1384 = vrot.lane.b32.xlu0 %v1289, 112
    %v1385 = vpop.permute.xlu0 %1384
    %v1388 = vsel %vm398, %v1376, 0
    %1390 = vmatprep.subr.mxu0 0.0
    %1391 = vmatpush1.msra.mxu0 %v1385
    %1392 = vmatprep.subr.mxu0 0.0
    %1393 = vmatpush1.msra.mxu0 0.0
    %1394 = vmatprep.subr.mxu0 0.0
    %1395 = vmatpush1.msra.mxu0 0.0
    %1396 = vmatprep.subr.mxu0 0.0
    %1397 = vmatpush1.msra.mxu0 0.0
    %1398 = vmatprep.subr.mxu0 0.0
    %1399 = vmatpush1.msra.mxu0 0.0
    %1400 = vmatprep.subr.mxu0 0.0
    %1401 = vmatpush1.msra.mxu0 0.0
    %1402 = vmatprep.subr.mxu0 0.0
    %1403 = vmatpush1.msra.mxu0 0.0
    %1404 = vmatprep.subr.mxu0 0.0
    %1405 = vmatpush1.msra.mxu0 0.0
    %1406 = vmatprep.subr.mxu0 0.0
    %1407 = vmatpush1.msra.mxu0 0.0
    %1408 = vmatprep.subr.mxu0 0.0
    %1409 = vmatpush1.msra.mxu0 0.0
    %1410 = vmatprep.subr.mxu0 0.0
    %1411 = vmatpush1.msra.mxu0 0.0
    %1412 = vmatprep.subr.mxu0 0.0
    %1413 = vmatpush1.msra.mxu0 0.0
    %1414 = vmatprep.subr.mxu0 0.0
    %1415 = vmatpush1.msra.mxu0 0.0
    %1416 = vmatprep.subr.mxu0 0.0
    %1417 = vmatpush1.msra.mxu0 0.0
    %1418 = vmatprep.subr.mxu0 0.0
    %1419 = vmatpush1.msra.mxu0 0.0
    %1420 = vmatprep.subr.mxu0 0.0
    %1421 = vmatpush1.msra.mxu0 0.0
    %1422 = vmatprep.subr.mxu0 0.0
    %1423 = vmatpush1.msra.mxu0 0.0
    %1424 = vmatprep.subr.mxu0 0.0
    %1425 = vmatpush1.msra.mxu0 0.0
    %1426 = vmatprep.subr.mxu0 0.0
    %1427 = vmatpush1.msra.mxu0 0.0
    %1428 = vmatprep.subr.mxu0 0.0
    %1429 = vmatpush1.msra.mxu0 0.0
    %1430 = vmatprep.subr.mxu0 0.0
    %1431 = vmatpush1.msra.mxu0 0.0
    %1432 = vmatprep.subr.mxu0 0.0
    %1433 = vmatpush1.msra.mxu0 0.0
    %1434 = vmatprep.subr.mxu0 0.0
    %1435 = vmatpush1.msra.mxu0 0.0
    %1436 = vmatprep.subr.mxu0 0.0
    %1437 = vmatpush1.msra.mxu0 0.0
    %1438 = vmatprep.subr.mxu0 0.0
    %1439 = vmatpush1.msra.mxu0 0.0
    %1440 = vmatprep.subr.mxu0 0.0
    %1441 = vmatpush1.msra.mxu0 0.0
    %1442 = vmatprep.subr.mxu0 0.0
    %1443 = vmatpush1.msra.mxu0 0.0
    %1444 = vmatprep.subr.mxu0 0.0
    %1445 = vmatpush1.msra.mxu0 0.0
    %1446 = vmatprep.subr.mxu0 0.0
    %1447 = vmatpush1.msra.mxu0 0.0
    %1448 = vmatprep.subr.mxu0 0.0
    %1449 = vmatpush1.msra.mxu0 0.0
    %1450 = vmatprep.subr.mxu0 0.0
    %1451 = vmatpush1.msra.mxu0 0.0
    %1452 = vmatprep.subr.mxu0 0.0
    %1453 = vmatpush1.msra.mxu0 0.0
    %1454 = vmatprep.mubr.f32.mxu0 0.0
    %1455 = vmatmul.mubr.f32.gmra.mrb[0].mxu0 %v1388
    %v1456 = vpop.f32.mrb[0].mxu0
    %v1457 = vadd.f32 %v1381, %v1456
    %v1458 = vpop.f32.mrb[0].mxu0
    %1459 = vdwg.mxu0
    %v1460 = vxor.u32 %v1457, 2147483648
    %v1461 = vmul.f32 %v1460, 1.442695
    %v1462 = vpow.pop %v1461
    %v1463 = vadd.f32 %v1462, 1.0
    %v1464 = vrcp.pop %v1463
    %v1465 = vmul.f32 1.0, %v1464
    %v1466 = vld [vmem:[#allocation7] sm:$0xff]
    %v1467 = vld [vmem:[#allocation7 + $0x8] sm:$0xff]
    %v1468 = vld [vmem:[#allocation7 + $0x10] sm:$0xff]
    %v1469 = vld [vmem:[#allocation7 + $0x18] sm:$0xff]
    %v1471 = vsel %vm747, %v1375, 0
    %1473 = vmatprep.subr.mxu0 %v1467
    %1474 = vmatpush1.msra.mxu0 %v1466
    %1475 = vmatprep.subr.mxu0 %v1469
    %1476 = vmatpush1.msra.mxu0 %v1468
    %1477 = vmatprep.subr.mxu0 0.0
    %1478 = vmatpush1.msra.mxu0 0.0
    %1479 = vmatprep.subr.mxu0 0.0
    %1480 = vmatpush1.msra.mxu0 0.0
    %1481 = vmatprep.subr.mxu0 0.0
    %1482 = vmatpush1.msra.mxu0 0.0
    %1483 = vmatprep.subr.mxu0 0.0
    %1484 = vmatpush1.msra.mxu0 0.0
    %1485 = vmatprep.subr.mxu0 0.0
    %1486 = vmatpush1.msra.mxu0 0.0
    %1487 = vmatprep.subr.mxu0 0.0
    %1488 = vmatpush1.msra.mxu0 0.0
    %1489 = vmatprep.subr.mxu0 0.0
    %1490 = vmatpush1.msra.mxu0 0.0
    %1491 = vmatprep.subr.mxu0 0.0
    %1492 = vmatpush1.msra.mxu0 0.0
    %1493 = vmatprep.subr.mxu0 0.0
    %1494 = vmatpush1.msra.mxu0 0.0
    %1495 = vmatprep.subr.mxu0 0.0
    %1496 = vmatpush1.msra.mxu0 0.0
    %1497 = vmatprep.subr.mxu0 0.0
    %1498 = vmatpush1.msra.mxu0 0.0
    %1499 = vmatprep.subr.mxu0 0.0
    %1500 = vmatpush1.msra.mxu0 0.0
    %1501 = vmatprep.subr.mxu0 0.0
    %1502 = vmatpush1.msra.mxu0 0.0
    %1503 = vmatprep.subr.mxu0 0.0
    %1504 = vmatpush1.msra.mxu0 0.0
    %1505 = vmatprep.subr.mxu0 0.0
    %1506 = vmatpush1.msra.mxu0 0.0
    %1507 = vmatprep.subr.mxu0 0.0
    %1508 = vmatpush1.msra.mxu0 0.0
    %1509 = vmatprep.subr.mxu0 0.0
    %1510 = vmatpush1.msra.mxu0 0.0
    %1511 = vmatprep.subr.mxu0 0.0
    %1512 = vmatpush1.msra.mxu0 0.0
    %1513 = vmatprep.subr.mxu0 0.0
    %1514 = vmatpush1.msra.mxu0 0.0
    %1515 = vmatprep.subr.mxu0 0.0
    %1516 = vmatpush1.msra.mxu0 0.0
    %1517 = vmatprep.subr.mxu0 0.0
    %1518 = vmatpush1.msra.mxu0 0.0
    %1519 = vmatprep.subr.mxu0 0.0
    %1520 = vmatpush1.msra.mxu0 0.0
    %1521 = vmatprep.subr.mxu0 0.0
    %1522 = vmatpush1.msra.mxu0 0.0
    %1523 = vmatprep.subr.mxu0 0.0
    %1524 = vmatpush1.msra.mxu0 0.0
    %1525 = vmatprep.subr.mxu0 0.0
    %1526 = vmatpush1.msra.mxu0 0.0
    %1527 = vmatprep.subr.mxu0 0.0
    %1528 = vmatpush1.msra.mxu0 0.0
    %1529 = vmatprep.subr.mxu0 0.0
    %1530 = vmatpush1.msra.mxu0 0.0
    %1531 = vmatprep.subr.mxu0 0.0
    %1532 = vmatpush1.msra.mxu0 0.0
    %1533 = vmatprep.subr.mxu0 0.0
    %1534 = vmatpush1.msra.mxu0 0.0
    %1535 = vmatprep.subr.mxu0 0.0
    %1536 = vmatpush1.msra.mxu0 0.0
    %1537 = vmatprep.mubr.f32.mxu0 0.0
    %1538 = vmatmul.mubr.f32.gmra.mrb[0].mxu0 %v1471
    %v1539 = vpop.f32.mrb[0].mxu0
    %v1540 = vadd.f32 0.0, %v1539
    %v1541 = vpop.f32.mrb[0].mxu0
    %v1542 = vadd.f32 0.0, %v1541
    %1543 = vdwg.mxu0
    %v1544 = vld [vmem:[#allocation8] sm:$0xff]
    %v1545 = vld [vmem:[#allocation8 + $0x8] sm:$0xff]
    %v1546 = vld [vmem:[#allocation8 + $0x10] sm:$0xff]
    %v1547 = vld [vmem:[#allocation8 + $0x18] sm:$0xff]
    %v1549 = vsel %vm747, %v1465, 0
    %1551 = vmatprep.subr.mxu0 %v1545
    %1552 = vmatpush1.msra.mxu0 %v1544
    %1553 = vmatprep.subr.mxu0 %v1547
    %1554 = vmatpush1.msra.mxu0 %v1546
    %1555 = vmatprep.subr.mxu0 0.0
    %1556 = vmatpush1.msra.mxu0 0.0
    %1557 = vmatprep.subr.mxu0 0.0
    %1558 = vmatpush1.msra.mxu0 0.0
    %1559 = vmatprep.subr.mxu0 0.0
    %1560 = vmatpush1.msra.mxu0 0.0
    %1561 = vmatprep.subr.mxu0 0.0
    %1562 = vmatpush1.msra.mxu0 0.0
    %1563 = vmatprep.subr.mxu0 0.0
    %1564 = vmatpush1.msra.mxu0 0.0
    %1565 = vmatprep.subr.mxu0 0.0
    %1566 = vmatpush1.msra.mxu0 0.0
    %1567 = vmatprep.subr.mxu0 0.0
    %1568 = vmatpush1.msra.mxu0 0.0
    %1569 = vmatprep.subr.mxu0 0.0
    %1570 = vmatpush1.msra.mxu0 0.0
    %1571 = vmatprep.subr.mxu0 0.0
    %1572 = vmatpush1.msra.mxu0 0.0
    %1573 = vmatprep.subr.mxu0 0.0
    %1574 = vmatpush1.msra.mxu0 0.0
    %1575 = vmatprep.subr.mxu0 0.0
    %1576 = vmatpush1.msra.mxu0 0.0
    %1577 = vmatprep.subr.mxu0 0.0
    %1578 = vmatpush1.msra.mxu0 0.0
    %1579 = vmatprep.subr.mxu0 0.0
    %1580 = vmatpush1.msra.mxu0 0.0
    %1581 = vmatprep.subr.mxu0 0.0
    %1582 = vmatpush1.msra.mxu0 0.0
    %1583 = vmatprep.subr.mxu0 0.0
    %1584 = vmatpush1.msra.mxu0 0.0
    %1585 = vmatprep.subr.mxu0 0.0
    %1586 = vmatpush1.msra.mxu0 0.0
    %1587 = vmatprep.subr.mxu0 0.0
    %1588 = vmatpush1.msra.mxu0 0.0
    %1589 = vmatprep.subr.mxu0 0.0
    %1590 = vmatpush1.msra.mxu0 0.0
    %1591 = vmatprep.subr.mxu0 0.0
    %1592 = vmatpush1.msra.mxu0 0.0
    %1593 = vmatprep.subr.mxu0 0.0
    %1594 = vmatpush1.msra.mxu0 0.0
    %1595 = vmatprep.subr.mxu0 0.0
    %1596 = vmatpush1.msra.mxu0 0.0
    %1597 = vmatprep.subr.mxu0 0.0
    %1598 = vmatpush1.msra.mxu0 0.0
    %1599 = vmatprep.subr.mxu0 0.0
    %1600 = vmatpush1.msra.mxu0 0.0
    %1601 = vmatprep.subr.mxu0 0.0
    %1602 = vmatpush1.msra.mxu0 0.0
    %1603 = vmatprep.subr.mxu0 0.0
    %1604 = vmatpush1.msra.mxu0 0.0
    %1605 = vmatprep.subr.mxu0 0.0
    %1606 = vmatpush1.msra.mxu0 0.0
    %1607 = vmatprep.subr.mxu0 0.0
    %1608 = vmatpush1.msra.mxu0 0.0
    %1609 = vmatprep.subr.mxu0 0.0
    %1610 = vmatpush1.msra.mxu0 0.0
    %1611 = vmatprep.subr.mxu0 0.0
    %1612 = vmatpush1.msra.mxu0 0.0
    %1613 = vmatprep.subr.mxu0 0.0
    %1614 = vmatpush1.msra.mxu0 0.0
    %1615 = vmatprep.mubr.f32.mxu0 0.0
    %1616 = vmatmul.mubr.f32.gmra.mrb[0].mxu0 %v1549
    %v1617 = vpop.f32.mrb[0].mxu0
    %v1618 = vadd.f32 0.0, %v1617
    %v1619 = vpop.f32.mrb[0].mxu0
    %v1620 = vadd.f32 0.0, %v1619
    %1621 = vdwg.mxu0
    %v1622 = vmul.f32 %v1540, %v1618
    %v1623 = vmul.f32 %v1542, %v1620
    %1625 = vset.pattern.permute.xlu0 0
    %1626 = vperm.xlu0 %1625, %v1200
    %v1627 = vpop.permute.xlu0 %1626
    %v1629 = vadd.f32 %v1622, %v1627
    %v1630 = vadd.f32 %v1623, %v1627
    %v1633 = vcombine.low %v1629, %v1630
    %v1635 = vmul.f32 %v916, %v1633
    %s1636 = scalar_lea.vmem [#allocation22], 8
    %1637 = vst [vmem:[%s1636] sm:$0xff] %v1635
    // Predicated region
    $region98: #{tpu_custom_call.1} parent=1 // pred_check
      _
    $region99: #{tpu_custom_call.1} parent=1 // pred_check_branch
      %1639 = sbr.rel (0) target = $region101
    $region100: #{tpu_custom_call.1} parent=1 // pred_region
      %s1641 = ssub.s32 256, 256
      %1642 = vsyncadd [#allocation4], %s1641
      %s1643 = sshll.u32 [#allocation22], 4
      %s1644 = int_to_ptr.vmem [resolvable:$true] %s1643
      %1649 = dma.vmem_to_hbm [thread:$0]  %s1644, 256, %s12, [#allocation4], 128, 128, 8
    $region101: #{tpu_custom_call.1} parent=1 // pred_fallthru
      _
    // Predicated region
    $region102: #{tpu_custom_call.1} parent=1 // pred_check
      _
    $region103: #{tpu_custom_call.1} parent=1 // pred_check_branch
      %1651 = sbr.rel (0) target = $region105
    $region104: #{tpu_custom_call.1} parent=1 // pred_region
      %1652 = dma.done [#allocation4], 256
    $region105: #{tpu_custom_call.1} parent=1 // pred_fallthru
      _
    %1653 = vsyncpa [#allocation3], 1
    %1654 = vsyncpa [#allocation6], 1
    %1655 = vsyncpa [#allocation9], 1
    %1656 = vsyncpa [#allocation12], 1
    %1657 = vsyncpa [#allocation15], 1
    %1658 = vsyncpa [#allocation18], 1
    %1659 = vsyncpa [#allocation21], 1
    %1660 = vsyncpa [#allocation4], 1

// kernel: tpu_custom_call.1
$region0: #{tpu_custom_call.1}
  #allocation0 [shape = 'u32[]', space=smem, size = 0x4, offset = 0x4, fixed_abs, tag = 'smem constant byte address 0x4 - core index']
  #allocation1 [shape = 'u32[144,128]{1,0:T(1,128)}', space=vmem, size = 0x12000, scoped, tag = 'internal scratch']
  %s0 = inlined_call_operand.hbm [shape: f32[2,4,256], index: 0, kind: input, shape index: {}]
  %s1 = inlined_call_operand.hbm [shape: f32[256,33], index: 1, kind: input, shape index: {}]
  %s2 = inlined_call_operand.hbm [shape: f32[16,256], index: 2, kind: input, shape index: {}]
  %s3 = inlined_call_operand.hbm [shape: f32[16,256], index: 3, kind: input, shape index: {}]
  %s4 = inlined_call_operand.hbm [shape: f32[8,4], index: 4, kind: input, shape index: {}]
  %s5 = inlined_call_operand.hbm [shape: f32[4,8], index: 5, kind: input, shape index: {}]
  %s6 = inlined_call_operand.hbm [shape: f32[8,4], index: 6, kind: input, shape index: {}]
  %s7 = inlined_call_operand.hbm [shape: f32[8,1], index: 7, kind: input, shape index: {}]
  %s8 = inlined_call_operand.hbm [shape: f32[4,8], index: 8, kind: input, shape index: {}]
  %s9 = inlined_call_operand.hbm [shape: f32[4,1], index: 9, kind: input, shape index: {}]
  %s10 = inlined_call_operand.hbm [shape: f32[4,8], index: 10, kind: input, shape index: {}]
  %s11 = inlined_call_operand.hbm [shape: f32[4,1], index: 11, kind: input, shape index: {}]
  %s12 = inlined_call_operand.hbm [shape: f32[2,4,256], index: 12, kind: output, shape index: {}]
  %s13 = sld [smem:[#allocation0]]
  $region106: #{tpu_custom_call.1} parent=0
    _
  %s15 = ssub.s32 1, %s13
  %s16 = scalar_select 0, %s15, %s13
  $region1: #{tpu_custom_call.1} parent=0
    #allocation2 [shape = 'u8[8192]{0}', space=vmem, size = 0x2000, scoped, tag = 'input window, operand 0, single buffered']
    #allocation3 [shape = 's32[1]{0}', space=sflag, size = 0x4, scoped, tag = 'scoped memory for tpu_custom_call.1']
    #allocation4 [shape = 's32[1]{0}', space=sflag, size = 0x4, scoped, tag = 'scoped memory for tpu_custom_call.1']
    #allocation5 [shape = 'u8[131072]{0}', space=vmem, size = 0x20000, scoped, tag = 'input window, operand 1, single buffered']
    #allocation6 [shape = 's32[1]{0}', space=sflag, size = 0x4, scoped, tag = 'scoped memory for tpu_custom_call.1']
    #allocation7 [shape = 'u8[16384]{0}', space=vmem, size = 0x4000, scoped, tag = 'input window, operand 2, single buffered']
    #allocation8 [shape = 'u8[16384]{0}', space=vmem, size = 0x4000, scoped, tag = 'input window, operand 3, single buffered']
    #allocation9 [shape = 's32[1]{0}', space=sflag, size = 0x4, scoped, tag = 'scoped memory for tpu_custom_call.1']
    #allocation10 [shape = 'u8[4096]{0}', space=vmem, size = 0x1000, scoped, tag = 'input window, operand 4, single buffered']
    #allocation11 [shape = 'u8[2048]{0}', space=vmem, size = 0x800, scoped, tag = 'input window, operand 5, single buffered']
    #allocation12 [shape = 's32[1]{0}', space=sflag, size = 0x4, scoped, tag = 'scoped memory for tpu_custom_call.1']
    #allocation13 [shape = 'u8[4096]{0}', space=vmem, size = 0x1000, scoped, tag = 'input window, operand 6, single buffered']
    #allocation14 [shape = 'u8[4096]{0}', space=vmem, size = 0x1000, scoped, tag = 'input window, operand 7, single buffered']
    #allocation15 [shape = 's32[1]{0}', space=sflag, size = 0x4, scoped, tag = 'scoped memory for tpu_custom_call.1']
    #allocation16 [shape = 'u8[2048]{0}', space=vmem, size = 0x800, scoped, tag = 'input window, operand 8, single buffered']
    #allocation17 [shape = 'u8[2048]{0}', space=vmem, size = 0x800, scoped, tag = 'input window, operand 9, single buffered']
    #allocation18 [shape = 's32[1]{0}', space=sflag, size = 0x4, scoped, tag = 'scoped memory for tpu_custom_call.1']
    #allocation19 [shape = 'u8[2048]{0}', space=vmem, size = 0x800, scoped, tag = 'input window, operand 10, single buffered']
    #allocation20 [shape = 'u8[2048]{0}', space=vmem, size = 0x800, scoped, tag = 'input window, operand 11, single buffered']
    #allocation21 [shape = 's32[1]{0}', space=sflag, size = 0x4, scoped, tag = 'scoped memory for tpu_custom_call.1']
    #allocation22 [shape = 'u8[8192]{0}', space=vmem, size = 0x2000, scoped, tag = 'output window, operand 0, single buffered']
    %17 = vsyncpa [#allocation3], 0
    %18 = vsyncpa [#allocation6], 0
    %19 = vsyncpa [#allocation9], 0
    %20 = vsyncpa [#allocation12], 0
    %21 = vsyncpa [#allocation15], 0
    %22 = vsyncpa [#allocation18], 0
    %23 = vsyncpa [#allocation21], 0
    %24 = vsyncpa [#allocation4], 0
    // Predicated region
    $region2: #{tpu_custom_call.1} parent=1 // pred_check
      _
    $region3: #{tpu_custom_call.1} parent=1 // pred_check_branch
      %26 = sbr.rel (0) target = $region5
    $region4: #{tpu_custom_call.1} parent=1 // pred_region
      %s28 = ssub.s32 256, 256
      %29 = vsyncadd [#allocation3], %s28
      %s30 = sshll.u32 [#allocation2], 4
      %s31 = int_to_ptr.vmem [resolvable:$true] %s30
      %36 = dma.hbm_to_vmem [thread:$0]  %s0, 256, %s31, [#allocation3], 128, 128, 8
    $region5: #{tpu_custom_call.1} parent=1 // pred_fallthru
      _
    // Predicated region
    $region6: #{tpu_custom_call.1} parent=1 // pred_check
      _
    $region7: #{tpu_custom_call.1} parent=1 // pred_check_branch
      %38 = sbr.rel (0) target = $region9
    $region8: #{tpu_custom_call.1} parent=1 // pred_region
      %s40 = ssub.s32 4096, 4096
      %41 = vsyncadd [#allocation6], %s40
      %s42 = sshll.u32 [#allocation5], 4
      %s43 = int_to_ptr.vmem [resolvable:$true] %s42
      %48 = dma.hbm_to_vmem [thread:$0]  %s1, 4096, %s43, [#allocation6], 128, 128, 8
    $region9: #{tpu_custom_call.1} parent=1 // pred_fallthru
      _
    // Predicated region
    $region10: #{tpu_custom_call.1} parent=1 // pred_check
      _
    $region11: #{tpu_custom_call.1} parent=1 // pred_check_branch
      %50 = sbr.rel (0) target = $region13
    $region12: #{tpu_custom_call.1} parent=1 // pred_region
      %s52 = ssub.s32 512, 512
      %53 = vsyncadd [#allocation6], %s52
      %s54 = sshll.u32 [#allocation7], 4
      %s55 = int_to_ptr.vmem [resolvable:$true] %s54
      %60 = dma.hbm_to_vmem [thread:$0]  %s2, 512, %s55, [#allocation6], 256, 256, 16
    $region13: #{tpu_custom_call.1} parent=1 // pred_fallthru
      _
    // Predicated region
    $region14: #{tpu_custom_call.1} parent=1 // pred_check
      _
    $region15: #{tpu_custom_call.1} parent=1 // pred_check_branch
      %62 = sbr.rel (0) target = $region17
    $region16: #{tpu_custom_call.1} parent=1 // pred_region
      %s64 = ssub.s32 512, 512
      %65 = vsyncadd [#allocation9], %s64
      %s66 = sshll.u32 [#allocation8], 4
      %s67 = int_to_ptr.vmem [resolvable:$true] %s66
      %72 = dma.hbm_to_vmem [thread:$0]  %s3, 512, %s67, [#allocation9], 256, 256, 16
    $region17: #{tpu_custom_call.1} parent=1 // pred_fallthru
      _
    // Predicated region
    $region18: #{tpu_custom_call.1} parent=1 // pred_check
      _
    $region19: #{tpu_custom_call.1} parent=1 // pred_check_branch
      %74 = sbr.rel (0) target = $region21
    $region20: #{tpu_custom_call.1} parent=1 // pred_region
      %s76 = ssub.s32 128, 128
      %77 = vsyncadd [#allocation9], %s76
      %s79 = sshll.u32 [#allocation10], 4
      %s80 = int_to_ptr.vmem [resolvable:$true] %s79
      %82 = dma.hbm_to_vmem [thread:$0]  %s4, 128, %s80, [#allocation9]
    $region21: #{tpu_custom_call.1} parent=1 // pred_fallthru
      _
    // Predicated region
    $region22: #{tpu_custom_call.1} parent=1 // pred_check
      _
    $region23: #{tpu_custom_call.1} parent=1 // pred_check_branch
      %84 = sbr.rel (0) target = $region25
    $region24: #{tpu_custom_call.1} parent=1 // pred_region
      %s86 = ssub.s32 64, 64
      %87 = vsyncadd [#allocation12], %s86
      %s89 = sshll.u32 [#allocation11], 4
      %s90 = int_to_ptr.vmem [resolvable:$true] %s89
      %92 = dma.hbm_to_vmem [thread:$0]  %s5, 64, %s90, [#allocation12]
    $region25: #{tpu_custom_call.1} parent=1 // pred_fallthru
      _
    // Predicated region
    $region26: #{tpu_custom_call.1} parent=1 // pred_check
      _
    $region27: #{tpu_custom_call.1} parent=1 // pred_check_branch
      %94 = sbr.rel (0) target = $region29
    $region28: #{tpu_custom_call.1} parent=1 // pred_region
      %s96 = ssub.s32 128, 128
      %97 = vsyncadd [#allocation12], %s96
      %s99 = sshll.u32 [#allocation13], 4
      %s100 = int_to_ptr.vmem [resolvable:$true] %s99
      %102 = dma.hbm_to_vmem [thread:$0]  %s6, 128, %s100, [#allocation12]
    $region29: #{tpu_custom_call.1} parent=1 // pred_fallthru
      _
    // Predicated region
    $region30: #{tpu_custom_call.1} parent=1 // pred_check
      _
    $region31: #{tpu_custom_call.1} parent=1 // pred_check_branch
      %104 = sbr.rel (0) target = $region33
    $region32: #{tpu_custom_call.1} parent=1 // pred_region
      %s106 = ssub.s32 128, 128
      %107 = vsyncadd [#allocation15], %s106
      %s109 = sshll.u32 [#allocation14], 4
      %s110 = int_to_ptr.vmem [resolvable:$true] %s109
      %112 = dma.hbm_to_vmem [thread:$0]  %s7, 128, %s110, [#allocation15]
    $region33: #{tpu_custom_call.1} parent=1 // pred_fallthru
      _
    // Predicated region
    $region34: #{tpu_custom_call.1} parent=1 // pred_check
      _
    $region35: #{tpu_custom_call.1} parent=1 // pred_check_branch
      %114 = sbr.rel (0) target = $region37
    $region36: #{tpu_custom_call.1} parent=1 // pred_region
      %s116 = ssub.s32 64, 64
      %117 = vsyncadd [#allocation15], %s116
      %s119 = sshll.u32 [#allocation16], 4
      %s120 = int_to_ptr.vmem [resolvable:$true] %s119
      %122 = dma.hbm_to_vmem [thread:$0]  %s8, 64, %s120, [#allocation15]
    $region37: #{tpu_custom_call.1} parent=1 // pred_fallthru
      _
    // Predicated region
    $region38: #{tpu_custom_call.1} parent=1 // pred_check
      _
    $region39: #{tpu_custom_call.1} parent=1 // pred_check_branch
      %124 = sbr.rel (0) target = $region41
    $region40: #{tpu_custom_call.1} parent=1 // pred_region
      %s126 = ssub.s32 64, 64
      %127 = vsyncadd [#allocation18], %s126
      %s129 = sshll.u32 [#allocation17], 4
      %s130 = int_to_ptr.vmem [resolvable:$true] %s129
      %132 = dma.hbm_to_vmem [thread:$0]  %s9, 64, %s130, [#allocation18]
    $region41: #{tpu_custom_call.1} parent=1 // pred_fallthru
      _
    // Predicated region
    $region42: #{tpu_custom_call.1} parent=1 // pred_check
      _
    $region43: #{tpu_custom_call.1} parent=1 // pred_check_branch
      %134 = sbr.rel (0) target = $region45
    $region44: #{tpu_custom_call.1} parent=1 // pred_region
      %s136 = ssub.s32 64, 64
      %137 = vsyncadd [#allocation18], %s136
      %s139 = sshll.u32 [#allocation19], 4
      %s140 = int_to_ptr.vmem [resolvable:$true] %s139
      %142 = dma.hbm_to_vmem [thread:$0]  %s10, 64, %s140, [#allocation18]
    $region45: #{tpu_custom_call.1} parent=1 // pred_fallthru
      _
    // Predicated region
    $region46: #{tpu_custom_call.1} parent=1 // pred_check
      _
    $region47: #{tpu_custom_call.1} parent=1 // pred_check_branch
      %144 = sbr.rel (0) target = $region49
    $region48: #{tpu_custom_call.1} parent=1 // pred_region
      %s146 = ssub.s32 64, 64
      %147 = vsyncadd [#allocation21], %s146
      %s149 = sshll.u32 [#allocation20], 4
      %s150 = int_to_ptr.vmem [resolvable:$true] %s149
      %152 = dma.hbm_to_vmem [thread:$0]  %s11, 64, %s150, [#allocation21]
    $region49: #{tpu_custom_call.1} parent=1 // pred_fallthru
      _
    // Predicated region
    $region50: #{tpu_custom_call.1} parent=1 // pred_check
      _
    $region51: #{tpu_custom_call.1} parent=1 // pred_check_branch
      %154 = sbr.rel (0) target = $region53
    $region52: #{tpu_custom_call.1} parent=1 // pred_region
      %155 = dma.done [#allocation3], 256
    $region53: #{tpu_custom_call.1} parent=1 // pred_fallthru
      _
    // Predicated region
    $region54: #{tpu_custom_call.1} parent=1 // pred_check
      _
    $region55: #{tpu_custom_call.1} parent=1 // pred_check_branch
      %157 = sbr.rel (0) target = $region57
    $region56: #{tpu_custom_call.1} parent=1 // pred_region
      %158 = dma.done [#allocation6], 4096
    $region57: #{tpu_custom_call.1} parent=1 // pred_fallthru
      _
    // Predicated region
    $region58: #{tpu_custom_call.1} parent=1 // pred_check
      _
    $region59: #{tpu_custom_call.1} parent=1 // pred_check_branch
      %160 = sbr.rel (0) target = $region61
    $region60: #{tpu_custom_call.1} parent=1 // pred_region
      %161 = dma.done [#allocation6], 512
    $region61: #{tpu_custom_call.1} parent=1 // pred_fallthru
      _
    // Predicated region
    $region62: #{tpu_custom_call.1} parent=1 // pred_check
      _
    $region63: #{tpu_custom_call.1} parent=1 // pred_check_branch
      %163 = sbr.rel (0) target = $region65
    $region64: #{tpu_custom_call.1} parent=1 // pred_region
      %164 = dma.done [#allocation9], 512
    $region65: #{tpu_custom_call.1} parent=1 // pred_fallthru
      _
    // Predicated region
    $region66: #{tpu_custom_call.1} parent=1 // pred_check
      _
    $region67: #{tpu_custom_call.1} parent=1 // pred_check_branch
      %166 = sbr.rel (0) target = $region69
    $region68: #{tpu_custom_call.1} parent=1 // pred_region
      %167 = dma.done [#allocation9], 128
    $region69: #{tpu_custom_call.1} parent=1 // pred_fallthru
      _
    // Predicated region
    $region70: #{tpu_custom_call.1} parent=1 // pred_check
      _
    $region71: #{tpu_custom_call.1} parent=1 // pred_check_branch
      %169 = sbr.rel (0) target = $region73
    $region72: #{tpu_custom_call.1} parent=1 // pred_region
      %170 = dma.done [#allocation12], 64
    $region73: #{tpu_custom_call.1} parent=1 // pred_fallthru
      _
    // Predicated region
    $region74: #{tpu_custom_call.1} parent=1 // pred_check
      _
    $region75: #{tpu_custom_call.1} parent=1 // pred_check_branch
      %172 = sbr.rel (0) target = $region77
    $region76: #{tpu_custom_call.1} parent=1 // pred_region
      %173 = dma.done [#allocation12], 128
    $region77: #{tpu_custom_call.1} parent=1 // pred_fallthru
      _
    // Predicated region
    $region78: #{tpu_custom_call.1} parent=1 // pred_check
      _
    $region79: #{tpu_custom_call.1} parent=1 // pred_check_branch
      %175 = sbr.rel (0) target = $region81
    $region80: #{tpu_custom_call.1} parent=1 // pred_region
      %176 = dma.done [#allocation15], 128
    $region81: #{tpu_custom_call.1} parent=1 // pred_fallthru
      _
    // Predicated region
    $region82: #{tpu_custom_call.1} parent=1 // pred_check
      _
    $region83: #{tpu_custom_call.1} parent=1 // pred_check_branch
      %178 = sbr.rel (0) target = $region85
    $region84: #{tpu_custom_call.1} parent=1 // pred_region
      %179 = dma.done [#allocation15], 64
    $region85: #{tpu_custom_call.1} parent=1 // pred_fallthru
      _
    // Predicated region
    $region86: #{tpu_custom_call.1} parent=1 // pred_check
      _
    $region87: #{tpu_custom_call.1} parent=1 // pred_check_branch
      %181 = sbr.rel (0) target = $region89
    $region88: #{tpu_custom_call.1} parent=1 // pred_region
      %182 = dma.done [#allocation18], 64
    $region89: #{tpu_custom_call.1} parent=1 // pred_fallthru
      _
    // Predicated region
    $region90: #{tpu_custom_call.1} parent=1 // pred_check
      _
    $region91: #{tpu_custom_call.1} parent=1 // pred_check_branch
      %184 = sbr.rel (0) target = $region93
    $region92: #{tpu_custom_call.1} parent=1 // pred_region
      %185 = dma.done [#allocation18], 64
    $region93: #{tpu_custom_call.1} parent=1 // pred_fallthru
      _
    // Predicated region
    $region94: #{tpu_custom_call.1} parent=1 // pred_check
      _
    $region95: #{tpu_custom_call.1} parent=1 // pred_check_branch
      %187 = sbr.rel (0) target = $region97
    $region96: #{tpu_custom_call.1} parent=1 // pred_region
      %188 = dma.done [#allocation21], 64
    $region97: #{tpu_custom_call.1} parent=1 // pred_fallthru
      _
    %v189 = vld [vmem:[#allocation2] sm:$0xff]
    %v190 = vld [vmem:[#allocation5] sm:$0xff]
    %v191 = vld [vmem:[#allocation5 + $0x8] sm:$0xff]
    %v192 = vld [vmem:[#allocation5 + $0x10] sm:$0xff]
    %v193 = vld [vmem:[#allocation5 + $0x18] sm:$0xff]
    %v194 = vld [vmem:[#allocation5 + $0x20] sm:$0xff]
    %v195 = vld [vmem:[#allocation5 + $0x28] sm:$0xff]
    %v196 = vld [vmem:[#allocation5 + $0x30] sm:$0xff]
    %v197 = vld [vmem:[#allocation5 + $0x38] sm:$0xff]
    %v198 = vld [vmem:[#allocation5 + $0x40] sm:$0xff]
    %v199 = vld [vmem:[#allocation5 + $0x48] sm:$0xff]
    %v200 = vld [vmem:[#allocation5 + $0x50] sm:$0xff]
    %v201 = vld [vmem:[#allocation5 + $0x58] sm:$0xff]
    %v202 = vld [vmem:[#allocation5 + $0x60] sm:$0xff]
    %v203 = vld [vmem:[#allocation5 + $0x68] sm:$0xff]
    %v204 = vld [vmem:[#allocation5 + $0x70] sm:$0xff]
    %v205 = vld [vmem:[#allocation5 + $0x78] sm:$0xff]
    %v206 = vld [vmem:[#allocation5 + $0x80] sm:$0xff]
    %v207 = vld [vmem:[#allocation5 + $0x88] sm:$0xff]
    %v208 = vld [vmem:[#allocation5 + $0x90] sm:$0xff]
    %v209 = vld [vmem:[#allocation5 + $0x98] sm:$0xff]
    %v210 = vld [vmem:[#allocation5 + $0xa0] sm:$0xff]
    %v211 = vld [vmem:[#allocation5 + $0xa8] sm:$0xff]
    %v212 = vld [vmem:[#allocation5 + $0xb0] sm:$0xff]
    %v213 = vld [vmem:[#allocation5 + $0xb8] sm:$0xff]
    %v214 = vld [vmem:[#allocation5 + $0xc0] sm:$0xff]
    %v215 = vld [vmem:[#allocation5 + $0xc8] sm:$0xff]
    %v216 = vld [vmem:[#allocation5 + $0xd0] sm:$0xff]
    %v217 = vld [vmem:[#allocation5 + $0xd8] sm:$0xff]
    %v218 = vld [vmem:[#allocation5 + $0xe0] sm:$0xff]
    %v219 = vld [vmem:[#allocation5 + $0xe8] sm:$0xff]
    %v220 = vld [vmem:[#allocation5 + $0xf0] sm:$0xff]
    %v221 = vld [vmem:[#allocation5 + $0xf8] sm:$0xff]
    %v223 = vcombine.high %v189, %v189
    %225 = vmatprep.subr.mxu0 0.0
    %226 = vmatpush1.msra.mxu0 %v190
    %227 = vmatprep.subr.mxu0 0.0
    %228 = vmatpush1.msra.mxu0 %v191
    %229 = vmatprep.subr.mxu0 0.0
    %230 = vmatpush1.msra.mxu0 %v192
    %231 = vmatprep.subr.mxu0 0.0
    %232 = vmatpush1.msra.mxu0 %v193
    %233 = vmatprep.subr.mxu0 0.0
    %234 = vmatpush1.msra.mxu0 %v194
    %235 = vmatprep.subr.mxu0 0.0
    %236 = vmatpush1.msra.mxu0 %v195
    %237 = vmatprep.subr.mxu0 0.0
    %238 = vmatpush1.msra.mxu0 %v196
    %239 = vmatprep.subr.mxu0 0.0
    %240 = vmatpush1.msra.mxu0 %v197
    %241 = vmatprep.subr.mxu0 0.0
    %242 = vmatpush1.msra.mxu0 %v198
    %243 = vmatprep.subr.mxu0 0.0
    %244 = vmatpush1.msra.mxu0 %v199
    %245 = vmatprep.subr.mxu0 0.0
    %246 = vmatpush1.msra.mxu0 %v200
    %247 = vmatprep.subr.mxu0 0.0
    %248 = vmatpush1.msra.mxu0 %v201
    %249 = vmatprep.subr.mxu0 0.0
    %250 = vmatpush1.msra.mxu0 %v202
    %251 = vmatprep.subr.mxu0 0.0
    %252 = vmatpush1.msra.mxu0 %v203
    %253 = vmatprep.subr.mxu0 0.0
    %254 = vmatpush1.msra.mxu0 %v204
    %255 = vmatprep.subr.mxu0 0.0
    %256 = vmatpush1.msra.mxu0 %v205
    %257 = vmatprep.subr.mxu0 0.0
    %258 = vmatpush1.msra.mxu0 %v206
    %259 = vmatprep.subr.mxu0 0.0
    %260 = vmatpush1.msra.mxu0 %v207
    %261 = vmatprep.subr.mxu0 0.0
    %262 = vmatpush1.msra.mxu0 %v208
    %263 = vmatprep.subr.mxu0 0.0
    %264 = vmatpush1.msra.mxu0 %v209
    %265 = vmatprep.subr.mxu0 0.0
    %266 = vmatpush1.msra.mxu0 %v210
    %267 = vmatprep.subr.mxu0 0.0
    %268 = vmatpush1.msra.mxu0 %v211
    %269 = vmatprep.subr.mxu0 0.0
    %270 = vmatpush1.msra.mxu0 %v212
    %271 = vmatprep.subr.mxu0 0.0
    %272 = vmatpush1.msra.mxu0 %v213
    %273 = vmatprep.subr.mxu0 0.0
    %274 = vmatpush1.msra.mxu0 %v214
    %275 = vmatprep.subr.mxu0 0.0
    %276 = vmatpush1.msra.mxu0 %v215
    %277 = vmatprep.subr.mxu0 0.0
    %278 = vmatpush1.msra.mxu0 %v216
    %279 = vmatprep.subr.mxu0 0.0
    %280 = vmatpush1.msra.mxu0 %v217
    %281 = vmatprep.subr.mxu0 0.0
    %282 = vmatpush1.msra.mxu0 %v218
    %283 = vmatprep.subr.mxu0 0.0
    %284 = vmatpush1.msra.mxu0 %v219
    %285 = vmatprep.subr.mxu0 0.0
    %286 = vmatpush1.msra.mxu0 %v220
    %287 = vmatprep.subr.mxu0 0.0
    %288 = vmatpush1.msra.mxu0 %v221
    %289 = vmatprep.mubr.f32.mxu0 %v223
    %290 = vmatmul.mubr.f32.gmra.mrb[0].mxu0 %v189
    %v291 = vpop.f32.mrb[0].mxu0
    %v292 = vadd.f32 0.0, %v291
    %v293 = vpop.f32.mrb[0].mxu0
    %294 = vdwg.mxu0
    %vm295 = vcmask 1043456
    %v296 = vsel %vm295, %v189, -inf
    %v297 = vsel %vm295, %v223, -inf
    %v298 = vmax.f32 %v296, %v297
    %299 = vmax.xlane.f32.xlu0 %v298
    %v300 = vpop.xlane.xlu0 %299
    %302 = vrot.lane.b32.xlu0 %v292, 96
    %v303 = vpop.permute.xlu0 %302
    %vm305 = vcmask 7168
    %v306 = vsel %vm305, %v303, %v300
    %v307 = vld [vmem:[#allocation10] sm:$0xff]
    %vm308 = vcmask 31744
    %v310 = vsel %vm308, %v307, 0
    %v313 = vsel %vm295, %v306, 0
    %315 = vmatprep.subr.mxu0 0.0
    %316 = vmatpush1.msra.mxu0 %v313
    %317 = vmatprep.subr.mxu0 0.0
    %318 = vmatpush1.msra.mxu0 0.0
    %319 = vmatprep.subr.mxu0 0.0
    %320 = vmatpush1.msra.mxu0 0.0
    %321 = vmatprep.subr.mxu0 0.0
    %322 = vmatpush1.msra.mxu0 0.0
    %323 = vmatprep.subr.mxu0 0.0
    %324 = vmatpush1.msra.mxu0 0.0
    %325 = vmatprep.subr.mxu0 0.0
    %326 = vmatpush1.msra.mxu0 0.0
    %327 = vmatprep.subr.mxu0 0.0
    %328 = vmatpush1.msra.mxu0 0.0
    %329 = vmatprep.subr.mxu0 0.0
    %330 = vmatpush1.msra.mxu0 0.0
    %331 = vmatprep.subr.mxu0 0.0
    %332 = vmatpush1.msra.mxu0 0.0
    %333 = vmatprep.subr.mxu0 0.0
    %334 = vmatpush1.msra.mxu0 0.0
    %335 = vmatprep.subr.mxu0 0.0
    %336 = vmatpush1.msra.mxu0 0.0
    %337 = vmatprep.subr.mxu0 0.0
    %338 = vmatpush1.msra.mxu0 0.0
    %339 = vmatprep.subr.mxu0 0.0
    %340 = vmatpush1.msra.mxu0 0.0
    %341 = vmatprep.subr.mxu0 0.0
    %342 = vmatpush1.msra.mxu0 0.0
    %343 = vmatprep.subr.mxu0 0.0
    %344 = vmatpush1.msra.mxu0 0.0
    %345 = vmatprep.subr.mxu0 0.0
    %346 = vmatpush1.msra.mxu0 0.0
    %347 = vmatprep.subr.mxu0 0.0
    %348 = vmatpush1.msra.mxu0 0.0
    %349 = vmatprep.subr.mxu0 0.0
    %350 = vmatpush1.msra.mxu0 0.0
    %351 = vmatprep.subr.mxu0 0.0
    %352 = vmatpush1.msra.mxu0 0.0
    %353 = vmatprep.subr.mxu0 0.0
    %354 = vmatpush1.msra.mxu0 0.0
    %355 = vmatprep.subr.mxu0 0.0
    %356 = vmatpush1.msra.mxu0 0.0
    %357 = vmatprep.subr.mxu0 0.0
    %358 = vmatpush1.msra.mxu0 0.0
    %359 = vmatprep.subr.mxu0 0.0
    %360 = vmatpush1.msra.mxu0 0.0
    %361 = vmatprep.subr.mxu0 0.0
    %362 = vmatpush1.msra.mxu0 0.0
    %363 = vmatprep.subr.mxu0 0.0
    %364 = vmatpush1.msra.mxu0 0.0
    %365 = vmatprep.subr.mxu0 0.0
    %366 = vmatpush1.msra.mxu0 0.0
    %367 = vmatprep.subr.mxu0 0.0
    %368 = vmatpush1.msra.mxu0 0.0
    %369 = vmatprep.subr.mxu0 0.0
    %370 = vmatpush1.msra.mxu0 0.0
    %371 = vmatprep.subr.mxu0 0.0
    %372 = vmatpush1.msra.mxu0 0.0
    %373 = vmatprep.subr.mxu0 0.0
    %374 = vmatpush1.msra.mxu0 0.0
    %375 = vmatprep.subr.mxu0 0.0
    %376 = vmatpush1.msra.mxu0 0.0
    %377 = vmatprep.subr.mxu0 0.0
    %378 = vmatpush1.msra.mxu0 0.0
    %379 = vmatprep.mubr.f32.mxu0 0.0
    %380 = vmatmul.mubr.f32.gmra.mrb[0].mxu0 %v310
    %v381 = vpop.f32.mrb[0].mxu0
    %v382 = vadd.f32 0.0, %v381
    %v383 = vpop.f32.mrb[0].mxu0
    %384 = vdwg.mxu0
    %v385 = vxor.u32 %v382, 2147483648
    %v386 = vmul.f32 %v385, 1.442695
    %v387 = vpow.pop %v386
    %v388 = vadd.f32 %v387, 1.0
    %v389 = vrcp.pop %v388
    %v390 = vmul.f32 1.0, %v389
    %v391 = vmul.f32 %v382, %v390
    %v392 = vld [vmem:[#allocation11] sm:$0xf]
    %394 = vrot.lane.b32.xlu0 %v391, 127
    %v395 = vpop.permute.xlu0 %394
    %v397 = vadd.f32 %v391, %v395
    %vm398 = vcmask 64512
    %v400 = vsel %vm398, %v392, 0
    %402 = vmatprep.subr.mxu0 0.0
    %403 = vmatpush1.msra.mxu0 %v397
    %404 = vmatprep.subr.mxu0 0.0
    %405 = vmatpush1.msra.mxu0 0.0
    %406 = vmatprep.subr.mxu0 0.0
    %407 = vmatpush1.msra.mxu0 0.0
    %408 = vmatprep.subr.mxu0 0.0
    %409 = vmatpush1.msra.mxu0 0.0
    %410 = vmatprep.subr.mxu0 0.0
    %411 = vmatpush1.msra.mxu0 0.0
    %412 = vmatprep.subr.mxu0 0.0
    %413 = vmatpush1.msra.mxu0 0.0
    %414 = vmatprep.subr.mxu0 0.0
    %415 = vmatpush1.msra.mxu0 0.0
    %416 = vmatprep.subr.mxu0 0.0
    %417 = vmatpush1.msra.mxu0 0.0
    %418 = vmatprep.subr.mxu0 0.0
    %419 = vmatpush1.msra.mxu0 0.0
    %420 = vmatprep.subr.mxu0 0.0
    %421 = vmatpush1.msra.mxu0 0.0
    %422 = vmatprep.subr.mxu0 0.0
    %423 = vmatpush1.msra.mxu0 0.0
    %424 = vmatprep.subr.mxu0 0.0
    %425 = vmatpush1.msra.mxu0 0.0
    %426 = vmatprep.subr.mxu0 0.0
    %427 = vmatpush1.msra.mxu0 0.0
    %428 = vmatprep.subr.mxu0 0.0
    %429 = vmatpush1.msra.mxu0 0.0
    %430 = vmatprep.subr.mxu0 0.0
    %431 = vmatpush1.msra.mxu0 0.0
    %432 = vmatprep.subr.mxu0 0.0
    %433 = vmatpush1.msra.mxu0 0.0
    %434 = vmatprep.subr.mxu0 0.0
    %435 = vmatpush1.msra.mxu0 0.0
    %436 = vmatprep.subr.mxu0 0.0
    %437 = vmatpush1.msra.mxu0 0.0
    %438 = vmatprep.subr.mxu0 0.0
    %439 = vmatpush1.msra.mxu0 0.0
    %440 = vmatprep.subr.mxu0 0.0
    %441 = vmatpush1.msra.mxu0 0.0
    %442 = vmatprep.subr.mxu0 0.0
    %443 = vmatpush1.msra.mxu0 0.0
    %444 = vmatprep.subr.mxu0 0.0
    %445 = vmatpush1.msra.mxu0 0.0
    %446 = vmatprep.subr.mxu0 0.0
    %447 = vmatpush1.msra.mxu0 0.0
    %448 = vmatprep.subr.mxu0 0.0
    %449 = vmatpush1.msra.mxu0 0.0
    %450 = vmatprep.subr.mxu0 0.0
    %451 = vmatpush1.msra.mxu0 0.0
    %452 = vmatprep.subr.mxu0 0.0
    %453 = vmatpush1.msra.mxu0 0.0
    %454 = vmatprep.subr.mxu0 0.0
    %455 = vmatpush1.msra.mxu0 0.0
    %456 = vmatprep.subr.mxu0 0.0
    %457 = vmatpush1.msra.mxu0 0.0
    %458 = vmatprep.subr.mxu0 0.0
    %459 = vmatpush1.msra.mxu0 0.0
    %460 = vmatprep.subr.mxu0 0.0
    %461 = vmatpush1.msra.mxu0 0.0
    %462 = vmatprep.subr.mxu0 0.0
    %463 = vmatpush1.msra.mxu0 0.0
    %464 = vmatprep.subr.mxu0 0.0
    %465 = vmatpush1.msra.mxu0 0.0
    %466 = vmatprep.mubr.f32.mxu0 0.0
    %467 = vmatmul.mubr.f32.gmra.mrb[0].mxu0 %v400
    %v468 = vpop.f32.mrb[0].mxu0
    %v469 = vadd.f32 0.0, %v468
    %v470 = vpop.f32.mrb[0].mxu0
    %471 = vdwg.mxu0
    %v472 = vxor.u32 %v469, 2147483648
    %v473 = vmul.f32 %v472, 1.442695
    %v474 = vpow.pop %v473
    %v475 = vadd.f32 %v474, 1.0
    %v476 = vrcp.pop %v475
    %v477 = vmul.f32 1.0, %v476
    %v478 = vld [vmem:[#allocation13] sm:$0xff]
    %v479 = vld [vmem:[#allocation14] sm:$0xff]
    %481 = vset.pattern.permute.xlu0 0
    %482 = vperm.xlu0 %481, %v479
    %v483 = vpop.permute.xlu0 %482
    %v486 = vsel %vm308, %v478, 0
    %v488 = vsel %vm295, %v292, 0
    %490 = vmatprep.subr.mxu0 0.0
    %491 = vmatpush1.msra.mxu0 %v488
    %492 = vmatprep.subr.mxu0 0.0
    %493 = vmatpush1.msra.mxu0 0.0
    %494 = vmatprep.subr.mxu0 0.0
    %495 = vmatpush1.msra.mxu0 0.0
    %496 = vmatprep.subr.mxu0 0.0
    %497 = vmatpush1.msra.mxu0 0.0
    %498 = vmatprep.subr.mxu0 0.0
    %499 = vmatpush1.msra.mxu0 0.0
    %500 = vmatprep.subr.mxu0 0.0
    %501 = vmatpush1.msra.mxu0 0.0
    %502 = vmatprep.subr.mxu0 0.0
    %503 = vmatpush1.msra.mxu0 0.0
    %504 = vmatprep.subr.mxu0 0.0
    %505 = vmatpush1.msra.mxu0 0.0
    %506 = vmatprep.subr.mxu0 0.0
    %507 = vmatpush1.msra.mxu0 0.0
    %508 = vmatprep.subr.mxu0 0.0
    %509 = vmatpush1.msra.mxu0 0.0
    %510 = vmatprep.subr.mxu0 0.0
    %511 = vmatpush1.msra.mxu0 0.0
    %512 = vmatprep.subr.mxu0 0.0
    %513 = vmatpush1.msra.mxu0 0.0
    %514 = vmatprep.subr.mxu0 0.0
    %515 = vmatpush1.msra.mxu0 0.0
    %516 = vmatprep.subr.mxu0 0.0
    %517 = vmatpush1.msra.mxu0 0.0
    %518 = vmatprep.subr.mxu0 0.0
    %519 = vmatpush1.msra.mxu0 0.0
    %520 = vmatprep.subr.mxu0 0.0
    %521 = vmatpush1.msra.mxu0 0.0
    %522 = vmatprep.subr.mxu0 0.0
    %523 = vmatpush1.msra.mxu0 0.0
    %524 = vmatprep.subr.mxu0 0.0
    %525 = vmatpush1.msra.mxu0 0.0
    %526 = vmatprep.subr.mxu0 0.0
    %527 = vmatpush1.msra.mxu0 0.0
    %528 = vmatprep.subr.mxu0 0.0
    %529 = vmatpush1.msra.mxu0 0.0
    %530 = vmatprep.subr.mxu0 0.0
    %531 = vmatpush1.msra.mxu0 0.0
    %532 = vmatprep.subr.mxu0 0.0
    %533 = vmatpush1.msra.mxu0 0.0
    %534 = vmatprep.subr.mxu0 0.0
    %535 = vmatpush1.msra.mxu0 0.0
    %536 = vmatprep.subr.mxu0 0.0
    %537 = vmatpush1.msra.mxu0 0.0
    %538 = vmatprep.subr.mxu0 0.0
    %539 = vmatpush1.msra.mxu0 0.0
    %540 = vmatprep.subr.mxu0 0.0
    %541 = vmatpush1.msra.mxu0 0.0
    %542 = vmatprep.subr.mxu0 0.0
    %543 = vmatpush1.msra.mxu0 0.0
    %544 = vmatprep.subr.mxu0 0.0
    %545 = vmatpush1.msra.mxu0 0.0
    %546 = vmatprep.subr.mxu0 0.0
    %547 = vmatpush1.msra.mxu0 0.0
    %548 = vmatprep.subr.mxu0 0.0
    %549 = vmatpush1.msra.mxu0 0.0
    %550 = vmatprep.subr.mxu0 0.0
    %551 = vmatpush1.msra.mxu0 0.0
    %552 = vmatprep.subr.mxu0 0.0
    %553 = vmatpush1.msra.mxu0 0.0
    %554 = vmatprep.mubr.f32.mxu0 0.0
    %555 = vmatmul.mubr.f32.gmra.mrb[0].mxu0 %v486
    %v556 = vpop.f32.mrb[0].mxu0
    %v557 = vadd.f32 %v483, %v556
    %v558 = vpop.f32.mrb[0].mxu0
    %559 = vdwg.mxu0
    %v560 = vxor.u32 %v557, 2147483648
    %v561 = vmul.f32 %v560, 1.442695
    %v562 = vpow.pop %v561
    %v563 = vadd.f32 %v562, 1.0
    %v564 = vrcp.pop %v563
    %v565 = vmul.f32 1.0, %v564
    %v566 = vmul.f32 %v557, %v565
    %v567 = vld [vmem:[#allocation16] sm:$0xf]
    %v568 = vld [vmem:[#allocation17] sm:$0xf]
    %570 = vset.pattern.permute.xlu0 0
    %571 = vperm.xlu0 %570, %v568
    %v572 = vpop.permute.xlu0 %571
    %v575 = vsel %vm398, %v567, 0
    %577 = vmatprep.subr.mxu0 0.0
    %578 = vmatpush1.msra.mxu0 %v566
    %579 = vmatprep.subr.mxu0 0.0
    %580 = vmatpush1.msra.mxu0 0.0
    %581 = vmatprep.subr.mxu0 0.0
    %582 = vmatpush1.msra.mxu0 0.0
    %583 = vmatprep.subr.mxu0 0.0
    %584 = vmatpush1.msra.mxu0 0.0
    %585 = vmatprep.subr.mxu0 0.0
    %586 = vmatpush1.msra.mxu0 0.0
    %587 = vmatprep.subr.mxu0 0.0
    %588 = vmatpush1.msra.mxu0 0.0
    %589 = vmatprep.subr.mxu0 0.0
    %590 = vmatpush1.msra.mxu0 0.0
    %591 = vmatprep.subr.mxu0 0.0
    %592 = vmatpush1.msra.mxu0 0.0
    %593 = vmatprep.subr.mxu0 0.0
    %594 = vmatpush1.msra.mxu0 0.0
    %595 = vmatprep.subr.mxu0 0.0
    %596 = vmatpush1.msra.mxu0 0.0
    %597 = vmatprep.subr.mxu0 0.0
    %598 = vmatpush1.msra.mxu0 0.0
    %599 = vmatprep.subr.mxu0 0.0
    %600 = vmatpush1.msra.mxu0 0.0
    %601 = vmatprep.subr.mxu0 0.0
    %602 = vmatpush1.msra.mxu0 0.0
    %603 = vmatprep.subr.mxu0 0.0
    %604 = vmatpush1.msra.mxu0 0.0
    %605 = vmatprep.subr.mxu0 0.0
    %606 = vmatpush1.msra.mxu0 0.0
    %607 = vmatprep.subr.mxu0 0.0
    %608 = vmatpush1.msra.mxu0 0.0
    %609 = vmatprep.subr.mxu0 0.0
    %610 = vmatpush1.msra.mxu0 0.0
    %611 = vmatprep.subr.mxu0 0.0
    %612 = vmatpush1.msra.mxu0 0.0
    %613 = vmatprep.subr.mxu0 0.0
    %614 = vmatpush1.msra.mxu0 0.0
    %615 = vmatprep.subr.mxu0 0.0
    %616 = vmatpush1.msra.mxu0 0.0
    %617 = vmatprep.subr.mxu0 0.0
    %618 = vmatpush1.msra.mxu0 0.0
    %619 = vmatprep.subr.mxu0 0.0
    %620 = vmatpush1.msra.mxu0 0.0
    %621 = vmatprep.subr.mxu0 0.0
    %622 = vmatpush1.msra.mxu0 0.0
    %623 = vmatprep.subr.mxu0 0.0
    %624 = vmatpush1.msra.mxu0 0.0
    %625 = vmatprep.subr.mxu0 0.0
    %626 = vmatpush1.msra.mxu0 0.0
    %627 = vmatprep.subr.mxu0 0.0
    %628 = vmatpush1.msra.mxu0 0.0
    %629 = vmatprep.subr.mxu0 0.0
    %630 = vmatpush1.msra.mxu0 0.0
    %631 = vmatprep.subr.mxu0 0.0
    %632 = vmatpush1.msra.mxu0 0.0
    %633 = vmatprep.subr.mxu0 0.0
    %634 = vmatpush1.msra.mxu0 0.0
    %635 = vmatprep.subr.mxu0 0.0
    %636 = vmatpush1.msra.mxu0 0.0
    %637 = vmatprep.subr.mxu0 0.0
    %638 = vmatpush1.msra.mxu0 0.0
    %639 = vmatprep.subr.mxu0 0.0
    %640 = vmatpush1.msra.mxu0 0.0
    %641 = vmatprep.mubr.f32.mxu0 0.0
    %642 = vmatmul.mubr.f32.gmra.mrb[0].mxu0 %v575
    %v643 = vpop.f32.mrb[0].mxu0
    %v644 = vadd.f32 %v572, %v643
    %v645 = vpop.f32.mrb[0].mxu0
    %646 = vdwg.mxu0
    %v647 = vxor.u32 %v644, 2147483648
    %v648 = vmul.f32 %v647, 1.442695
    %v649 = vpow.pop %v648
    %v650 = vadd.f32 %v649, 1.0
    %v651 = vrcp.pop %v650
    %v652 = vmul.f32 1.0, %v651
    %v653 = vld [vmem:[#allocation19] sm:$0xf]
    %v654 = vld [vmem:[#allocation20] sm:$0xf]
    %656 = vset.pattern.permute.xlu0 0
    %657 = vperm.xlu0 %656, %v654
    %v658 = vpop.permute.xlu0 %657
    %661 = vrot.lane.b32.xlu0 %v566, 112
    %v662 = vpop.permute.xlu0 %661
    %v665 = vsel %vm398, %v653, 0
    %667 = vmatprep.subr.mxu0 0.0
    %668 = vmatpush1.msra.mxu0 %v662
    %669 = vmatprep.subr.mxu0 0.0
    %670 = vmatpush1.msra.mxu0 0.0
    %671 = vmatprep.subr.mxu0 0.0
    %672 = vmatpush1.msra.mxu0 0.0
    %673 = vmatprep.subr.mxu0 0.0
    %674 = vmatpush1.msra.mxu0 0.0
    %675 = vmatprep.subr.mxu0 0.0
    %676 = vmatpush1.msra.mxu0 0.0
    %677 = vmatprep.subr.mxu0 0.0
    %678 = vmatpush1.msra.mxu0 0.0
    %679 = vmatprep.subr.mxu0 0.0
    %680 = vmatpush1.msra.mxu0 0.0
    %681 = vmatprep.subr.mxu0 0.0
    %682 = vmatpush1.msra.mxu0 0.0
    %683 = vmatprep.subr.mxu0 0.0
    %684 = vmatpush1.msra.mxu0 0.0
    %685 = vmatprep.subr.mxu0 0.0
    %686 = vmatpush1.msra.mxu0 0.0
    %687 = vmatprep.subr.mxu0 0.0
    %688 = vmatpush1.msra.mxu0 0.0
    %689 = vmatprep.subr.mxu0 0.0
    %690 = vmatpush1.msra.mxu0 0.0
    %691 = vmatprep.subr.mxu0 0.0
    %692 = vmatpush1.msra.mxu0 0.0
    %693 = vmatprep.subr.mxu0 0.0
    %694 = vmatpush1.msra.mxu0 0.0
    %695 = vmatprep.subr.mxu0 0.0
    %696 = vmatpush1.msra.mxu0 0.0
    %697 = vmatprep.subr.mxu0 0.0
    %698 = vmatpush1.msra.mxu0 0.0
    %699 = vmatprep.subr.mxu0 0.0
    %700 = vmatpush1.msra.mxu0 0.0
    %701 = vmatprep.subr.mxu0 0.0
    %702 = vmatpush1.msra.mxu0 0.0
    %703 = vmatprep.subr.mxu0 0.0
    %704 = vmatpush1.msra.mxu0 0.0
    %705 = vmatprep.subr.mxu0 0.0
    %706 = vmatpush1.msra.mxu0 0.0
    %707 = vmatprep.subr.mxu0 0.0
    %708 = vmatpush1.msra.mxu0 0.0
    %709 = vmatprep.subr.mxu0 0.0
    %710 = vmatpush1.msra.mxu0 0.0
    %711 = vmatprep.subr.mxu0 0.0
    %712 = vmatpush1.msra.mxu0 0.0
    %713 = vmatprep.subr.mxu0 0.0
    %714 = vmatpush1.msra.mxu0 0.0
    %715 = vmatprep.subr.mxu0 0.0
    %716 = vmatpush1.msra.mxu0 0.0
    %717 = vmatprep.subr.mxu0 0.0
    %718 = vmatpush1.msra.mxu0 0.0
    %719 = vmatprep.subr.mxu0 0.0
    %720 = vmatpush1.msra.mxu0 0.0
    %721 = vmatprep.subr.mxu0 0.0
    %722 = vmatpush1.msra.mxu0 0.0
    %723 = vmatprep.subr.mxu0 0.0
    %724 = vmatpush1.msra.mxu0 0.0
    %725 = vmatprep.subr.mxu0 0.0
    %726 = vmatpush1.msra.mxu0 0.0
    %727 = vmatprep.subr.mxu0 0.0
    %728 = vmatpush1.msra.mxu0 0.0
    %729 = vmatprep.subr.mxu0 0.0
    %730 = vmatpush1.msra.mxu0 0.0
    %731 = vmatprep.mubr.f32.mxu0 0.0
    %732 = vmatmul.mubr.f32.gmra.mrb[0].mxu0 %v665
    %v733 = vpop.f32.mrb[0].mxu0
    %v734 = vadd.f32 %v658, %v733
    %v735 = vpop.f32.mrb[0].mxu0
    %736 = vdwg.mxu0
    %v737 = vxor.u32 %v734, 2147483648
    %v738 = vmul.f32 %v737, 1.442695
    %v739 = vpow.pop %v738
    %v740 = vadd.f32 %v739, 1.0
    %v741 = vrcp.pop %v740
    %v742 = vmul.f32 1.0, %v741
    %v743 = vld [vmem:[#allocation7] sm:$0xff]
    %v744 = vld [vmem:[#allocation7 + $0x8] sm:$0xff]
    %v745 = vld [vmem:[#allocation7 + $0x10] sm:$0xff]
    %v746 = vld [vmem:[#allocation7 + $0x18] sm:$0xff]
    %vm747 = vcmask 130048
    %v749 = vsel %vm747, %v652, 0
    %751 = vmatprep.subr.mxu0 %v744
    %752 = vmatpush1.msra.mxu0 %v743
    %753 = vmatprep.subr.mxu0 %v746
    %754 = vmatpush1.msra.mxu0 %v745
    %755 = vmatprep.subr.mxu0 0.0
    %756 = vmatpush1.msra.mxu0 0.0
    %757 = vmatprep.subr.mxu0 0.0
    %758 = vmatpush1.msra.mxu0 0.0
    %759 = vmatprep.subr.mxu0 0.0
    %760 = vmatpush1.msra.mxu0 0.0
    %761 = vmatprep.subr.mxu0 0.0
    %762 = vmatpush1.msra.mxu0 0.0
    %763 = vmatprep.subr.mxu0 0.0
    %764 = vmatpush1.msra.mxu0 0.0
    %765 = vmatprep.subr.mxu0 0.0
    %766 = vmatpush1.msra.mxu0 0.0
    %767 = vmatprep.subr.mxu0 0.0
    %768 = vmatpush1.msra.mxu0 0.0
    %769 = vmatprep.subr.mxu0 0.0
    %770 = vmatpush1.msra.mxu0 0.0
    %771 = vmatprep.subr.mxu0 0.0
    %772 = vmatpush1.msra.mxu0 0.0
    %773 = vmatprep.subr.mxu0 0.0
    %774 = vmatpush1.msra.mxu0 0.0
    %775 = vmatprep.subr.mxu0 0.0
    %776 = vmatpush1.msra.mxu0 0.0
    %777 = vmatprep.subr.mxu0 0.0
    %778 = vmatpush1.msra.mxu0 0.0
    %779 = vmatprep.subr.mxu0 0.0
    %780 = vmatpush1.msra.mxu0 0.0
    %781 = vmatprep.subr.mxu0 0.0
    %782 = vmatpush1.msra.mxu0 0.0
    %783 = vmatprep.subr.mxu0 0.0
    %784 = vmatpush1.msra.mxu0 0.0
    %785 = vmatprep.subr.mxu0 0.0
    %786 = vmatpush1.msra.mxu0 0.0
    %787 = vmatprep.subr.mxu0 0.0
    %788 = vmatpush1.msra.mxu0 0.0
    %789 = vmatprep.subr.mxu0 0.0
    %790 = vmatpush1.msra.mxu0 0.0
    %791 = vmatprep.subr.mxu0 0.0
    %792 = vmatpush1.msra.mxu0 0.0
    %793 = vmatprep.subr.mxu0 0.0
    %794 = vmatpush1.msra.mxu0 0.0
    %795 = vmatprep.subr.mxu0 0.0
    %796 = vmatpush1.msra.mxu0 0.0
    %797 = vmatprep.subr.mxu0 0.0
    %798 = vmatpush1.msra.mxu0 0.0
    %799 = vmatprep.subr.mxu0 0.0
    %800 = vmatpush1.msra.mxu0 0.0
    %801 = vmatprep.subr.mxu0 0.0
    %802 = vmatpush1.msra.mxu0 0.0
    %803 = vmatprep.subr.mxu0 0.0
    %804 = vmatpush1.msra.mxu0 0.0
    %805 = vmatprep.subr.mxu0 0.0
    %806 = vmatpush1.msra.mxu0 0.0
    %807 = vmatprep.subr.mxu0 0.0
    %808 = vmatpush1.msra.mxu0 0.0
    %809 = vmatprep.subr.mxu0 0.0
    %810 = vmatpush1.msra.mxu0 0.0
    %811 = vmatprep.subr.mxu0 0.0
    %812 = vmatpush1.msra.mxu0 0.0
    %813 = vmatprep.subr.mxu0 0.0
    %814 = vmatpush1.msra.mxu0 0.0
    %815 = vmatprep.mubr.f32.mxu0 0.0
    %816 = vmatmul.mubr.f32.gmra.mrb[0].mxu0 %v749
    %v817 = vpop.f32.mrb[0].mxu0
    %v818 = vadd.f32 0.0, %v817
    %v819 = vpop.f32.mrb[0].mxu0
    %v820 = vadd.f32 0.0, %v819
    %821 = vdwg.mxu0
    %v822 = vld [vmem:[#allocation8] sm:$0xff]
    %v823 = vld [vmem:[#allocation8 + $0x8] sm:$0xff]
    %v824 = vld [vmem:[#allocation8 + $0x10] sm:$0xff]
    %v825 = vld [vmem:[#allocation8 + $0x18] sm:$0xff]
    %v827 = vsel %vm747, %v742, 0
    %829 = vmatprep.subr.mxu0 %v823
    %830 = vmatpush1.msra.mxu0 %v822
    %831 = vmatprep.subr.mxu0 %v825
    %832 = vmatpush1.msra.mxu0 %v824
    %833 = vmatprep.subr.mxu0 0.0
    %834 = vmatpush1.msra.mxu0 0.0
    %835 = vmatprep.subr.mxu0 0.0
    %836 = vmatpush1.msra.mxu0 0.0
    %837 = vmatprep.subr.mxu0 0.0
    %838 = vmatpush1.msra.mxu0 0.0
    %839 = vmatprep.subr.mxu0 0.0
    %840 = vmatpush1.msra.mxu0 0.0
    %841 = vmatprep.subr.mxu0 0.0
    %842 = vmatpush1.msra.mxu0 0.0
    %843 = vmatprep.subr.mxu0 0.0
    %844 = vmatpush1.msra.mxu0 0.0
    %845 = vmatprep.subr.mxu0 0.0
    %846 = vmatpush1.msra.mxu0 0.0
    %847 = vmatprep.subr.mxu0 0.0
    %848 = vmatpush1.msra.mxu0 0.0
    %849 = vmatprep.subr.mxu0 0.0
    %850 = vmatpush1.msra.mxu0 0.0
    %851 = vmatprep.subr.mxu0 0.0
    %852 = vmatpush1.msra.mxu0 0.0
    %853 = vmatprep.subr.mxu0 0.0
    %854 = vmatpush1.msra.mxu0 0.0
    %855 = vmatprep.subr.mxu0 0.0
    %856 = vmatpush1.msra.mxu0 0.0
    %857 = vmatprep.subr.mxu0 0.0
    %858 = vmatpush1.msra.mxu0 0.0
    %859 = vmatprep.subr.mxu0 0.0
    %860 = vmatpush1.msra.mxu0 0.0
    %861 = vmatprep.subr.mxu0 0.0
    %862 = vmatpush1.msra.mxu0 0.0
    %863 = vmatprep.subr.mxu0 0.0
    %864 = vmatpush1.msra.mxu0 0.0
    %865 = vmatprep.subr.mxu0 0.0
    %866 = vmatpush1.msra.mxu0 0.0
    %867 = vmatprep.subr.mxu0 0.0
    %868 = vmatpush1.msra.mxu0 0.0
    %869 = vmatprep.subr.mxu0 0.0
    %870 = vmatpush1.msra.mxu0 0.0
    %871 = vmatprep.subr.mxu0 0.0
    %872 = vmatpush1.msra.mxu0 0.0
    %873 = vmatprep.subr.mxu0 0.0
    %874 = vmatpush1.msra.mxu0 0.0
    %875 = vmatprep.subr.mxu0 0.0
    %876 = vmatpush1.msra.mxu0 0.0
    %877 = vmatprep.subr.mxu0 0.0
    %878 = vmatpush1.msra.mxu0 0.0
    %879 = vmatprep.subr.mxu0 0.0
    %880 = vmatpush1.msra.mxu0 0.0
    %881 = vmatprep.subr.mxu0 0.0
    %882 = vmatpush1.msra.mxu0 0.0
    %883 = vmatprep.subr.mxu0 0.0
    %884 = vmatpush1.msra.mxu0 0.0
    %885 = vmatprep.subr.mxu0 0.0
    %886 = vmatpush1.msra.mxu0 0.0
    %887 = vmatprep.subr.mxu0 0.0
    %888 = vmatpush1.msra.mxu0 0.0
    %889 = vmatprep.subr.mxu0 0.0
    %890 = vmatpush1.msra.mxu0 0.0
    %891 = vmatprep.subr.mxu0 0.0
    %892 = vmatpush1.msra.mxu0 0.0
    %893 = vmatprep.mubr.f32.mxu0 0.0
    %894 = vmatmul.mubr.f32.gmra.mrb[0].mxu0 %v827
    %v895 = vpop.f32.mrb[0].mxu0
    %v896 = vadd.f32 0.0, %v895
    %v897 = vpop.f32.mrb[0].mxu0
    %v898 = vadd.f32 0.0, %v897
    %899 = vdwg.mxu0
    %v900 = vmul.f32 %v818, %v896
    %v901 = vmul.f32 %v820, %v898
    %903 = vset.pattern.permute.xlu0 0
    %904 = vperm.xlu0 %903, %v477
    %v905 = vpop.permute.xlu0 %904
    %v907 = vadd.f32 %v900, %v905
    %v908 = vadd.f32 %v901, %v905
    %v911 = vcombine.low %v907, %v908
    %v913 = vmul.f32 %v189, %v911
    %914 = vst [vmem:[#allocation22] sm:$0xff] %v913
    %s915 = scalar_lea.vmem [#allocation2], 8
    %v916 = vld [vmem:[%s915] sm:$0xff]
    %v917 = vld [vmem:[#allocation5] sm:$0xff]
    %v918 = vld [vmem:[#allocation5 + $0x8] sm:$0xff]
    %v919 = vld [vmem:[#allocation5 + $0x10] sm:$0xff]
    %v920 = vld [vmem:[#allocation5 + $0x18] sm:$0xff]
    %v921 = vld [vmem:[#allocation5 + $0x20] sm:$0xff]
    %v922 = vld [vmem:[#allocation5 + $0x28] sm:$0xff]
    %v923 = vld [vmem:[#allocation5 + $0x30] sm:$0xff]
    %v924 = vld [vmem:[#allocation5 + $0x38] sm:$0xff]
    %v925 = vld [vmem:[#allocation5 + $0x40] sm:$0xff]
    %v926 = vld [vmem:[#allocation5 + $0x48] sm:$0xff]
    %v927 = vld [vmem:[#allocation5 + $0x50] sm:$0xff]
    %v928 = vld [vmem:[#allocation5 + $0x58] sm:$0xff]
    %v929 = vld [vmem:[#allocation5 + $0x60] sm:$0xff]
    %v930 = vld [vmem:[#allocation5 + $0x68] sm:$0xff]
    %v931 = vld [vmem:[#allocation5 + $0x70] sm:$0xff]
    %v932 = vld [vmem:[#allocation5 + $0x78] sm:$0xff]
    %v933 = vld [vmem:[#allocation5 + $0x80] sm:$0xff]
    %v934 = vld [vmem:[#allocation5 + $0x88] sm:$0xff]
    %v935 = vld [vmem:[#allocation5 + $0x90] sm:$0xff]
    %v936 = vld [vmem:[#allocation5 + $0x98] sm:$0xff]
    %v937 = vld [vmem:[#allocation5 + $0xa0] sm:$0xff]
    %v938 = vld [vmem:[#allocation5 + $0xa8] sm:$0xff]
    %v939 = vld [vmem:[#allocation5 + $0xb0] sm:$0xff]
    %v940 = vld [vmem:[#allocation5 + $0xb8] sm:$0xff]
    %v941 = vld [vmem:[#allocation5 + $0xc0] sm:$0xff]
    %v942 = vld [vmem:[#allocation5 + $0xc8] sm:$0xff]
    %v943 = vld [vmem:[#allocation5 + $0xd0] sm:$0xff]
    %v944 = vld [vmem:[#allocation5 + $0xd8] sm:$0xff]
    %v945 = vld [vmem:[#allocation5 + $0xe0] sm:$0xff]
    %v946 = vld [vmem:[#allocation5 + $0xe8] sm:$0xff]
    %v947 = vld [vmem:[#allocation5 + $0xf0] sm:$0xff]
    %v948 = vld [vmem:[#allocation5 + $0xf8] sm:$0xff]
    %v950 = vcombine.high %v916, %v916
    %952 = vmatprep.subr.mxu0 0.0
    %953 = vmatpush1.msra.mxu0 %v917
    %954 = vmatprep.subr.mxu0 0.0
    %955 = vmatpush1.msra.mxu0 %v918
    %956 = vmatprep.subr.mxu0 0.0
    %957 = vmatpush1.msra.mxu0 %v919
    %958 = vmatprep.subr.mxu0 0.0
    %959 = vmatpush1.msra.mxu0 %v920
    %960 = vmatprep.subr.mxu0 0.0
    %961 = vmatpush1.msra.mxu0 %v921
    %962 = vmatprep.subr.mxu0 0.0
    %963 = vmatpush1.msra.mxu0 %v922
    %964 = vmatprep.subr.mxu0 0.0
    %965 = vmatpush1.msra.mxu0 %v923
    %966 = vmatprep.subr.mxu0 0.0
    %967 = vmatpush1.msra.mxu0 %v924
    %968 = vmatprep.subr.mxu0 0.0
    %969 = vmatpush1.msra.mxu0 %v925
    %970 = vmatprep.subr.mxu0 0.0
    %971 = vmatpush1.msra.mxu0 %v926
    %972 = vmatprep.subr.mxu0 0.0
    %973 = vmatpush1.msra.mxu0 %v927
    %974 = vmatprep.subr.mxu0 0.0
    %975 = vmatpush1.msra.mxu0 %v928
    %976 = vmatprep.subr.mxu0 0.0
    %977 = vmatpush1.msra.mxu0 %v929
    %978 = vmatprep.subr.mxu0 0.0
    %979 = vmatpush1.msra.mxu0 %v930
    %980 = vmatprep.subr.mxu0 0.0
    %981 = vmatpush1.msra.mxu0 %v931
    %982 = vmatprep.subr.mxu0 0.0
    %983 = vmatpush1.msra.mxu0 %v932
    %984 = vmatprep.subr.mxu0 0.0
    %985 = vmatpush1.msra.mxu0 %v933
    %986 = vmatprep.subr.mxu0 0.0
    %987 = vmatpush1.msra.mxu0 %v934
    %988 = vmatprep.subr.mxu0 0.0
    %989 = vmatpush1.msra.mxu0 %v935
    %990 = vmatprep.subr.mxu0 0.0
    %991 = vmatpush1.msra.mxu0 %v936
    %992 = vmatprep.subr.mxu0 0.0
    %993 = vmatpush1.msra.mxu0 %v937
    %994 = vmatprep.subr.mxu0 0.0
    %995 = vmatpush1.msra.mxu0 %v938
    %996 = vmatprep.subr.mxu0 0.0
    %997 = vmatpush1.msra.mxu0 %v939
    %998 = vmatprep.subr.mxu0 0.0
    %999 = vmatpush1.msra.mxu0 %v940
    %1000 = vmatprep.subr.mxu0 0.0
    %1001 = vmatpush1.msra.mxu0 %v941
    %1002 = vmatprep.subr.mxu0 0.0
    %1003 = vmatpush1.msra.mxu0 %v942
    %1004 = vmatprep.subr.mxu0 0.0
    %1005 = vmatpush1.msra.mxu0 %v943
    %1006 = vmatprep.subr.mxu0 0.0
    %1007 = vmatpush1.msra.mxu0 %v944
    %1008 = vmatprep.subr.mxu0 0.0
    %1009 = vmatpush1.msra.mxu0 %v945
    %1010 = vmatprep.subr.mxu0 0.0
    %1011 = vmatpush1.msra.mxu0 %v946
    %1012 = vmatprep.subr.mxu0 0.0
    %1013 = vmatpush1.msra.mxu0 %v947
    %1014 = vmatprep.subr.mxu0 0.0
    %1015 = vmatpush1.msra.mxu0 %v948
    %1016 = vmatprep.mubr.f32.mxu0 %v950
    %1017 = vmatmul.mubr.f32.gmra.mrb[0].mxu0 %v916
    %v1018 = vpop.f32.mrb[0].mxu0
    %v1019 = vadd.f32 0.0, %v1018
    %v1020 = vpop.f32.mrb[0].mxu0
    %1021 = vdwg.mxu0
    %v1022 = vsel %vm295, %v916, -inf
    %v1023 = vsel %vm295, %v950, -inf
    %v1024 = vmax.f32 %v1022, %v1023
    %1025 = vmax.xlane.f32.xlu0 %v1024
    %v1026 = vpop.xlane.xlu0 %1025
    %1028 = vrot.lane.b32.xlu0 %v1019, 96
    %v1029 = vpop.permute.xlu0 %1028
    %v1031 = vsel %vm305, %v1029, %v1026
    %v1032 = vld [vmem:[#allocation10] sm:$0xff]
    %v1034 = vsel %vm308, %v1032, 0
    %v1037 = vsel %vm295, %v1031, 0
    %1039 = vmatprep.subr.mxu0 0.0
    %1040 = vmatpush1.msra.mxu0 %v1037
    %1041 = vmatprep.subr.mxu0 0.0
    %1042 = vmatpush1.msra.mxu0 0.0
    %1043 = vmatprep.subr.mxu0 0.0
    %1044 = vmatpush1.msra.mxu0 0.0
    %1045 = vmatprep.subr.mxu0 0.0
    %1046 = vmatpush1.msra.mxu0 0.0
    %1047 = vmatprep.subr.mxu0 0.0
    %1048 = vmatpush1.msra.mxu0 0.0
    %1049 = vmatprep.subr.mxu0 0.0
    %1050 = vmatpush1.msra.mxu0 0.0
    %1051 = vmatprep.subr.mxu0 0.0
    %1052 = vmatpush1.msra.mxu0 0.0
    %1053 = vmatprep.subr.mxu0 0.0
    %1054 = vmatpush1.msra.mxu0 0.0
    %1055 = vmatprep.subr.mxu0 0.0
    %1056 = vmatpush1.msra.mxu0 0.0
    %1057 = vmatprep.subr.mxu0 0.0
    %1058 = vmatpush1.msra.mxu0 0.0
    %1059 = vmatprep.subr.mxu0 0.0
    %1060 = vmatpush1.msra.mxu0 0.0
    %1061 = vmatprep.subr.mxu0 0.0
    %1062 = vmatpush1.msra.mxu0 0.0
    %1063 = vmatprep.subr.mxu0 0.0
    %1064 = vmatpush1.msra.mxu0 0.0
    %1065 = vmatprep.subr.mxu0 0.0
    %1066 = vmatpush1.msra.mxu0 0.0
    %1067 = vmatprep.subr.mxu0 0.0
    %1068 = vmatpush1.msra.mxu0 0.0
    %1069 = vmatprep.subr.mxu0 0.0
    %1070 = vmatpush1.msra.mxu0 0.0
    %1071 = vmatprep.subr.mxu0 0.0
    %1072 = vmatpush1.msra.mxu0 0.0
    %1073 = vmatprep.subr.mxu0 0.0
    %1074 = vmatpush1.msra.mxu0 0.0
    %1075 = vmatprep.subr.mxu0 0.0
    %1076 = vmatpush1.msra.mxu0 0.0
    %1077 = vmatprep.subr.mxu0 0.0
    %1078 = vmatpush1.msra.mxu0 0.0
    %1079 = vmatprep.subr.mxu0 0.0
    %1080 = vmatpush1.msra.mxu0 0.0
    %1081 = vmatprep.subr.mxu0 0.0
    %1082 = vmatpush1.msra.mxu0 0.0
    %1083 = vmatprep.subr.mxu0 0.0
    %1084 = vmatpush1.msra.mxu0 0.0
    %1085 = vmatprep.subr.mxu0 0.0
    %1086 = vmatpush1.msra.mxu0 0.0
    %1087 = vmatprep.subr.mxu0 0.0
    %1088 = vmatpush1.msra.mxu0 0.0
    %1089 = vmatprep.subr.mxu0 0.0
    %1090 = vmatpush1.msra.mxu0 0.0
    %1091 = vmatprep.subr.mxu0 0.0
    %1092 = vmatpush1.msra.mxu0 0.0
    %1093 = vmatprep.subr.mxu0 0.0
    %1094 = vmatpush1.msra.mxu0 0.0
    %1095 = vmatprep.subr.mxu0 0.0
    %1096 = vmatpush1.msra.mxu0 0.0
    %1097 = vmatprep.subr.mxu0 0.0
    %1098 = vmatpush1.msra.mxu0 0.0
    %1099 = vmatprep.subr.mxu0 0.0
    %1100 = vmatpush1.msra.mxu0 0.0
    %1101 = vmatprep.subr.mxu0 0.0
    %1102 = vmatpush1.msra.mxu0 0.0
    %1103 = vmatprep.mubr.f32.mxu0 0.0
    %1104 = vmatmul.mubr.f32.gmra.mrb[0].mxu0 %v1034
    %v1105 = vpop.f32.mrb[0].mxu0
    %v1106 = vadd.f32 0.0, %v1105
    %v1107 = vpop.f32.mrb[0].mxu0
    %1108 = vdwg.mxu0
    %v1109 = vxor.u32 %v1106, 2147483648
    %v1110 = vmul.f32 %v1109, 1.442695
    %v1111 = vpow.pop %v1110
    %v1112 = vadd.f32 %v1111, 1.0
    %v1113 = vrcp.pop %v1112
    %v1114 = vmul.f32 1.0, %v1113
    %v1115 = vmul.f32 %v1106, %v1114
    %v1116 = vld [vmem:[#allocation11] sm:$0xf]
    %1118 = vrot.lane.b32.xlu0 %v1115, 127
    %v1119 = vpop.permute.xlu0 %1118
    %v1121 = vadd.f32 %v1115, %v1119
    %v1123 = vsel %vm398, %v1116, 0
    %1125 = vmatprep.subr.mxu0 0.0
    %1126 = vmatpush1.msra.mxu0 %v1121
    %1127 = vmatprep.subr.mxu0 0.0
    %1128 = vmatpush1.msra.mxu0 0.0
    %1129 = vmatprep.subr.mxu0 0.0
    %1130 = vmatpush1.msra.mxu0 0.0
    %1131 = vmatprep.subr.mxu0 0.0
    %1132 = vmatpush1.msra.mxu0 0.0
    %1133 = vmatprep.subr.mxu0 0.0
    %1134 = vmatpush1.msra.mxu0 0.0
    %1135 = vmatprep.subr.mxu0 0.0
    %1136 = vmatpush1.msra.mxu0 0.0
    %1137 = vmatprep.subr.mxu0 0.0
    %1138 = vmatpush1.msra.mxu0 0.0
    %1139 = vmatprep.subr.mxu0 0.0
    %1140 = vmatpush1.msra.mxu0 0.0
    %1141 = vmatprep.subr.mxu0 0.0
    %1142 = vmatpush1.msra.mxu0 0.0
    %1143 = vmatprep.subr.mxu0 0.0
    %1144 = vmatpush1.msra.mxu0 0.0
    %1145 = vmatprep.subr.mxu0 0.0
    %1146 = vmatpush1.msra.mxu0 0.0
    %1147 = vmatprep.subr.mxu0 0.0
    %1148 = vmatpush1.msra.mxu0 0.0
    %1149 = vmatprep.subr.mxu0 0.0
    %1150 = vmatpush1.msra.mxu0 0.0
    %1151 = vmatprep.subr.mxu0 0.0
    %1152 = vmatpush1.msra.mxu0 0.0
    %1153 = vmatprep.subr.mxu0 0.0
    %1154 = vmatpush1.msra.mxu0 0.0
    %1155 = vmatprep.subr.mxu0 0.0
    %1156 = vmatpush1.msra.mxu0 0.0
    %1157 = vmatprep.subr.mxu0 0.0
    %1158 = vmatpush1.msra.mxu0 0.0
    %1159 = vmatprep.subr.mxu0 0.0
    %1160 = vmatpush1.msra.mxu0 0.0
    %1161 = vmatprep.subr.mxu0 0.0
    %1162 = vmatpush1.msra.mxu0 0.0
    %1163 = vmatprep.subr.mxu0 0.0
    %1164 = vmatpush1.msra.mxu0 0.0
    %1165 = vmatprep.subr.mxu0 0.0
    %1166 = vmatpush1.msra.mxu0 0.0
    %1167 = vmatprep.subr.mxu0 0.0
    %1168 = vmatpush1.msra.mxu0 0.0
    %1169 = vmatprep.subr.mxu0 0.0
    %1170 = vmatpush1.msra.mxu0 0.0
    %1171 = vmatprep.subr.mxu0 0.0
    %1172 = vmatpush1.msra.mxu0 0.0
    %1173 = vmatprep.subr.mxu0 0.0
    %1174 = vmatpush1.msra.mxu0 0.0
    %1175 = vmatprep.subr.mxu0 0.0
    %1176 = vmatpush1.msra.mxu0 0.0
    %1177 = vmatprep.subr.mxu0 0.0
    %1178 = vmatpush1.msra.mxu0 0.0
    %1179 = vmatprep.subr.mxu0 0.0
    %1180 = vmatpush1.msra.mxu0 0.0
    %1181 = vmatprep.subr.mxu0 0.0
    %1182 = vmatpush1.msra.mxu0 0.0
    %1183 = vmatprep.subr.mxu0 0.0
    %1184 = vmatpush1.msra.mxu0 0.0
    %1185 = vmatprep.subr.mxu0 0.0
    %1186 = vmatpush1.msra.mxu0 0.0
    %1187 = vmatprep.subr.mxu0 0.0
    %1188 = vmatpush1.msra.mxu0 0.0
    %1189 = vmatprep.mubr.f32.mxu0 0.0
    %1190 = vmatmul.mubr.f32.gmra.mrb[0].mxu0 %v1123
    %v1191 = vpop.f32.mrb[0].mxu0
    %v1192 = vadd.f32 0.0, %v1191
    %v1193 = vpop.f32.mrb[0].mxu0
    %1194 = vdwg.mxu0
    %v1195 = vxor.u32 %v1192, 2147483648
    %v1196 = vmul.f32 %v1195, 1.442695
    %v1197 = vpow.pop %v1196
    %v1198 = vadd.f32 %v1197, 1.0
    %v1199 = vrcp.pop %v1198
    %v1200 = vmul.f32 1.0, %v1199
    %v1201 = vld [vmem:[#allocation13] sm:$0xff]
    %v1202 = vld [vmem:[#allocation14] sm:$0xff]
    %1204 = vset.pattern.permute.xlu0 0
    %1205 = vperm.xlu0 %1204, %v1202
    %v1206 = vpop.permute.xlu0 %1205
    %v1209 = vsel %vm308, %v1201, 0
    %v1211 = vsel %vm295, %v1019, 0
    %1213 = vmatprep.subr.mxu0 0.0
    %1214 = vmatpush1.msra.mxu0 %v1211
    %1215 = vmatprep.subr.mxu0 0.0
    %1216 = vmatpush1.msra.mxu0 0.0
    %1217 = vmatprep.subr.mxu0 0.0
    %1218 = vmatpush1.msra.mxu0 0.0
    %1219 = vmatprep.subr.mxu0 0.0
    %1220 = vmatpush1.msra.mxu0 0.0
    %1221 = vmatprep.subr.mxu0 0.0
    %1222 = vmatpush1.msra.mxu0 0.0
    %1223 = vmatprep.subr.mxu0 0.0
    %1224 = vmatpush1.msra.mxu0 0.0
    %1225 = vmatprep.subr.mxu0 0.0
    %1226 = vmatpush1.msra.mxu0 0.0
    %1227 = vmatprep.subr.mxu0 0.0
    %1228 = vmatpush1.msra.mxu0 0.0
    %1229 = vmatprep.subr.mxu0 0.0
    %1230 = vmatpush1.msra.mxu0 0.0
    %1231 = vmatprep.subr.mxu0 0.0
    %1232 = vmatpush1.msra.mxu0 0.0
    %1233 = vmatprep.subr.mxu0 0.0
    %1234 = vmatpush1.msra.mxu0 0.0
    %1235 = vmatprep.subr.mxu0 0.0
    %1236 = vmatpush1.msra.mxu0 0.0
    %1237 = vmatprep.subr.mxu0 0.0
    %1238 = vmatpush1.msra.mxu0 0.0
    %1239 = vmatprep.subr.mxu0 0.0
    %1240 = vmatpush1.msra.mxu0 0.0
    %1241 = vmatprep.subr.mxu0 0.0
    %1242 = vmatpush1.msra.mxu0 0.0
    %1243 = vmatprep.subr.mxu0 0.0
    %1244 = vmatpush1.msra.mxu0 0.0
    %1245 = vmatprep.subr.mxu0 0.0
    %1246 = vmatpush1.msra.mxu0 0.0
    %1247 = vmatprep.subr.mxu0 0.0
    %1248 = vmatpush1.msra.mxu0 0.0
    %1249 = vmatprep.subr.mxu0 0.0
    %1250 = vmatpush1.msra.mxu0 0.0
    %1251 = vmatprep.subr.mxu0 0.0
    %1252 = vmatpush1.msra.mxu0 0.0
    %1253 = vmatprep.subr.mxu0 0.0
    %1254 = vmatpush1.msra.mxu0 0.0
    %1255 = vmatprep.subr.mxu0 0.0
    %1256 = vmatpush1.msra.mxu0 0.0
    %1257 = vmatprep.subr.mxu0 0.0
    %1258 = vmatpush1.msra.mxu0 0.0
    %1259 = vmatprep.subr.mxu0 0.0
    %1260 = vmatpush1.msra.mxu0 0.0
    %1261 = vmatprep.subr.mxu0 0.0
    %1262 = vmatpush1.msra.mxu0 0.0
    %1263 = vmatprep.subr.mxu0 0.0
    %1264 = vmatpush1.msra.mxu0 0.0
    %1265 = vmatprep.subr.mxu0 0.0
    %1266 = vmatpush1.msra.mxu0 0.0
    %1267 = vmatprep.subr.mxu0 0.0
    %1268 = vmatpush1.msra.mxu0 0.0
    %1269 = vmatprep.subr.mxu0 0.0
    %1270 = vmatpush1.msra.mxu0 0.0
    %1271 = vmatprep.subr.mxu0 0.0
    %1272 = vmatpush1.msra.mxu0 0.0
    %1273 = vmatprep.subr.mxu0 0.0
    %1274 = vmatpush1.msra.mxu0 0.0
    %1275 = vmatprep.subr.mxu0 0.0
    %1276 = vmatpush1.msra.mxu0 0.0
    %1277 = vmatprep.mubr.f32.mxu0 0.0
    %1278 = vmatmul.mubr.f32.gmra.mrb[0].mxu0 %v1209
    %v1279 = vpop.f32.mrb[0].mxu0
    %v1280 = vadd.f32 %v1206, %v1279
    %v1281 = vpop.f32.mrb[0].mxu0
    %1282 = vdwg.mxu0
    %v1283 = vxor.u32 %v1280, 2147483648
    %v1284 = vmul.f32 %v1283, 1.442695
    %v1285 = vpow.pop %v1284
    %v1286 = vadd.f32 %v1285, 1.0
    %v1287 = vrcp.pop %v1286
    %v1288 = vmul.f32 1.0, %v1287
    %v1289 = vmul.f32 %v1280, %v1288
    %v1290 = vld [vmem:[#allocation16] sm:$0xf]
    %v1291 = vld [vmem:[#allocation17] sm:$0xf]
    %1293 = vset.pattern.permute.xlu0 0
    %1294 = vperm.xlu0 %1293, %v1291
    %v1295 = vpop.permute.xlu0 %1294
    %v1298 = vsel %vm398, %v1290, 0
    %1300 = vmatprep.subr.mxu0 0.0
    %1301 = vmatpush1.msra.mxu0 %v1289
    %1302 = vmatprep.subr.mxu0 0.0
    %1303 = vmatpush1.msra.mxu0 0.0
    %1304 = vmatprep.subr.mxu0 0.0
    %1305 = vmatpush1.msra.mxu0 0.0
    %1306 = vmatprep.subr.mxu0 0.0
    %1307 = vmatpush1.msra.mxu0 0.0
    %1308 = vmatprep.subr.mxu0 0.0
    %1309 = vmatpush1.msra.mxu0 0.0
    %1310 = vmatprep.subr.mxu0 0.0
    %1311 = vmatpush1.msra.mxu0 0.0
    %1312 = vmatprep.subr.mxu0 0.0
    %1313 = vmatpush1.msra.mxu0 0.0
    %1314 = vmatprep.subr.mxu0 0.0
    %1315 = vmatpush1.msra.mxu0 0.0
    %1316 = vmatprep.subr.mxu0 0.0
    %1317 = vmatpush1.msra.mxu0 0.0
    %1318 = vmatprep.subr.mxu0 0.0
    %1319 = vmatpush1.msra.mxu0 0.0
    %1320 = vmatprep.subr.mxu0 0.0
    %1321 = vmatpush1.msra.mxu0 0.0
    %1322 = vmatprep.subr.mxu0 0.0
    %1323 = vmatpush1.msra.mxu0 0.0
    %1324 = vmatprep.subr.mxu0 0.0
    %1325 = vmatpush1.msra.mxu0 0.0
    %1326 = vmatprep.subr.mxu0 0.0
    %1327 = vmatpush1.msra.mxu0 0.0
    %1328 = vmatprep.subr.mxu0 0.0
    %1329 = vmatpush1.msra.mxu0 0.0
    %1330 = vmatprep.subr.mxu0 0.0
    %1331 = vmatpush1.msra.mxu0 0.0
    %1332 = vmatprep.subr.mxu0 0.0
    %1333 = vmatpush1.msra.mxu0 0.0
    %1334 = vmatprep.subr.mxu0 0.0
    %1335 = vmatpush1.msra.mxu0 0.0
    %1336 = vmatprep.subr.mxu0 0.0
    %1337 = vmatpush1.msra.mxu0 0.0
    %1338 = vmatprep.subr.mxu0 0.0
    %1339 = vmatpush1.msra.mxu0 0.0
    %1340 = vmatprep.subr.mxu0 0.0
    %1341 = vmatpush1.msra.mxu0 0.0
    %1342 = vmatprep.subr.mxu0 0.0
    %1343 = vmatpush1.msra.mxu0 0.0
    %1344 = vmatprep.subr.mxu0 0.0
    %1345 = vmatpush1.msra.mxu0 0.0
    %1346 = vmatprep.subr.mxu0 0.0
    %1347 = vmatpush1.msra.mxu0 0.0
    %1348 = vmatprep.subr.mxu0 0.0
    %1349 = vmatpush1.msra.mxu0 0.0
    %1350 = vmatprep.subr.mxu0 0.0
    %1351 = vmatpush1.msra.mxu0 0.0
    %1352 = vmatprep.subr.mxu0 0.0
    %1353 = vmatpush1.msra.mxu0 0.0
    %1354 = vmatprep.subr.mxu0 0.0
    %1355 = vmatpush1.msra.mxu0 0.0
    %1356 = vmatprep.subr.mxu0 0.0
    %1357 = vmatpush1.msra.mxu0 0.0
    %1358 = vmatprep.subr.mxu0 0.0
    %1359 = vmatpush1.msra.mxu0 0.0
    %1360 = vmatprep.subr.mxu0 0.0
    %1361 = vmatpush1.msra.mxu0 0.0
    %1362 = vmatprep.subr.mxu0 0.0
    %1363 = vmatpush1.msra.mxu0 0.0
    %1364 = vmatprep.mubr.f32.mxu0 0.0
    %1365 = vmatmul.mubr.f32.gmra.mrb[0].mxu0 %v1298
    %v1366 = vpop.f32.mrb[0].mxu0
    %v1367 = vadd.f32 %v1295, %v1366
    %v1368 = vpop.f32.mrb[0].mxu0
    %1369 = vdwg.mxu0
    %v1370 = vxor.u32 %v1367, 2147483648
    %v1371 = vmul.f32 %v1370, 1.442695
    %v1372 = vpow.pop %v1371
    %v1373 = vadd.f32 %v1372, 1.0
    %v1374 = vrcp.pop %v1373
    %v1375 = vmul.f32 1.0, %v1374
    %v1376 = vld [vmem:[#allocation19] sm:$0xf]
    %v1377 = vld [vmem:[#allocation20] sm:$0xf]
    %1379 = vset.pattern.permute.xlu0 0
    %1380 = vperm.xlu0 %1379, %v1377
    %v1381 = vpop.permute.xlu0 %1380
    %1384 = vrot.lane.b32.xlu0 %v1289, 112
    %v1385 = vpop.permute.xlu0 %1384
    %v1388 = vsel %vm398, %v1376, 0
    %1390 = vmatprep.subr.mxu0 0.0
    %1391 = vmatpush1.msra.mxu0 %v1385
    %1392 = vmatprep.subr.mxu0 0.0
    %1393 = vmatpush1.msra.mxu0 0.0
    %1394 = vmatprep.subr.mxu0 0.0
    %1395 = vmatpush1.msra.mxu0 0.0
    %1396 = vmatprep.subr.mxu0 0.0
    %1397 = vmatpush1.msra.mxu0 0.0
    %1398 = vmatprep.subr.mxu0 0.0
    %1399 = vmatpush1.msra.mxu0 0.0
    %1400 = vmatprep.subr.mxu0 0.0
    %1401 = vmatpush1.msra.mxu0 0.0
    %1402 = vmatprep.subr.mxu0 0.0
    %1403 = vmatpush1.msra.mxu0 0.0
    %1404 = vmatprep.subr.mxu0 0.0
    %1405 = vmatpush1.msra.mxu0 0.0
    %1406 = vmatprep.subr.mxu0 0.0
    %1407 = vmatpush1.msra.mxu0 0.0
    %1408 = vmatprep.subr.mxu0 0.0
    %1409 = vmatpush1.msra.mxu0 0.0
    %1410 = vmatprep.subr.mxu0 0.0
    %1411 = vmatpush1.msra.mxu0 0.0
    %1412 = vmatprep.subr.mxu0 0.0
    %1413 = vmatpush1.msra.mxu0 0.0
    %1414 = vmatprep.subr.mxu0 0.0
    %1415 = vmatpush1.msra.mxu0 0.0
    %1416 = vmatprep.subr.mxu0 0.0
    %1417 = vmatpush1.msra.mxu0 0.0
    %1418 = vmatprep.subr.mxu0 0.0
    %1419 = vmatpush1.msra.mxu0 0.0
    %1420 = vmatprep.subr.mxu0 0.0
    %1421 = vmatpush1.msra.mxu0 0.0
    %1422 = vmatprep.subr.mxu0 0.0
    %1423 = vmatpush1.msra.mxu0 0.0
    %1424 = vmatprep.subr.mxu0 0.0
    %1425 = vmatpush1.msra.mxu0 0.0
    %1426 = vmatprep.subr.mxu0 0.0
    %1427 = vmatpush1.msra.mxu0 0.0
    %1428 = vmatprep.subr.mxu0 0.0
    %1429 = vmatpush1.msra.mxu0 0.0
    %1430 = vmatprep.subr.mxu0 0.0
    %1431 = vmatpush1.msra.mxu0 0.0
    %1432 = vmatprep.subr.mxu0 0.0
    %1433 = vmatpush1.msra.mxu0 0.0
    %1434 = vmatprep.subr.mxu0 0.0
    %1435 = vmatpush1.msra.mxu0 0.0
    %1436 = vmatprep.subr.mxu0 0.0
    %1437 = vmatpush1.msra.mxu0 0.0
    %1438 = vmatprep.subr.mxu0 0.0
    %1439 = vmatpush1.msra.mxu0 0.0
    %1440 = vmatprep.subr.mxu0 0.0
    %1441 = vmatpush1.msra.mxu0 0.0
    %1442 = vmatprep.subr.mxu0 0.0
    %1443 = vmatpush1.msra.mxu0 0.0
    %1444 = vmatprep.subr.mxu0 0.0
    %1445 = vmatpush1.msra.mxu0 0.0
    %1446 = vmatprep.subr.mxu0 0.0
    %1447 = vmatpush1.msra.mxu0 0.0
    %1448 = vmatprep.subr.mxu0 0.0
    %1449 = vmatpush1.msra.mxu0 0.0
    %1450 = vmatprep.subr.mxu0 0.0
    %1451 = vmatpush1.msra.mxu0 0.0
    %1452 = vmatprep.subr.mxu0 0.0
    %1453 = vmatpush1.msra.mxu0 0.0
    %1454 = vmatprep.mubr.f32.mxu0 0.0
    %1455 = vmatmul.mubr.f32.gmra.mrb[0].mxu0 %v1388
    %v1456 = vpop.f32.mrb[0].mxu0
    %v1457 = vadd.f32 %v1381, %v1456
    %v1458 = vpop.f32.mrb[0].mxu0
    %1459 = vdwg.mxu0
    %v1460 = vxor.u32 %v1457, 2147483648
    %v1461 = vmul.f32 %v1460, 1.442695
    %v1462 = vpow.pop %v1461
    %v1463 = vadd.f32 %v1462, 1.0
    %v1464 = vrcp.pop %v1463
    %v1465 = vmul.f32 1.0, %v1464
    %v1466 = vld [vmem:[#allocation7] sm:$0xff]
    %v1467 = vld [vmem:[#allocation7 + $0x8] sm:$0xff]
    %v1468 = vld [vmem:[#allocation7 + $0x10] sm:$0xff]
    %v1469 = vld [vmem:[#allocation7 + $0x18] sm:$0xff]
    %v1471 = vsel %vm747, %v1375, 0
    %1473 = vmatprep.subr.mxu0 %v1467
    %1474 = vmatpush1.msra.mxu0 %v1466
    %1475 = vmatprep.subr.mxu0 %v1469
    %1476 = vmatpush1.msra.mxu0 %v1468
    %1477 = vmatprep.subr.mxu0 0.0
    %1478 = vmatpush1.msra.mxu0 0.0
    %1479 = vmatprep.subr.mxu0 0.0
    %1480 = vmatpush1.msra.mxu0 0.0
    %1481 = vmatprep.subr.mxu0 0.0
    %1482 = vmatpush1.msra.mxu0 0.0
    %1483 = vmatprep.subr.mxu0 0.0
    %1484 = vmatpush1.msra.mxu0 0.0
    %1485 = vmatprep.subr.mxu0 0.0
    %1486 = vmatpush1.msra.mxu0 0.0
    %1487 = vmatprep.subr.mxu0 0.0
    %1488 = vmatpush1.msra.mxu0 0.0
    %1489 = vmatprep.subr.mxu0 0.0
    %1490 = vmatpush1.msra.mxu0 0.0
    %1491 = vmatprep.subr.mxu0 0.0
    %1492 = vmatpush1.msra.mxu0 0.0
    %1493 = vmatprep.subr.mxu0 0.0
    %1494 = vmatpush1.msra.mxu0 0.0
    %1495 = vmatprep.subr.mxu0 0.0
    %1496 = vmatpush1.msra.mxu0 0.0
    %1497 = vmatprep.subr.mxu0 0.0
    %1498 = vmatpush1.msra.mxu0 0.0
    %1499 = vmatprep.subr.mxu0 0.0
    %1500 = vmatpush1.msra.mxu0 0.0
    %1501 = vmatprep.subr.mxu0 0.0
    %1502 = vmatpush1.msra.mxu0 0.0
    %1503 = vmatprep.subr.mxu0 0.0
    %1504 = vmatpush1.msra.mxu0 0.0
    %1505 = vmatprep.subr.mxu0 0.0
    %1506 = vmatpush1.msra.mxu0 0.0
    %1507 = vmatprep.subr.mxu0 0.0
    %1508 = vmatpush1.msra.mxu0 0.0
    %1509 = vmatprep.subr.mxu0 0.0
    %1510 = vmatpush1.msra.mxu0 0.0
    %1511 = vmatprep.subr.mxu0 0.0
    %1512 = vmatpush1.msra.mxu0 0.0
    %1513 = vmatprep.subr.mxu0 0.0
    %1514 = vmatpush1.msra.mxu0 0.0
    %1515 = vmatprep.subr.mxu0 0.0
    %1516 = vmatpush1.msra.mxu0 0.0
    %1517 = vmatprep.subr.mxu0 0.0
    %1518 = vmatpush1.msra.mxu0 0.0
    %1519 = vmatprep.subr.mxu0 0.0
    %1520 = vmatpush1.msra.mxu0 0.0
    %1521 = vmatprep.subr.mxu0 0.0
    %1522 = vmatpush1.msra.mxu0 0.0
    %1523 = vmatprep.subr.mxu0 0.0
    %1524 = vmatpush1.msra.mxu0 0.0
    %1525 = vmatprep.subr.mxu0 0.0
    %1526 = vmatpush1.msra.mxu0 0.0
    %1527 = vmatprep.subr.mxu0 0.0
    %1528 = vmatpush1.msra.mxu0 0.0
    %1529 = vmatprep.subr.mxu0 0.0
    %1530 = vmatpush1.msra.mxu0 0.0
    %1531 = vmatprep.subr.mxu0 0.0
    %1532 = vmatpush1.msra.mxu0 0.0
    %1533 = vmatprep.subr.mxu0 0.0
    %1534 = vmatpush1.msra.mxu0 0.0
    %1535 = vmatprep.subr.mxu0 0.0
    %1536 = vmatpush1.msra.mxu0 0.0
    %1537 = vmatprep.mubr.f32.mxu0 0.0
    %1538 = vmatmul.mubr.f32.gmra.mrb[0].mxu0 %v1471
    %v1539 = vpop.f32.mrb[0].mxu0
    %v1540 = vadd.f32 0.0, %v1539
    %v1541 = vpop.f32.mrb[0].mxu0
    %v1542 = vadd.f32 0.0, %v1541
    %1543 = vdwg.mxu0
    %v1544 = vld [vmem:[#allocation8] sm:$0xff]
    %v1545 = vld [vmem:[#allocation8 + $0x8] sm:$0xff]
    %v1546 = vld [vmem:[#allocation8 + $0x10] sm:$0xff]
    %v1547 = vld [vmem:[#allocation8 + $0x18] sm:$0xff]
    %v1549 = vsel %vm747, %v1465, 0
    %1551 = vmatprep.subr.mxu0 %v1545
    %1552 = vmatpush1.msra.mxu0 %v1544
    %1553 = vmatprep.subr.mxu0 %v1547
    %1554 = vmatpush1.msra.mxu0 %v1546
    %1555 = vmatprep.subr.mxu0 0.0
    %1556 = vmatpush1.msra.mxu0 0.0
    %1557 = vmatprep.subr.mxu0 0.0
    %1558 = vmatpush1.msra.mxu0 0.0
    %1559 = vmatprep.subr.mxu0 0.0
    %1560 = vmatpush1.msra.mxu0 0.0
    %1561 = vmatprep.subr.mxu0 0.0
    %1562 = vmatpush1.msra.mxu0 0.0
    %1563 = vmatprep.subr.mxu0 0.0
    %1564 = vmatpush1.msra.mxu0 0.0
    %1565 = vmatprep.subr.mxu0 0.0
    %1566 = vmatpush1.msra.mxu0 0.0
    %1567 = vmatprep.subr.mxu0 0.0
    %1568 = vmatpush1.msra.mxu0 0.0
    %1569 = vmatprep.subr.mxu0 0.0
    %1570 = vmatpush1.msra.mxu0 0.0
    %1571 = vmatprep.subr.mxu0 0.0
    %1572 = vmatpush1.msra.mxu0 0.0
    %1573 = vmatprep.subr.mxu0 0.0
    %1574 = vmatpush1.msra.mxu0 0.0
    %1575 = vmatprep.subr.mxu0 0.0
    %1576 = vmatpush1.msra.mxu0 0.0
    %1577 = vmatprep.subr.mxu0 0.0
    %1578 = vmatpush1.msra.mxu0 0.0
    %1579 = vmatprep.subr.mxu0 0.0
    %1580 = vmatpush1.msra.mxu0 0.0
    %1581 = vmatprep.subr.mxu0 0.0
    %1582 = vmatpush1.msra.mxu0 0.0
    %1583 = vmatprep.subr.mxu0 0.0
    %1584 = vmatpush1.msra.mxu0 0.0
    %1585 = vmatprep.subr.mxu0 0.0
    %1586 = vmatpush1.msra.mxu0 0.0
    %1587 = vmatprep.subr.mxu0 0.0
    %1588 = vmatpush1.msra.mxu0 0.0
    %1589 = vmatprep.subr.mxu0 0.0
    %1590 = vmatpush1.msra.mxu0 0.0
    %1591 = vmatprep.subr.mxu0 0.0
    %1592 = vmatpush1.msra.mxu0 0.0
    %1593 = vmatprep.subr.mxu0 0.0
    %1594 = vmatpush1.msra.mxu0 0.0
    %1595 = vmatprep.subr.mxu0 0.0
    %1596 = vmatpush1.msra.mxu0 0.0
    %1597 = vmatprep.subr.mxu0 0.0
    %1598 = vmatpush1.msra.mxu0 0.0
    %1599 = vmatprep.subr.mxu0 0.0
    %1600 = vmatpush1.msra.mxu0 0.0
    %1601 = vmatprep.subr.mxu0 0.0
    %1602 = vmatpush1.msra.mxu0 0.0
    %1603 = vmatprep.subr.mxu0 0.0
    %1604 = vmatpush1.msra.mxu0 0.0
    %1605 = vmatprep.subr.mxu0 0.0
    %1606 = vmatpush1.msra.mxu0 0.0
    %1607 = vmatprep.subr.mxu0 0.0
    %1608 = vmatpush1.msra.mxu0 0.0
    %1609 = vmatprep.subr.mxu0 0.0
    %1610 = vmatpush1.msra.mxu0 0.0
    %1611 = vmatprep.subr.mxu0 0.0
    %1612 = vmatpush1.msra.mxu0 0.0
    %1613 = vmatprep.subr.mxu0 0.0
    %1614 = vmatpush1.msra.mxu0 0.0
    %1615 = vmatprep.mubr.f32.mxu0 0.0
    %1616 = vmatmul.mubr.f32.gmra.mrb[0].mxu0 %v1549
    %v1617 = vpop.f32.mrb[0].mxu0
    %v1618 = vadd.f32 0.0, %v1617
    %v1619 = vpop.f32.mrb[0].mxu0
    %v1620 = vadd.f32 0.0, %v1619
    %1621 = vdwg.mxu0
    %v1622 = vmul.f32 %v1540, %v1618
    %v1623 = vmul.f32 %v1542, %v1620
    %1625 = vset.pattern.permute.xlu0 0
    %1626 = vperm.xlu0 %1625, %v1200
    %v1627 = vpop.permute.xlu0 %1626
    %v1629 = vadd.f32 %v1622, %v1627
    %v1630 = vadd.f32 %v1623, %v1627
    %v1633 = vcombine.low %v1629, %v1630
    %v1635 = vmul.f32 %v916, %v1633
    %s1636 = scalar_lea.vmem [#allocation22], 8
    %1637 = vst [vmem:[%s1636] sm:$0xff] %v1635
    // Predicated region
    $region98: #{tpu_custom_call.1} parent=1 // pred_check
      _
    $region99: #{tpu_custom_call.1} parent=1 // pred_check_branch
      %1639 = sbr.rel (0) target = $region101
    $region100: #{tpu_custom_call.1} parent=1 // pred_region
      %s1641 = ssub.s32 256, 256
      %1642 = vsyncadd [#allocation4], %s1641
      %s1643 = sshll.u32 [#allocation22], 4
      %s1644 = int_to_ptr.vmem [resolvable:$true] %s1643
      %1649 = dma.vmem_to_hbm [thread:$0]  %s1644, 256, %s12, [#allocation4], 128, 128, 8
    $region101: #{tpu_custom_call.1} parent=1 // pred_fallthru
      _
    // Predicated region
    $region102: #{tpu_custom_call.1} parent=1 // pred_check
      _
    $region103: #{tpu_custom_call.1} parent=1 // pred_check_branch
      %1651 = sbr.rel (0) target = $region105
    $region104: #{tpu_custom_call.1} parent=1 // pred_region
      %1652 = dma.done [#allocation4], 256
    $region105: #{tpu_custom_call.1} parent=1 // pred_fallthru
      _
    %1653 = vsyncpa [#allocation3], 1
    %1654 = vsyncpa [#allocation6], 1
    %1655 = vsyncpa [#allocation9], 1
    %1656 = vsyncpa [#allocation12], 1
    %1657 = vsyncpa [#allocation15], 1
    %1658 = vsyncpa [#allocation18], 1
    %1659 = vsyncpa [#allocation21], 1
    %1660 = vsyncpa [#allocation4], 1

</llo_original>
